<compile_context>
chip_gen: v6e
topology: v6e:2x2x1
jax: 0.10.0
libtpu: 0.0.40
codegen_flags: <defaults>
</compile_context>

<pallas_src>
import math
import functools

import jax
import jax.numpy as jnp
from jax.experimental import pallas as pl
from jax.experimental.pallas import tpu as pltpu

_EPS2 = 1e-24      # (F.normalize eps = 1e-12) ** 2 ; sqrt is monotone so max commutes
_NEG_BIG = -1e30   # finite "-inf" used for masking (avoids inf-inf NaNs)


def _normalize_text_chunk(c, col0, txt_hbm_ref, stage_ref, dma_sem, txt_T_ref, scale):
    """DMA text slab c ((D, tc), pre-transposed in HBM), L2-normalize its columns,
    fold in the logit scale, store bf16 at lane offset col0 of the resident
    (D, B_pad) matmul operand."""
    tc = stage_ref.shape[1]
    cp = pltpu.make_async_copy(txt_hbm_ref.at[c], stage_ref, dma_sem)
    cp.start()
    cp.wait()
    t = stage_ref[...]
    inv = jax.lax.rsqrt(jnp.maximum(jnp.sum(t * t, axis=0, keepdims=True), _EPS2))
    txt_T_ref[:, pl.ds(col0, tc)] = (t * (inv * scale)).astype(jnp.bfloat16)


def _clip_loss_kernel(img_ref, txt_hbm_ref, scale_ref, loss_ref,
                      txt_T_ref, stage_ref, dma_sem,
                      col_m_ref, col_l_ref, img_acc_ref, diag_acc_ref,
                      *, b_valid):
    i = pl.program_id(0)
    n_tiles = pl.num_programs(0)
    tm, _ = img_ref.shape
    n_chunks = txt_hbm_ref.shape[0]
    b_pad = txt_T_ref.shape[1]
    need_mask = (b_valid != b_pad)   # trace-time bool; masking compiled out when aligned

    # ---- prologue (i == 0): build the resident bf16 (D, B_pad) text operand. ----
    @pl.when(i == 0)
    def _init():
        scale = scale_ref[0]
        if n_chunks <= 32:
            # Fully unrolled, static offsets (covers typical batch sizes).
            for c in range(n_chunks):
                _normalize_text_chunk(c, c * tm, txt_hbm_ref, stage_ref,
                                      dma_sem, txt_T_ref, scale)
        else:
            def body(c, carry):
                col0 = pl.multiple_of(c * tm, tm)
                _normalize_text_chunk(c, col0, txt_hbm_ref, stage_ref,
                                      dma_sem, txt_T_ref, scale)
                return carry
            jax.lax.fori_loop(0, n_chunks, body, 0)
        col_m_ref[...] = jnp.full(col_m_ref.shape, _NEG_BIG, jnp.float32)
        col_l_ref[...] = jnp.zeros(col_l_ref.shape, jnp.float32)
        img_acc_ref[...] = jnp.zeros(img_acc_ref.shape, jnp.float32)
        diag_acc_ref[...] = jnp.zeros(diag_acc_ref.shape, jnp.float32)

    # ---- this tile: normalize image rows (f32), one bf16 MXU matmul. ----
    img = img_ref[...].astype(jnp.float32)
    inv_i = jax.lax.rsqrt(
        jnp.maximum(jnp.sum(img * img, axis=-1, keepdims=True), _EPS2))
    img_n = (img * inv_i).astype(jnp.bfloat16)                          # (tm, D)

    logits = jax.lax.dot_general(
        img_n, txt_T_ref[...],
        dimension_numbers=(((1,), (0,)), ((), ())),
        preferred_element_type=jnp.float32)                             # (tm, B_pad) f32

    row_ids = jax.lax.broadcasted_iota(jnp.int32, (tm, 1), 0) + i * tm  # global row ids
    col_ids = jax.lax.broadcasted_iota(jnp.int32, (1, b_pad), 1)
    if need_mask:
        valid = (row_ids < b_valid) & (col_ids < b_valid)
        logits = jnp.where(valid, logits, _NEG_BIG)

    # Image CE: per-row logsumexp (every row of this tile sees all columns).
    m_row = jnp.max(logits, axis=-1, keepdims=True)                     # (tm, 1)
    p = jnp.exp(logits - m_row)                                         # (tm, B_pad) -- the only big exp
    lse_row = m_row + jnp.log(jnp.sum(p, axis=-1, keepdims=True))       # (tm, 1)
    if need_mask:
        lse_row = jnp.where(row_ids < b_valid, lse_row, 0.0)
    img_acc_ref[...] += jnp.sum(lse_row, keepdims=True)

    # Diagonal (label) logits -- shared by both CE terms; only the sum is needed.
    diag_mask = col_ids == row_ids
    if need_mask:
        diag_mask = diag_mask & (row_ids < b_valid)
    diag_acc_ref[...] += jnp.sum(jnp.where(diag_mask, logits, 0.0), keepdims=True)

    # Text CE: logits_per_text == logits.T -> online column logsumexp across
    # row tiles, reusing P via rank-1 correction factors (tm + B exps instead
    # of a second tm*B exp).
    t_col = jnp.max(logits, axis=0, keepdims=True)                      # (1, B_pad)
    m_new = jnp.maximum(col_m_ref[...], t_col)
    g = jnp.max(m_row, axis=0, keepdims=True)                           # (1, 1) tile max
    row_fac = jnp.exp(m_row - g)                                        # (tm, 1), <= 1
    # |g - m_new| <= 2*scale for valid columns; the clamp only guards
    # pathological scales (> 40) and all-padded columns (contribution is 0).
    col_fac = jnp.exp(jnp.minimum(g - m_new, 80.0))                     # (1, B_pad)
    contrib = jnp.sum(p * row_fac, axis=0, keepdims=True) * col_fac     # (1, B_pad)
    col_l_ref[...] = col_l_ref[...] * jnp.exp(col_m_ref[...] - m_new) + contrib
    col_m_ref[...] = m_new

    # ---- epilogue (last tile): combine both CE terms into the scalar loss. ----
    @pl.when(i == n_tiles - 1)
    def _finalize():
        col_lse = col_m_ref[...] + jnp.log(col_l_ref[...])              # (1, B_pad)
        if need_mask:
            col_lse = jnp.where(col_ids < b_valid, col_lse, 0.0)
        txt_sum = jnp.sum(col_lse, keepdims=True)                       # (1, 1)
        loss_ref[...] = ((img_acc_ref[...] + txt_sum - 2.0 * diag_acc_ref[...])
                         * (1.0 / (2.0 * b_valid)))


def _round_up(x, m):
    return ((x + m - 1) // m) * m


def _pick_row_tile(b):
    """MXU-shaped row tiles: prefer 256 (v6e/v7x MXU height) or 128; small or
    awkward batches become a single sublane-aligned tile (padding is masked)."""
    if b >= 256:
        return 256 if (b % 256 == 0 or b >= 2048) else 128
    return _round_up(max(b, 8), 8)


@jax.jit
def clip_loss(image_embed, text_embed, scale):
    """image_embed, text_embed: (B, D); scale: (1,) float32. Returns scalar loss."""
    b, d = image_embed.shape
    tm = _pick_row_tile(b)
    b_pad = _round_up(b, tm)
    n_tiles = b_pad // tm

    img = image_embed.astype(jnp.float32)
    txt = text_embed.astype(jnp.float32)
    if b_pad != b:
        img = jnp.pad(img, ((0, b_pad - b), (0, 0)))
        txt = jnp.pad(txt, ((0, b_pad - b), (0, 0)))
    # Layout plumbing only: present text as (n_tiles, D, tm) column slabs so the
    # prologue DMA is a plain leading-index copy and the resident matmul RHS is
    # built directly in (D, B_pad) layout.
    txt_slabs = txt.reshape(n_tiles, tm, d).transpose(0, 2, 1)
    scale = scale.reshape((1,)).astype(jnp.float32)

    # VMEM budget: resident bf16 text + staging + image double-buffer + a few
    # (tm, B_pad) f32 intermediates; capped below v7x's 64 MiB physical VMEM.
    # TODO(synk): tile the text/column axis once b_pad*d no longer fits VMEM.
    resident = (d * b_pad * 2 + 3 * tm * d * 4 + 6 * tm * b_pad * 4
                + 4 * 8 * b_pad * 4)
    vmem_limit = int(min(max(2 * resident, 32 * 1024 * 1024), 56 * 1024 * 1024))

    cost = pl.CostEstimate(
        flops=2 * b_pad * b_pad * d + 10 * b_pad * d + 12 * b_pad * b_pad,
        transcendentals=b_pad * b_pad + 6 * b_pad * n_tiles + 2 * b_pad,
        bytes_accessed=2 * b_pad * d * 4 + 4,
    )

    out = pl.pallas_call(
        functools.partial(_clip_loss_kernel, b_valid=b),
        out_shape=jax.ShapeDtypeStruct((1, 1), jnp.float32),
        grid_spec=pltpu.PrefetchScalarGridSpec(
            num_scalar_prefetch=0,
            grid=(n_tiles,),
            in_specs=[
                pl.BlockSpec((tm, d), lambda i: (i, 0)),              # image row tile
                pl.BlockSpec(memory_space=pl.ANY),                    # text slabs (stay in HBM)
                pl.BlockSpec(memory_space=pltpu.MemorySpace.SMEM),    # scale
            ],
            out_specs=pl.BlockSpec((1, 1), lambda i: (0, 0)),
            scratch_shapes=[
                pltpu.VMEM((d, b_pad), jnp.bfloat16),  # normalized*scaled text.T (MXU RHS)
                pltpu.VMEM((d, tm), jnp.float32),      # prologue DMA staging slab
                pltpu.SemaphoreType.DMA,               # prologue DMA semaphore
                pltpu.VMEM((1, b_pad), jnp.float32),   # online column max
                pltpu.VMEM((1, b_pad), jnp.float32),   # online column sum-exp
                pltpu.VMEM((1, 1), jnp.float32),       # sum of row logsumexp
                pltpu.VMEM((1, 1), jnp.float32),       # sum of diagonal logits
            ],
        ),
        compiler_params=pltpu.CompilerParams(
            dimension_semantics=("arbitrary",),
            vmem_limit_bytes=vmem_limit,
        ),
        cost_estimate=cost,
    )(img, txt_slabs, scale)
    return out[0, 0]


def clip_loss_ref(image_embed, text_embed, scale):
    """Pure-JAX reference (mirrors the PyTorch forward, single device)."""
    eps = 1e-12
    img_n = image_embed / jnp.maximum(
        jnp.linalg.norm(image_embed, axis=-1, keepdims=True), eps)
    txt_n = text_embed / jnp.maximum(
        jnp.linalg.norm(text_embed, axis=-1, keepdims=True), eps)
    s = scale[0]
    logits_i = s * img_n @ txt_n.T
    logits_t = s * txt_n @ img_n.T
    labels = jnp.arange(image_embed.shape[0])

    def ce(logits):
        lse = jax.scipy.special.logsumexp(logits, axis=-1)
        picked = jnp.take_along_axis(logits, labels[:, None], axis=-1)[:, 0]
        return jnp.mean(lse - picked)

    return (ce(logits_i) + ce(logits_t[: logits_i.shape[0]])) / 2.0


if __name__ == "__main__":
    key = jax.random.PRNGKey(0)
    k1, k2, k3, k4 = jax.random.split(key, 4)
    # Parameter init exactly as the module: scale = log(1/0.07), applied
    # directly (the module does NOT exponentiate it in forward).
    scale = jnp.array([math.log(1.0 / 0.07)], dtype=jnp.float32)

    # Case 1: tile-aligned batch (two 256-row tiles).
    B, D = 512, 128
    image_embed = jax.random.normal(k1, (B, D), dtype=jnp.float32)
    text_embed = jax.random.normal(k2, (B, D), dtype=jnp.float32)
    loss = clip_loss(image_embed, text_embed, scale)
    jax.block_until_ready(loss)
    ref = clip_loss_ref(image_embed, text_embed, scale)
    # bf16 MXU feed (f32 accumulate) trades exact f32 parity for throughput;
    # observed error on this scalar loss is O(1e-3).
    assert jnp.allclose(loss, ref, rtol=1e-2, atol=1e-2), (loss, ref)

    # Case 2: awkward batch exercising the padded / masked path (B_pad = 384).
    B2 = 300
    image_embed2 = jax.random.normal(k3, (B2, D), dtype=jnp.float32)
    text_embed2 = jax.random.normal(k4, (B2, D), dtype=jnp.float32)
    loss2 = clip_loss(image_embed2, text_embed2, scale)
    jax.block_until_ready(loss2)
    ref2 = clip_loss_ref(image_embed2, text_embed2, scale)
    assert jnp.allclose(loss2, ref2, rtol=1e-2, atol=1e-2), (loss2, ref2)

    print("KERNEL_OK")
</pallas_src>

<mosaic_0001>
module attributes {stable_mosaic.version = 11 : i64} {
  func.func @_clip_loss_kernel(%arg0: i32, %arg1: memref<256x128xf32, #tpu.memory_space<vmem>>, %arg2: memref<2x128x256xf32, #tpu.memory_space<any>>, %arg3: memref<1xf32, #tpu.memory_space<smem>>, %arg4: memref<1x1xf32, #tpu.memory_space<vmem>>, %arg5: memref<128x512xbf16, #tpu.memory_space<vmem>>, %arg6: memref<128x256xf32, #tpu.memory_space<vmem>>, %arg7: memref<!tpu.dma_semaphore, #tpu.memory_space<semaphore_mem>>, %arg8: memref<1x512xf32, #tpu.memory_space<vmem>>, %arg9: memref<1x512xf32, #tpu.memory_space<vmem>>, %arg10: memref<1x1xf32, #tpu.memory_space<vmem>>, %arg11: memref<1x1xf32, #tpu.memory_space<vmem>>) attributes {dimension_semantics = [#tpu.dimension_semantics<arbitrary>], iteration_bounds = array<i64: 2>, scalar_prefetch = 0 : i64, scratch_operands = 7 : i64, tpu.core_type = #tpu.core_type<tc>, window_params = [{transform_indices = @transform_0, window_bounds = array<i64: 256, 128>}, {}, {transform_indices = @transform_2, window_bounds = array<i64: 1>}, {pipeline_mode = #tpu.pipeline_mode<synchronous>, transform_indices = @transform_3, window_bounds = array<i64: 1, 1>}]} {
    %c0_i32 = arith.constant 0 : i32
    %0 = arith.cmpi eq, %arg0, %c0_i32 : i32
    %1 = arith.extui %0 : i1 to i32
    %c0_i32_0 = arith.constant 0 : i32
    %2 = arith.cmpi ne, %1, %c0_i32_0 : i32
    scf.if %2 {
      %c0_34 = arith.constant 0 : index
      %80 = memref.load %arg3[%c0_34] : memref<1xf32, #tpu.memory_space<smem>>
      %c0_i32_35 = arith.constant 0 : i32
      %c0_i32_36 = arith.constant 0 : i32
      %c0_i32_37 = arith.constant 0 : i32
      %81 = tpu.memref_slice %arg2[%c0_i32_35, %c0_i32_36, %c0_i32_37] : memref<2x128x256xf32, #tpu.memory_space<any>> -> memref<1x128x256xf32, #tpu.memory_space<any>>
      %82 = tpu.memref_squeeze %81 : memref<1x128x256xf32, #tpu.memory_space<any>> -> memref<128x256xf32, #tpu.memory_space<any>>
      tpu.enqueue_dma source(%82 : memref<128x256xf32, #tpu.memory_space<any>>) target(%arg6 : memref<128x256xf32, #tpu.memory_space<vmem>>) target_semaphore(%arg7 : memref<!tpu.dma_semaphore, #tpu.memory_space<semaphore_mem>>)
      %c0_i32_38 = arith.constant 0 : i32
      %c0_i32_39 = arith.constant 0 : i32
      %c0_i32_40 = arith.constant 0 : i32
      %83 = tpu.memref_slice %arg2[%c0_i32_38, %c0_i32_39, %c0_i32_40] : memref<2x128x256xf32, #tpu.memory_space<any>> -> memref<1x128x256xf32, #tpu.memory_space<any>>
      %84 = tpu.memref_squeeze %83 : memref<1x128x256xf32, #tpu.memory_space<any>> -> memref<128x256xf32, #tpu.memory_space<any>>
      tpu.wait_dma2 semaphore(%arg7 : memref<!tpu.dma_semaphore, #tpu.memory_space<semaphore_mem>>) src(%84 : memref<128x256xf32, #tpu.memory_space<any>>) dst(%arg6 : memref<128x256xf32, #tpu.memory_space<vmem>>)
      %c0_41 = arith.constant 0 : index
      %c0_42 = arith.constant 0 : index
      %85 = vector.load %arg6[%c0_41, %c0_42] : memref<128x256xf32, #tpu.memory_space<vmem>>, vector<128x256xf32>
      %86 = arith.mulf %85, %85 : vector<128x256xf32>
      %cst_43 = arith.constant dense<0.000000e+00> : vector<256xf32>
      %87 = vector.multi_reduction <add>, %86, %cst_43 [0] : vector<128x256xf32> to vector<256xf32>
      %88 = vector.shape_cast %87 : vector<256xf32> to vector<1x256xf32>
      %cst_44 = arith.constant 1.000000e-24 : f32
      %89 = vector.broadcast %cst_44 : f32 to vector<1x256xf32>
      %90 = arith.maximumf %88, %89 : vector<1x256xf32>
      %91 = math.rsqrt %90 : vector<1x256xf32>
      %92 = vector.broadcast %80 : f32 to vector<1x256xf32>
      %93 = arith.mulf %91, %92 : vector<1x256xf32>
      %94 = vector.broadcast %93 : vector<1x256xf32> to vector<128x256xf32>
      %95 = arith.mulf %85, %94 : vector<128x256xf32>
      %96 = arith.truncf %95 : vector<128x256xf32> to vector<128x256xbf16>
      %c0_45 = arith.constant 0 : index
      %c0_46 = arith.constant 0 : index
      %97 = vector.load %arg5[%c0_45, %c0_46] : memref<128x512xbf16, #tpu.memory_space<vmem>>, vector<128x256xbf16>
      tpu.vector_store %arg5[%c0_45, %c0_46], %96 {strides = array<i32>} : memref<128x512xbf16, #tpu.memory_space<vmem>>, vector<128x256xbf16>,
      %c1_i32_47 = arith.constant 1 : i32
      %c0_i32_48 = arith.constant 0 : i32
      %c0_i32_49 = arith.constant 0 : i32
      %98 = tpu.memref_slice %arg2[%c1_i32_47, %c0_i32_48, %c0_i32_49] : memref<2x128x256xf32, #tpu.memory_space<any>> -> memref<1x128x256xf32, #tpu.memory_space<any>>
      %99 = tpu.memref_squeeze %98 : memref<1x128x256xf32, #tpu.memory_space<any>> -> memref<128x256xf32, #tpu.memory_space<any>>
      tpu.enqueue_dma source(%99 : memref<128x256xf32, #tpu.memory_space<any>>) target(%arg6 : memref<128x256xf32, #tpu.memory_space<vmem>>) target_semaphore(%arg7 : memref<!tpu.dma_semaphore, #tpu.memory_space<semaphore_mem>>)
      %c1_i32_50 = arith.constant 1 : i32
      %c0_i32_51 = arith.constant 0 : i32
      %c0_i32_52 = arith.constant 0 : i32
      %100 = tpu.memref_slice %arg2[%c1_i32_50, %c0_i32_51, %c0_i32_52] : memref<2x128x256xf32, #tpu.memory_space<any>> -> memref<1x128x256xf32, #tpu.memory_space<any>>
      %101 = tpu.memref_squeeze %100 : memref<1x128x256xf32, #tpu.memory_space<any>> -> memref<128x256xf32, #tpu.memory_space<any>>
      tpu.wait_dma2 semaphore(%arg7 : memref<!tpu.dma_semaphore, #tpu.memory_space<semaphore_mem>>) src(%101 : memref<128x256xf32, #tpu.memory_space<any>>) dst(%arg6 : memref<128x256xf32, #tpu.memory_space<vmem>>)
      %c0_53 = arith.constant 0 : index
      %c0_54 = arith.constant 0 : index
      %102 = vector.load %arg6[%c0_53, %c0_54] : memref<128x256xf32, #tpu.memory_space<vmem>>, vector<128x256xf32>
      %103 = arith.mulf %102, %102 : vector<128x256xf32>
      %cst_55 = arith.constant dense<0.000000e+00> : vector<256xf32>
      %104 = vector.multi_reduction <add>, %103, %cst_55 [0] : vector<128x256xf32> to vector<256xf32>
      %105 = vector.shape_cast %104 : vector<256xf32> to vector<1x256xf32>
      %cst_56 = arith.constant 1.000000e-24 : f32
      %106 = vector.broadcast %cst_56 : f32 to vector<1x256xf32>
      %107 = arith.maximumf %105, %106 : vector<1x256xf32>
      %108 = math.rsqrt %107 : vector<1x256xf32>
      %109 = vector.broadcast %80 : f32 to vector<1x256xf32>
      %110 = arith.mulf %108, %109 : vector<1x256xf32>
      %111 = vector.broadcast %110 : vector<1x256xf32> to vector<128x256xf32>
      %112 = arith.mulf %102, %111 : vector<128x256xf32>
      %113 = arith.truncf %112 : vector<128x256xf32> to vector<128x256xbf16>
      %c0_57 = arith.constant 0 : index
      %c256 = arith.constant 256 : index
      %114 = vector.load %arg5[%c0_57, %c256] : memref<128x512xbf16, #tpu.memory_space<vmem>>, vector<128x256xbf16>
      tpu.vector_store %arg5[%c0_57, %c256], %113 {strides = array<i32>} : memref<128x512xbf16, #tpu.memory_space<vmem>>, vector<128x256xbf16>,
      %cst_58 = arith.constant -1.000000e+30 : f32
      %115 = vector.broadcast %cst_58 : f32 to vector<1x512xf32>
      %c0_59 = arith.constant 0 : index
      %c0_60 = arith.constant 0 : index
      %116 = vector.load %arg8[%c0_59, %c0_60] : memref<1x512xf32, #tpu.memory_space<vmem>>, vector<1x512xf32>
      tpu.vector_store %arg8[%c0_59, %c0_60], %115 {strides = array<i32>} : memref<1x512xf32, #tpu.memory_space<vmem>>, vector<1x512xf32>,
      %cst_61 = arith.constant 0.000000e+00 : f32
      %117 = vector.broadcast %cst_61 : f32 to vector<1x512xf32>
      %c0_62 = arith.constant 0 : index
      %c0_63 = arith.constant 0 : index
      %118 = vector.load %arg9[%c0_62, %c0_63] : memref<1x512xf32, #tpu.memory_space<vmem>>, vector<1x512xf32>
      tpu.vector_store %arg9[%c0_62, %c0_63], %117 {strides = array<i32>} : memref<1x512xf32, #tpu.memory_space<vmem>>, vector<1x512xf32>,
      %cst_64 = arith.constant 0.000000e+00 : f32
      %119 = vector.broadcast %cst_64 : f32 to vector<1x1xf32>
      %c0_65 = arith.constant 0 : index
      %c0_66 = arith.constant 0 : index
      %120 = vector.load %arg10[%c0_65, %c0_66] : memref<1x1xf32, #tpu.memory_space<vmem>>, vector<1x1xf32>
      tpu.vector_store %arg10[%c0_65, %c0_66], %119 {strides = array<i32>} : memref<1x1xf32, #tpu.memory_space<vmem>>, vector<1x1xf32>,
      %cst_67 = arith.constant 0.000000e+00 : f32
      %121 = vector.broadcast %cst_67 : f32 to vector<1x1xf32>
      %c0_68 = arith.constant 0 : index
      %c0_69 = arith.constant 0 : index
      %122 = vector.load %arg11[%c0_68, %c0_69] : memref<1x1xf32, #tpu.memory_space<vmem>>, vector<1x1xf32>
      tpu.vector_store %arg11[%c0_68, %c0_69], %121 {strides = array<i32>} : memref<1x1xf32, #tpu.memory_space<vmem>>, vector<1x1xf32>,
    } else {
    }
    %c0 = arith.constant 0 : index
    %c0_1 = arith.constant 0 : index
    %3 = vector.load %arg1[%c0, %c0_1] : memref<256x128xf32, #tpu.memory_space<vmem>>, vector<256x128xf32>
    %4 = arith.mulf %3, %3 : vector<256x128xf32>
    %cst = arith.constant dense<0.000000e+00> : vector<256xf32>
    %5 = vector.multi_reduction <add>, %4, %cst [1] : vector<256x128xf32> to vector<256xf32>
    %6 = vector.shape_cast %5 : vector<256xf32> to vector<256x1xf32>
    %cst_2 = arith.constant 1.000000e-24 : f32
    %7 = vector.broadcast %cst_2 : f32 to vector<256x1xf32>
    %8 = arith.maximumf %6, %7 : vector<256x1xf32>
    %9 = math.rsqrt %8 : vector<256x1xf32>
    %10 = vector.broadcast %9 : vector<256x1xf32> to vector<256x128xf32>
    %11 = arith.mulf %3, %10 : vector<256x128xf32>
    %12 = arith.truncf %11 : vector<256x128xf32> to vector<256x128xbf16>
    %c0_3 = arith.constant 0 : index
    %c0_4 = arith.constant 0 : index
    %13 = vector.load %arg5[%c0_3, %c0_4] : memref<128x512xbf16, #tpu.memory_space<vmem>>, vector<128x512xbf16>
    %cst_5 = arith.constant dense<0.000000e+00> : vector<256x512xf32>
    %14 = tpu.matmul %12, %13, %cst_5 {dimension_numbers = #tpu.dot_dimension_numbers<[1], [0], [0], [1], [0, 0, 1, 1], [], []>} : vector<256x128xbf16>, vector<128x512xbf16>, vector<256x512xf32> -> vector<256x512xf32>
    %15 = tpu.iota {dimensions = array<i32: 0>} : vector<256x1xi32>
    %c256_i32 = arith.constant 256 : i32
    %16 = arith.muli %arg0, %c256_i32 : i32
    %17 = vector.broadcast %16 : i32 to vector<256x1xi32>
    %18 = arith.addi %15, %17 : vector<256x1xi32>
    %19 = tpu.iota {dimensions = array<i32: 1>} : vector<1x512xi32>
    %cst_6 = arith.constant dense<0xFF800000> : vector<256xf32>
    %20 = vector.multi_reduction <maximumf>, %14, %cst_6 [1] : vector<256x512xf32> to vector<256xf32>
    %21 = vector.shape_cast %20 : vector<256xf32> to vector<256x1xf32>
    %22 = vector.broadcast %21 : vector<256x1xf32> to vector<256x512xf32>
    %23 = arith.subf %14, %22 : vector<256x512xf32>
    %24 = math.exp %23 : vector<256x512xf32>
    %cst_7 = arith.constant dense<0.000000e+00> : vector<256xf32>
    %25 = vector.multi_reduction <add>, %24, %cst_7 [1] : vector<256x512xf32> to vector<256xf32>
    %26 = vector.shape_cast %25 : vector<256xf32> to vector<256x1xf32>
    %27 = math.log %26 : vector<256x1xf32>
    %28 = arith.addf %21, %27 : vector<256x1xf32>
    %c0_8 = arith.constant 0 : index
    %c0_9 = arith.constant 0 : index
    %29 = vector.load %arg10[%c0_8, %c0_9] : memref<1x1xf32, #tpu.memory_space<vmem>>, vector<1x1xf32>
    %30 = vector.shape_cast %28 : vector<256x1xf32> to vector<1x256x1xf32>
    %cst_10 = arith.constant dense<0.000000e+00> : vector<1xf32>
    %31 = vector.multi_reduction <add>, %30, %cst_10 [1, 2] : vector<1x256x1xf32> to vector<1xf32>
    %32 = vector.shape_cast %31 : vector<1xf32> to vector<1x1x1xf32>
    %33 = vector.extract %32[0, 0, 0] : f32 from vector<1x1x1xf32>
    %34 = vector.broadcast %33 : f32 to vector<1x1xf32>
    %35 = arith.addf %29, %34 : vector<1x1xf32>
    %c0_11 = arith.constant 0 : index
    %c0_12 = arith.constant 0 : index
    %36 = vector.load %arg10[%c0_11, %c0_12] : memref<1x1xf32, #tpu.memory_space<vmem>>, vector<1x1xf32>
    tpu.vector_store %arg10[%c0_11, %c0_12], %35 {strides = array<i32>} : memref<1x1xf32, #tpu.memory_space<vmem>>, vector<1x1xf32>,
    %37 = vector.broadcast %19 : vector<1x512xi32> to vector<256x512xi32>
    %38 = vector.broadcast %18 : vector<256x1xi32> to vector<256x512xi32>
    %39 = arith.cmpi eq, %37, %38 : vector<256x512xi32>
    %c0_13 = arith.constant 0 : index
    %c0_14 = arith.constant 0 : index
    %40 = vector.load %arg11[%c0_13, %c0_14] : memref<1x1xf32, #tpu.memory_space<vmem>>, vector<1x1xf32>
    %cst_15 = arith.constant 0.000000e+00 : f32
    %41 = vector.broadcast %cst_15 : f32 to vector<256x512xf32>
    %42 = arith.select %39, %14, %41 : vector<256x512xi1>, vector<256x512xf32>
    %43 = vector.shape_cast %42 : vector<256x512xf32> to vector<1x256x512xf32>
    %cst_16 = arith.constant dense<0.000000e+00> : vector<1xf32>
    %44 = vector.multi_reduction <add>, %43, %cst_16 [1, 2] : vector<1x256x512xf32> to vector<1xf32>
    %45 = vector.shape_cast %44 : vector<1xf32> to vector<1x1x1xf32>
    %46 = vector.extract %45[0, 0, 0] : f32 from vector<1x1x1xf32>
    %47 = vector.broadcast %46 : f32 to vector<1x1xf32>
    %48 = arith.addf %40, %47 : vector<1x1xf32>
    %c0_17 = arith.constant 0 : index
    %c0_18 = arith.constant 0 : index
    %49 = vector.load %arg11[%c0_17, %c0_18] : memref<1x1xf32, #tpu.memory_space<vmem>>, vector<1x1xf32>
    tpu.vector_store %arg11[%c0_17, %c0_18], %48 {strides = array<i32>} : memref<1x1xf32, #tpu.memory_space<vmem>>, vector<1x1xf32>,
    %cst_19 = arith.constant dense<0xFF800000> : vector<512xf32>
    %50 = vector.multi_reduction <maximumf>, %14, %cst_19 [0] : vector<256x512xf32> to vector<512xf32>
    %51 = vector.shape_cast %50 : vector<512xf32> to vector<1x512xf32>
    %c0_20 = arith.constant 0 : index
    %c0_21 = arith.constant 0 : index
    %52 = vector.load %arg8[%c0_20, %c0_21] : memref<1x512xf32, #tpu.memory_space<vmem>>, vector<1x512xf32>
    %53 = arith.maximumf %52, %51 : vector<1x512xf32>
    %cst_22 = arith.constant dense<0xFF800000> : vector<1xf32>
    %54 = vector.multi_reduction <maximumf>, %21, %cst_22 [0] : vector<256x1xf32> to vector<1xf32>
    %55 = vector.shape_cast %54 : vector<1xf32> to vector<1x1xf32>
    %56 = vector.broadcast %55 : vector<1x1xf32> to vector<256x1xf32>
    %57 = arith.subf %21, %56 : vector<256x1xf32>
    %58 = math.exp %57 : vector<256x1xf32>
    %59 = vector.broadcast %55 : vector<1x1xf32> to vector<1x512xf32>
    %60 = arith.subf %59, %53 : vector<1x512xf32>
    %cst_23 = arith.constant 8.000000e+01 : f32
    %61 = vector.broadcast %cst_23 : f32 to vector<1x512xf32>
    %62 = arith.minimumf %60, %61 : vector<1x512xf32>
    %63 = math.exp %62 : vector<1x512xf32>
    %64 = vector.broadcast %58 : vector<256x1xf32> to vector<256x512xf32>
    %65 = arith.mulf %24, %64 : vector<256x512xf32>
    %cst_24 = arith.constant dense<0.000000e+00> : vector<512xf32>
    %66 = vector.multi_reduction <add>, %65, %cst_24 [0] : vector<256x512xf32> to vector<512xf32>
    %67 = vector.shape_cast %66 : vector<512xf32> to vector<1x512xf32>
    %68 = arith.mulf %67, %63 : vector<1x512xf32>
    %c0_25 = arith.constant 0 : index
    %c0_26 = arith.constant 0 : index
    %69 = vector.load %arg9[%c0_25, %c0_26] : memref<1x512xf32, #tpu.memory_space<vmem>>, vector<1x512xf32>
    %c0_27 = arith.constant 0 : index
    %c0_28 = arith.constant 0 : index
    %70 = vector.load %arg8[%c0_27, %c0_28] : memref<1x512xf32, #tpu.memory_space<vmem>>, vector<1x512xf32>
    %71 = arith.subf %70, %53 : vector<1x512xf32>
    %72 = math.exp %71 : vector<1x512xf32>
    %73 = arith.mulf %69, %72 : vector<1x512xf32>
    %74 = arith.addf %73, %68 : vector<1x512xf32>
    %c0_29 = arith.constant 0 : index
    %c0_30 = arith.constant 0 : index
    %75 = vector.load %arg9[%c0_29, %c0_30] : memref<1x512xf32, #tpu.memory_space<vmem>>, vector<1x512xf32>
    tpu.vector_store %arg9[%c0_29, %c0_30], %74 {strides = array<i32>} : memref<1x512xf32, #tpu.memory_space<vmem>>, vector<1x512xf32>,
    %c0_31 = arith.constant 0 : index
    %c0_32 = arith.constant 0 : index
    %76 = vector.load %arg8[%c0_31, %c0_32] : memref<1x512xf32, #tpu.memory_space<vmem>>, vector<1x512xf32>
    tpu.vector_store %arg8[%c0_31, %c0_32], %53 {strides = array<i32>} : memref<1x512xf32, #tpu.memory_space<vmem>>, vector<1x512xf32>,
    %c1_i32 = arith.constant 1 : i32
    %77 = arith.cmpi eq, %arg0, %c1_i32 : i32
    %78 = arith.extui %77 : i1 to i32
    %c0_i32_33 = arith.constant 0 : i32
    %79 = arith.cmpi ne, %78, %c0_i32_33 : i32
    scf.if %79 {
      %c0_34 = arith.constant 0 : index
      %c0_35 = arith.constant 0 : index
      %80 = vector.load %arg8[%c0_34, %c0_35] : memref<1x512xf32, #tpu.memory_space<vmem>>, vector<1x512xf32>
      %c0_36 = arith.constant 0 : index
      %c0_37 = arith.constant 0 : index
      %81 = vector.load %arg9[%c0_36, %c0_37] : memref<1x512xf32, #tpu.memory_space<vmem>>, vector<1x512xf32>
      %82 = math.log %81 : vector<1x512xf32>
      %83 = arith.addf %80, %82 : vector<1x512xf32>
      %84 = vector.shape_cast %83 : vector<1x512xf32> to vector<1x1x512xf32>
      %cst_38 = arith.constant dense<0.000000e+00> : vector<1xf32>
      %85 = vector.multi_reduction <add>, %84, %cst_38 [1, 2] : vector<1x1x512xf32> to vector<1xf32>
      %86 = vector.shape_cast %85 : vector<1xf32> to vector<1x1x1xf32>
      %87 = vector.extract %86[0, 0, 0] : f32 from vector<1x1x1xf32>
      %88 = vector.broadcast %87 : f32 to vector<1x1xf32>
      %c0_39 = arith.constant 0 : index
      %c0_40 = arith.constant 0 : index
      %89 = vector.load %arg10[%c0_39, %c0_40] : memref<1x1xf32, #tpu.memory_space<vmem>>, vector<1x1xf32>
      %90 = arith.addf %89, %88 : vector<1x1xf32>
      %c0_41 = arith.constant 0 : index
      %c0_42 = arith.constant 0 : index
      %91 = vector.load %arg11[%c0_41, %c0_42] : memref<1x1xf32, #tpu.memory_space<vmem>>, vector<1x1xf32>
      %cst_43 = arith.constant 2.000000e+00 : f32
      %92 = vector.broadcast %cst_43 : f32 to vector<1x1xf32>
      %93 = arith.mulf %92, %91 : vector<1x1xf32>
      %94 = arith.subf %90, %93 : vector<1x1xf32>
      %cst_44 = arith.constant 9.765625E-4 : f32
      %95 = vector.broadcast %cst_44 : f32 to vector<1x1xf32>
      %96 = arith.mulf %94, %95 : vector<1x1xf32>
      %c0_45 = arith.constant 0 : index
      %c0_46 = arith.constant 0 : index
      %97 = vector.load %arg4[%c0_45, %c0_46] : memref<1x1xf32, #tpu.memory_space<vmem>>, vector<1x1xf32>
      tpu.vector_store %arg4[%c0_45, %c0_46], %96 {strides = array<i32>} : memref<1x1xf32, #tpu.memory_space<vmem>>, vector<1x1xf32>,
    } else {
    }
    return
  }
  func.func @transform_0(%arg0: i32) -> (i32, i32) {
    %c0_i32 = arith.constant 0 : i32
    %c0_i32_0 = arith.constant 0 : i32
    return %arg0, %c0_i32 : i32, i32
  }
  func.func @transform_2(%arg0: i32) -> i32 {
    %c0_i32 = arith.constant 0 : i32
    %c0_i32_0 = arith.constant 0 : i32
    return %c0_i32 : i32
  }
  func.func @transform_3(%arg0: i32) -> (i32, i32) {
    %c0_i32 = arith.constant 0 : i32
    %c0_i32_0 = arith.constant 0 : i32
    %c0_i32_1 = arith.constant 0 : i32
    return %c0_i32, %c0_i32_0 : i32, i32
  }
}

</mosaic_0001>

<llo_original>
// kernel: clip_loss.1
$region0: #{clip_loss.1}
  #allocation0 [shape = 'u32[]', space=smem, size = 0x4, offset = 0x4, fixed_abs, tag = 'smem constant byte address 0x4 - core index']
  #allocation1 [shape = 'u32[144,128]{1,0:T(1,128)}', space=vmem, size = 0x12000, scoped, tag = 'internal scratch']
  #allocation2 [shape = 'bf16[128,512]{1,0:T(8,128)(2,1)}', space=vmem, size = 0x20000, scoped, tag = 'scratch operand']
  #allocation3 [shape = 'f32[128,256]{1,0:T(8,128)}', space=vmem, size = 0x20000, scoped, tag = 'scratch operand']
  #allocation4 [shape = 's32[1]{0}', space=sflag, size = 0x4, scoped, tag = 'scratch operand']
  #allocation5 [shape = 'f32[1,512]{1,0:T(1,128)}', space=vmem, size = 0x800, scoped, tag = 'scratch operand']
  #allocation6 [shape = 'f32[1,512]{1,0:T(1,128)}', space=vmem, size = 0x800, scoped, tag = 'scratch operand']
  #allocation7 [shape = 'f32[1,1]{1,0:T(1,128)}', space=vmem, size = 0x200, scoped, tag = 'scratch operand']
  #allocation8 [shape = 'f32[1,1]{1,0:T(1,128)}', space=vmem, size = 0x200, scoped, tag = 'scratch operand']
  #allocation9 [shape = 'f32[1]{0:T(128)S(6)}', space=smem, size = 0x200, scoped, tag = 'scoped memory for clip_loss.1']
  #allocation12 [shape = 's32[]', space=sflag, size = 0x4, offset = 0, fixed_abs, tag = 'sflag constant byte address 0x0 - dummy sync flag']
  #allocation13 [shape = 's32[]', space=sflag, size = 0x4, offset = 0, fixed_abs, tag = 'sflag constant byte address 0x0 - dummy sync flag']
  %s0 = inlined_call_operand.vmem [shape: f32[512,128], index: 0, kind: input, shape index: {}]
  %s1 = inlined_call_operand.vmem [shape: f32[2,128,256], index: 1, kind: input, shape index: {}]
  %s2 = inlined_call_operand.<no memory space> [shape: f32[1], index: 2, kind: input, shape index: {}]
  %s3 = inlined_call_operand.hbm [shape: f32[1,1], index: 3, kind: output, shape index: {}]
  %s4 = sld [smem:[#allocation0]]
  $region117: #{clip_loss.1} parent=0
    _
  %s6 = ssub.s32 1, %s4
  %s7 = scalar_select 0, %s6, %s4
  %8 = sst [smem:[#allocation9]] %s2
  $region1: #{clip_loss.1} parent=0
    #allocation10 [shape = 'u8[512]{0}', space=vmem, size = 0x400, scoped, tag = 'output window, operand 0, single buffered']
    #allocation11 [shape = 's32[2]{0}', space=sflag, size = 0x8, scoped, tag = 'scoped memory for clip_loss.1']
    %9 = vsyncpa [#allocation11], 0
    loop: start=0, step=1, limit=4
    $region2: #{clip_loss.1} parent=1 // loop_pre_header
      _
    $region3: #{clip_loss.1} parent=1 // loop_header
      %s11 = sphi 0, %s15
      %p12 = scmp.ge.s32.totalorder %s11, 4
      %s21 = sphi 0, %s23
      %s24 = sphi 0, %s21
      %s25 = sphi 0, %s24
      %s41 = sphi 0, %s25
      %s45 = sphi 0, %s45
      %s47 = sphi 0, %s45
      %s48 = sphi 0, %s47
      %s62 = sphi 0, %s48
      %s66 = sphi 0, %s66
      %s68 = sphi 0, %s66
      %s69 = sphi 0, %s68
      %s83 = sphi 0, %s69
    $region4: #{clip_loss.1} parent=1 // loop_header_branch
      %14 = sbr.rel (%p12) target = $region8
    $region5: #{clip_loss.1} parent=1 // loop_body
      %s16 = ssub.s32 %s11, 1
      %s17 = ssub.s32 %s11, 2
      %s18 = sadd.s32 %s11, 1
      %s19 = ssub.s32 %s11, %s18
      %p20 = scmp.eq.s32.totalorder %s19, 0
      %s22 = sadd.s32 %s21, 1
      %s23 = scalar_select %p20, %s21, %s22
      %p26 = pneg %p20
      %p27 = scmp.eq.s32.totalorder %s11, 1
      %p28 = por %p26, %p27
      %p29 = scmp.ne.s32.totalorder %s21, %s24
      %p30 = scmp.eq.s32.totalorder %s11, 0
      %p31 = por %p29, %p30
      %p32 = scmp.ne.s32.totalorder %s21, %s24
      %p33 = scmp.eq.s32.totalorder %s16, 1
      %p34 = por %p32, %p33
      %p35 = scmp.ne.s32.totalorder %s24, %s25
      %p36 = scmp.eq.s32.totalorder %s16, 0
      %p37 = por %p35, %p36
      %p38 = scmp.ne.s32.totalorder %s24, %s25
      %p39 = scmp.eq.s32.totalorder %s17, 1
      %p40 = por %p38, %p39
      %p42 = scmp.ne.s32.totalorder %s25, %s41
      %p43 = scmp.eq.s32.totalorder %s17, 0
      %p44 = por %p42, %p43
      %s46 = sadd.s32 %s45, 1
      %p49 = scmp.eq.s32.totalorder %s11, 1
      %p50 = scmp.ne.s32.totalorder %s45, %s47
      %p51 = scmp.eq.s32.totalorder %s11, 0
      %p52 = por %p50, %p51
      %p53 = scmp.ne.s32.totalorder %s45, %s47
      %p54 = scmp.eq.s32.totalorder %s16, 1
      %p55 = por %p53, %p54
      %p56 = scmp.ne.s32.totalorder %s47, %s48
      %p57 = scmp.eq.s32.totalorder %s16, 0
      %p58 = por %p56, %p57
      %p59 = scmp.ne.s32.totalorder %s47, %s48
      %p60 = scmp.eq.s32.totalorder %s17, 1
      %p61 = por %p59, %p60
      %p63 = scmp.ne.s32.totalorder %s48, %s62
      %p64 = scmp.eq.s32.totalorder %s17, 0
      %p65 = por %p63, %p64
      %s67 = sadd.s32 %s66, 1
      %p70 = scmp.eq.s32.totalorder %s11, 1
      %p71 = scmp.ne.s32.totalorder %s66, %s68
      %p72 = scmp.eq.s32.totalorder %s11, 0
      %p73 = por %p71, %p72
      %p74 = scmp.ne.s32.totalorder %s66, %s68
      %p75 = scmp.eq.s32.totalorder %s16, 1
      %p76 = por %p74, %p75
      %p77 = scmp.ne.s32.totalorder %s68, %s69
      %p78 = scmp.eq.s32.totalorder %s16, 0
      %p79 = por %p77, %p78
      %p80 = scmp.ne.s32.totalorder %s68, %s69
      %p81 = scmp.eq.s32.totalorder %s17, 1
      %p82 = por %p80, %p81
      %p84 = scmp.ne.s32.totalorder %s69, %s83
      %p85 = scmp.eq.s32.totalorder %s17, 0
      %p86 = por %p84, %p85
      %p87 = scmp.le.s32.totalorder 1, %s11
      %p88 = scmp.lt.s32.totalorder %s11, 3
      %p89 = pnand %p87, %p88
      %p90 = pneg %p89
      // Predicated region
      $region9: #{clip_loss.1} parent=5 // pred_check
        _
      $region10: #{clip_loss.1} parent=5 // pred_check_branch
        %92 = sbr.rel (%p89) target = $region12
      $region11: #{clip_loss.1} parent=5 // pred_region
        %s93 = ssub.s32 %s11, 1
        // Predicated region
        $region13: #{clip_loss.1} parent=11 // pred_check
          %p94 = pneg %p58
        $region14: #{clip_loss.1} parent=11 // pred_check_branch
          %96 = sbr.rel (%p94) target = $region16
        $region15: #{clip_loss.1} parent=11 // pred_region
          _
        $region16: #{clip_loss.1} parent=11 // pred_fallthru
          _
      $region12: #{clip_loss.1} parent=5 // pred_fallthru
        _
      %p97 = scmp.lt.s32.totalorder %s11, 2
      // Predicated region
      $region17: #{clip_loss.1} parent=5 // pred_check
        %p98 = pneg %p97
      $region18: #{clip_loss.1} parent=5 // pred_check_branch
        %100 = sbr.rel (%p98) target = $region20
      $region19: #{clip_loss.1} parent=5 // pred_region
        // Predicated region
        $region21: #{clip_loss.1} parent=19 // pred_check
          %p101 = pneg %p31
        $region22: #{clip_loss.1} parent=19 // pred_check_branch
          %103 = sbr.rel (%p101) target = $region24
        $region23: #{clip_loss.1} parent=19 // pred_region
          %s104 = smul.u32 32, %s11
          %p105 = scmp.lt.s32.totalorder %s104, 63
          %s106 = scalar_select %p105, %s104, 63
          %s107 = smul.addr %s106, 8
          %s108 = scalar_lea.vmem %s0, %s107
          %s109 = smul.u32 32, %s11
        $region24: #{clip_loss.1} parent=19 // pred_fallthru
          _
      $region20: #{clip_loss.1} parent=5 // pred_fallthru
        _
      %p110 = scmp.le.s32.totalorder 1, %s11
      %p111 = scmp.lt.s32.totalorder %s11, 3
      %p112 = pnand %p110, %p111
      %p113 = pneg %p112
      // Predicated region
      $region25: #{clip_loss.1} parent=5 // pred_check
        _
      $region26: #{clip_loss.1} parent=5 // pred_check_branch
        %115 = sbr.rel (%p112) target = $region28
      $region27: #{clip_loss.1} parent=5 // pred_region
        %s116 = ssub.s32 %s11, 1
        %s117 = smul.u32 32, %s16
        %p118 = scmp.lt.s32.totalorder %s117, 63
        %s119 = scalar_select %p118, %s117, 63
        %s120 = smul.addr %s119, 8
        %s121 = scalar_lea.vmem %s0, %s120
        %p122 = pneg %p37
        %p123 = pneg %p34
        %p124 = pneg %p58
        %p125 = pneg %p55
        %p126 = pneg %p79
        %p127 = pneg %p76
        %s128 = smul.u32 32, %s16
        %p129 = scmp.lt.s32.totalorder %s128, 63
        %s130 = scalar_select %p129, %s128, 63
        %s131 = smul.addr %s130, 8
        %s132 = scalar_lea.vmem %s0, %s131
        %s133 = smul.u32 32, %s16
        %p135 = scmp.eq.s32.totalorder %s16, 0
        // Predicated region
        $region29: #{clip_loss.1} parent=27 // pred_check
          %p136 = pneg %p135
        $region30: #{clip_loss.1} parent=27 // pred_check_branch
          %138 = sbr.rel (%p136) target = $region32
        $region31: #{clip_loss.1} parent=27 // pred_region
          %s139 = sld [smem:[#allocation9]]
          %p141 = scmp.lt.u32.totalorder 256, 8
          %p142 = pneg %p141
          // Predicated region
          $region33: #{clip_loss.1} parent=31 // pred_check
            _
          $region34: #{clip_loss.1} parent=31 // pred_check_branch
            %144 = sbr.rel (%p141) target = $region36
          $region35: #{clip_loss.1} parent=31 // pred_region
            %s160 = sand.u32 256, 7
            %p161 = scmp.eq.s32.totalorder %s160, 0
            // Predicated region
            $region48: #{clip_loss.1} parent=35 // pred_check
              %p162 = pneg %p161
            $region49: #{clip_loss.1} parent=35 // pred_check_branch
              %164 = sbr.rel (%p162) target = $region51
            $region50: #{clip_loss.1} parent=35 // pred_region
              loop: start=0, step=1, limit=1
              $region52: #{clip_loss.1} parent=50 // loop_pre_header
                _
              $region53: #{clip_loss.1} parent=50 // loop_header
                %s166 = sphi 0, %s170
                %p167 = scmp.ge.s32.totalorder %s166, 1
                %s171 = sphi %s1, %s1
                %s172 = sphi [#allocation3], [#allocation3]
              $region54: #{clip_loss.1} parent=50 // loop_header_branch
                %169 = sbr.rel (%p167) target = $region58
              $region55: #{clip_loss.1} parent=50 // loop_body
                %v173 = vld [vmem:[%s171] sm:$0xff]
                %174 = vst [vmem:[%s172] sm:$0xff] %v173
                %v175 = vld [vmem:[%s171 + $0x8] sm:$0xff]
                %176 = vst [vmem:[%s172 + $0x8] sm:$0xff] %v175
                %v177 = vld [vmem:[%s171 + $0x10] sm:$0xff]
                %178 = vst [vmem:[%s172 + $0x10] sm:$0xff] %v177
                %v179 = vld [vmem:[%s171 + $0x18] sm:$0xff]
                %180 = vst [vmem:[%s172 + $0x18] sm:$0xff] %v179
                %v181 = vld [vmem:[%s171 + $0x20] sm:$0xff]
                %182 = vst [vmem:[%s172 + $0x20] sm:$0xff] %v181
                %v183 = vld [vmem:[%s171 + $0x28] sm:$0xff]
                %184 = vst [vmem:[%s172 + $0x28] sm:$0xff] %v183
                %v185 = vld [vmem:[%s171 + $0x30] sm:$0xff]
                %186 = vst [vmem:[%s172 + $0x30] sm:$0xff] %v185
                %v187 = vld [vmem:[%s171 + $0x38] sm:$0xff]
                %188 = vst [vmem:[%s172 + $0x38] sm:$0xff] %v187
                %v189 = vld [vmem:[%s171 + $0x40] sm:$0xff]
                %190 = vst [vmem:[%s172 + $0x40] sm:$0xff] %v189
                %v191 = vld [vmem:[%s171 + $0x48] sm:$0xff]
                %192 = vst [vmem:[%s172 + $0x48] sm:$0xff] %v191
                %v193 = vld [vmem:[%s171 + $0x50] sm:$0xff]
                %194 = vst [vmem:[%s172 + $0x50] sm:$0xff] %v193
                %v195 = vld [vmem:[%s171 + $0x58] sm:$0xff]
                %196 = vst [vmem:[%s172 + $0x58] sm:$0xff] %v195
                %v197 = vld [vmem:[%s171 + $0x60] sm:$0xff]
                %198 = vst [vmem:[%s172 + $0x60] sm:$0xff] %v197
                %v199 = vld [vmem:[%s171 + $0x68] sm:$0xff]
                %200 = vst [vmem:[%s172 + $0x68] sm:$0xff] %v199
                %v201 = vld [vmem:[%s171 + $0x70] sm:$0xff]
                %202 = vst [vmem:[%s172 + $0x70] sm:$0xff] %v201
                %v203 = vld [vmem:[%s171 + $0x78] sm:$0xff]
                %204 = vst [vmem:[%s172 + $0x78] sm:$0xff] %v203
                %v205 = vld [vmem:[%s171 + $0x80] sm:$0xff]
                %206 = vst [vmem:[%s172 + $0x80] sm:$0xff] %v205
                %v207 = vld [vmem:[%s171 + $0x88] sm:$0xff]
                %208 = vst [vmem:[%s172 + $0x88] sm:$0xff] %v207
                %v209 = vld [vmem:[%s171 + $0x90] sm:$0xff]
                %210 = vst [vmem:[%s172 + $0x90] sm:$0xff] %v209
                %v211 = vld [vmem:[%s171 + $0x98] sm:$0xff]
                %212 = vst [vmem:[%s172 + $0x98] sm:$0xff] %v211
                %v213 = vld [vmem:[%s171 + $0xa0] sm:$0xff]
                %214 = vst [vmem:[%s172 + $0xa0] sm:$0xff] %v213
                %v215 = vld [vmem:[%s171 + $0xa8] sm:$0xff]
                %216 = vst [vmem:[%s172 + $0xa8] sm:$0xff] %v215
                %v217 = vld [vmem:[%s171 + $0xb0] sm:$0xff]
                %218 = vst [vmem:[%s172 + $0xb0] sm:$0xff] %v217
                %v219 = vld [vmem:[%s171 + $0xb8] sm:$0xff]
                %220 = vst [vmem:[%s172 + $0xb8] sm:$0xff] %v219
                %v221 = vld [vmem:[%s171 + $0xc0] sm:$0xff]
                %222 = vst [vmem:[%s172 + $0xc0] sm:$0xff] %v221
                %v223 = vld [vmem:[%s171 + $0xc8] sm:$0xff]
                %224 = vst [vmem:[%s172 + $0xc8] sm:$0xff] %v223
                %v225 = vld [vmem:[%s171 + $0xd0] sm:$0xff]
                %226 = vst [vmem:[%s172 + $0xd0] sm:$0xff] %v225
                %v227 = vld [vmem:[%s171 + $0xd8] sm:$0xff]
                %228 = vst [vmem:[%s172 + $0xd8] sm:$0xff] %v227
                %v229 = vld [vmem:[%s171 + $0xe0] sm:$0xff]
                %230 = vst [vmem:[%s172 + $0xe0] sm:$0xff] %v229
                %v231 = vld [vmem:[%s171 + $0xe8] sm:$0xff]
                %232 = vst [vmem:[%s172 + $0xe8] sm:$0xff] %v231
                %v233 = vld [vmem:[%s171 + $0xf0] sm:$0xff]
                %234 = vst [vmem:[%s172 + $0xf0] sm:$0xff] %v233
                %v235 = vld [vmem:[%s171 + $0xf8] sm:$0xff]
                %236 = vst [vmem:[%s172 + $0xf8] sm:$0xff] %v235
              $region56: #{clip_loss.1} parent=50 // loop_footer
                %s170 = sadd.s32 1, %s166
              $region57: #{clip_loss.1} parent=50 // loop_footer_branch
                %165 = sbr.rel target = $region53
              $region58: #{clip_loss.1} parent=50 // loop_exit
                _
            $region51: #{clip_loss.1} parent=35 // pred_fallthru
              _
            %p237 = pneg %p161
            // Predicated region
            $region59: #{clip_loss.1} parent=35 // pred_check
              _
            $region60: #{clip_loss.1} parent=35 // pred_check_branch
              %239 = sbr.rel (%p161) target = $region62
            $region61: #{clip_loss.1} parent=35 // pred_region
              %s240 = sand.u32 256, 7
            $region62: #{clip_loss.1} parent=35 // pred_fallthru
              _
          $region36: #{clip_loss.1} parent=31 // pred_fallthru
            _
          // Predicated region
          $region37: #{clip_loss.1} parent=31 // pred_check
            %p145 = pneg %p141
          $region38: #{clip_loss.1} parent=31 // pred_check_branch
            %147 = sbr.rel (%p145) target = $region40
          $region39: #{clip_loss.1} parent=31 // pred_region
            %s148 = sshll.u32 1, 256
            %s149 = ssub.s32 %s148, 1
            loop: start=0, step=1, limit=1
            $region41: #{clip_loss.1} parent=39 // loop_pre_header
              _
            $region42: #{clip_loss.1} parent=39 // loop_header
              %s151 = sphi 0, %s155
              %p152 = scmp.ge.s32.totalorder %s151, 1
              %s156 = sphi %s1, %s1
              %s157 = sphi [#allocation3], [#allocation3]
            $region43: #{clip_loss.1} parent=39 // loop_header_branch
              %154 = sbr.rel (%p152) target = $region47
            $region44: #{clip_loss.1} parent=39 // loop_body
              %v158 = vld [vmem:[%s156] sm:%s149]
              %159 = vst [vmem:[%s157] sm:%s149] %v158
            $region45: #{clip_loss.1} parent=39 // loop_footer
              %s155 = sadd.s32 1, %s151
            $region46: #{clip_loss.1} parent=39 // loop_footer_branch
              %150 = sbr.rel target = $region42
            $region47: #{clip_loss.1} parent=39 // loop_exit
              _
          $region40: #{clip_loss.1} parent=31 // pred_fallthru
            _
          // Predicated region
          $region63: #{clip_loss.1} parent=31 // pred_check
            _
          $region64: #{clip_loss.1} parent=31 // pred_check_branch
            %243 = sbr.rel (0) target = $region66
          $region65: #{clip_loss.1} parent=31 // pred_region
            %244 = vsyncadd [#allocation4], 4096
          $region66: #{clip_loss.1} parent=31 // pred_fallthru
            _
          %s245 = smul.u32 8, 16
          %s246 = smul.u32 %s245, 2
          %s247 = sshll.u32 %s246, 4
          %248 = dma.done [#allocation4], %s247
          %v249 = vld [vmem:[#allocation3] sm:$0xff]
          %v250 = vld [vmem:[#allocation3 + $0x8] sm:$0xff]
          %v251 = vld [vmem:[#allocation3 + $0x10] sm:$0xff]
          %v252 = vld [vmem:[#allocation3 + $0x18] sm:$0xff]
          %v253 = vld [vmem:[#allocation3 + $0x20] sm:$0xff]
          %v254 = vld [vmem:[#allocation3 + $0x28] sm:$0xff]
          %v255 = vld [vmem:[#allocation3 + $0x30] sm:$0xff]
          %v256 = vld [vmem:[#allocation3 + $0x38] sm:$0xff]
          %v257 = vld [vmem:[#allocation3 + $0x40] sm:$0xff]
          %v258 = vld [vmem:[#allocation3 + $0x48] sm:$0xff]
          %v259 = vld [vmem:[#allocation3 + $0x50] sm:$0xff]
          %v260 = vld [vmem:[#allocation3 + $0x58] sm:$0xff]
          %v261 = vld [vmem:[#allocation3 + $0x60] sm:$0xff]
          %v262 = vld [vmem:[#allocation3 + $0x68] sm:$0xff]
          %v263 = vld [vmem:[#allocation3 + $0x70] sm:$0xff]
          %v264 = vld [vmem:[#allocation3 + $0x78] sm:$0xff]
          %v265 = vld [vmem:[#allocation3 + $0x80] sm:$0xff]
          %v266 = vld [vmem:[#allocation3 + $0x88] sm:$0xff]
          %v267 = vld [vmem:[#allocation3 + $0x90] sm:$0xff]
          %v268 = vld [vmem:[#allocation3 + $0x98] sm:$0xff]
          %v269 = vld [vmem:[#allocation3 + $0xa0] sm:$0xff]
          %v270 = vld [vmem:[#allocation3 + $0xa8] sm:$0xff]
          %v271 = vld [vmem:[#allocation3 + $0xb0] sm:$0xff]
          %v272 = vld [vmem:[#allocation3 + $0xb8] sm:$0xff]
          %v273 = vld [vmem:[#allocation3 + $0xc0] sm:$0xff]
          %v274 = vld [vmem:[#allocation3 + $0xc8] sm:$0xff]
          %v275 = vld [vmem:[#allocation3 + $0xd0] sm:$0xff]
          %v276 = vld [vmem:[#allocation3 + $0xd8] sm:$0xff]
          %v277 = vld [vmem:[#allocation3 + $0xe0] sm:$0xff]
          %v278 = vld [vmem:[#allocation3 + $0xe8] sm:$0xff]
          %v279 = vld [vmem:[#allocation3 + $0xf0] sm:$0xff]
          %v280 = vld [vmem:[#allocation3 + $0xf8] sm:$0xff]
          %v281 = vmul.f32 %v249, %v249
          %v282 = vmul.f32 %v250, %v250
          %v283 = vmul.f32 %v251, %v251
          %v284 = vmul.f32 %v252, %v252
          %v285 = vmul.f32 %v253, %v253
          %v286 = vmul.f32 %v254, %v254
          %v287 = vmul.f32 %v255, %v255
          %v288 = vmul.f32 %v256, %v256
          %v289 = vmul.f32 %v257, %v257
          %v290 = vmul.f32 %v258, %v258
          %v291 = vmul.f32 %v259, %v259
          %v292 = vmul.f32 %v260, %v260
          %v293 = vmul.f32 %v261, %v261
          %v294 = vmul.f32 %v262, %v262
          %v295 = vmul.f32 %v263, %v263
          %v296 = vmul.f32 %v264, %v264
          %v297 = vmul.f32 %v265, %v265
          %v298 = vmul.f32 %v266, %v266
          %v299 = vmul.f32 %v267, %v267
          %v300 = vmul.f32 %v268, %v268
          %v301 = vmul.f32 %v269, %v269
          %v302 = vmul.f32 %v270, %v270
          %v303 = vmul.f32 %v271, %v271
          %v304 = vmul.f32 %v272, %v272
          %v305 = vmul.f32 %v273, %v273
          %v306 = vmul.f32 %v274, %v274
          %v307 = vmul.f32 %v275, %v275
          %v308 = vmul.f32 %v276, %v276
          %v309 = vmul.f32 %v277, %v277
          %v310 = vmul.f32 %v278, %v278
          %v311 = vmul.f32 %v279, %v279
          %v312 = vmul.f32 %v280, %v280
          %v313 = vadd.f32 %v281, %v283
          %v314 = vadd.f32 %v313, %v285
          %v315 = vadd.f32 %v314, %v287
          %v316 = vadd.f32 %v315, %v289
          %v317 = vadd.f32 %v316, %v291
          %v318 = vadd.f32 %v317, %v293
          %v319 = vadd.f32 %v318, %v295
          %v320 = vadd.f32 %v319, %v297
          %v321 = vadd.f32 %v320, %v299
          %v322 = vadd.f32 %v321, %v301
          %v323 = vadd.f32 %v322, %v303
          %v324 = vadd.f32 %v323, %v305
          %v325 = vadd.f32 %v324, %v307
          %v326 = vadd.f32 %v325, %v309
          %v327 = vadd.f32 %v326, %v311
          %v328 = vrot.slane %v327, 4
          %v329 = vadd.f32 %v327, %v328
          %v330 = vrot.slane %v329, 2
          %v331 = vadd.f32 %v329, %v330
          %v332 = vrot.slane %v331, 1
          %v333 = vadd.f32 %v331, %v332
          %v334 = vadd.f32 %v282, %v284
          %v335 = vadd.f32 %v334, %v286
          %v336 = vadd.f32 %v335, %v288
          %v337 = vadd.f32 %v336, %v290
          %v338 = vadd.f32 %v337, %v292
          %v339 = vadd.f32 %v338, %v294
          %v340 = vadd.f32 %v339, %v296
          %v341 = vadd.f32 %v340, %v298
          %v342 = vadd.f32 %v341, %v300
          %v343 = vadd.f32 %v342, %v302
          %v344 = vadd.f32 %v343, %v304
          %v345 = vadd.f32 %v344, %v306
          %v346 = vadd.f32 %v345, %v308
          %v347 = vadd.f32 %v346, %v310
          %v348 = vadd.f32 %v347, %v312
          %v349 = vrot.slane %v348, 4
          %v350 = vadd.f32 %v348, %v349
          %v351 = vrot.slane %v350, 2
          %v352 = vadd.f32 %v350, %v351
          %v353 = vrot.slane %v352, 1
          %v354 = vadd.f32 %v352, %v353
          %v355 = vmax.f32 %v333, 1e-24
          %v356 = vmax.f32 %v354, 1e-24
          %v357 = vrsqrt.pop %v355
          %v358 = vrsqrt.pop %v356
          %v359 = vstv %s139
          %v360 = vmul.f32 %v357, %v359
          %v361 = vmul.f32 %v358, %v359
          %v362 = vmul.f32 %v249, %v360
          %v363 = vmul.f32 %v250, %v361
          %v364 = vmul.f32 %v251, %v360
          %v365 = vmul.f32 %v252, %v361
          %v366 = vmul.f32 %v253, %v360
          %v367 = vmul.f32 %v254, %v361
          %v368 = vmul.f32 %v255, %v360
          %v369 = vmul.f32 %v256, %v361
          %v370 = vmul.f32 %v257, %v360
          %v371 = vmul.f32 %v258, %v361
          %v372 = vmul.f32 %v259, %v360
          %v373 = vmul.f32 %v260, %v361
          %v374 = vmul.f32 %v261, %v360
          %v375 = vmul.f32 %v262, %v361
          %v376 = vmul.f32 %v263, %v360
          %v377 = vmul.f32 %v264, %v361
          %v378 = vmul.f32 %v265, %v360
          %v379 = vmul.f32 %v266, %v361
          %v380 = vmul.f32 %v267, %v360
          %v381 = vmul.f32 %v268, %v361
          %v382 = vmul.f32 %v269, %v360
          %v383 = vmul.f32 %v270, %v361
          %v384 = vmul.f32 %v271, %v360
          %v385 = vmul.f32 %v272, %v361
          %v386 = vmul.f32 %v273, %v360
          %v387 = vmul.f32 %v274, %v361
          %v388 = vmul.f32 %v275, %v360
          %v389 = vmul.f32 %v276, %v361
          %v390 = vmul.f32 %v277, %v360
          %v391 = vmul.f32 %v278, %v361
          %v392 = vmul.f32 %v279, %v360
          %v393 = vmul.f32 %v280, %v361
          %v394 = vpack.c.bf16 %v364, %v362
          %v395 = vpack.c.bf16 %v365, %v363
          %v396 = vpack.c.bf16 %v368, %v366
          %v397 = vpack.c.bf16 %v369, %v367
          %v398 = vpack.c.bf16 %v372, %v370
          %v399 = vpack.c.bf16 %v373, %v371
          %v400 = vpack.c.bf16 %v376, %v374
          %v401 = vpack.c.bf16 %v377, %v375
          %v402 = vpack.c.bf16 %v380, %v378
          %v403 = vpack.c.bf16 %v381, %v379
          %v404 = vpack.c.bf16 %v384, %v382
          %v405 = vpack.c.bf16 %v385, %v383
          %v406 = vpack.c.bf16 %v388, %v386
          %v407 = vpack.c.bf16 %v389, %v387
          %v408 = vpack.c.bf16 %v392, %v390
          %v409 = vpack.c.bf16 %v393, %v391
          %v426 = vunpack.c.l.b16 %v394
          %v427 = vunpack.c.l.b16 %v395
          %v428 = vunpack.c.h.b16 %v394
          %v429 = vunpack.c.h.b16 %v395
          %v430 = vunpack.c.l.b16 %v396
          %v431 = vunpack.c.l.b16 %v397
          %v432 = vunpack.c.h.b16 %v396
          %v433 = vunpack.c.h.b16 %v397
          %v434 = vunpack.c.l.b16 %v398
          %v435 = vunpack.c.l.b16 %v399
          %v436 = vunpack.c.h.b16 %v398
          %v437 = vunpack.c.h.b16 %v399
          %v438 = vunpack.c.l.b16 %v400
          %v439 = vunpack.c.l.b16 %v401
          %v440 = vunpack.c.h.b16 %v400
          %v441 = vunpack.c.h.b16 %v401
          %v442 = vunpack.c.l.b16 %v402
          %v443 = vunpack.c.l.b16 %v403
          %v444 = vunpack.c.h.b16 %v402
          %v445 = vunpack.c.h.b16 %v403
          %v446 = vunpack.c.l.b16 %v404
          %v447 = vunpack.c.l.b16 %v405
          %v448 = vunpack.c.h.b16 %v404
          %v449 = vunpack.c.h.b16 %v405
          %v450 = vunpack.c.l.b16 %v406
          %v451 = vunpack.c.l.b16 %v407
          %v452 = vunpack.c.h.b16 %v406
          %v453 = vunpack.c.h.b16 %v407
          %v454 = vunpack.c.l.b16 %v408
          %v455 = vunpack.c.l.b16 %v409
          %v456 = vunpack.c.h.b16 %v408
          %v457 = vunpack.c.h.b16 %v409
          %v458 = vpack.c.b16 %v427, %v426
          %v459 = vpack.c.b16 %v429, %v428
          %v460 = vpack.c.b16 %v431, %v430
          %v461 = vpack.c.b16 %v433, %v432
          %v462 = vpack.c.b16 %v435, %v434
          %v463 = vpack.c.b16 %v437, %v436
          %v464 = vpack.c.b16 %v439, %v438
          %v465 = vpack.c.b16 %v441, %v440
          %v466 = vpack.c.b16 %v443, %v442
          %v467 = vpack.c.b16 %v445, %v444
          %v468 = vpack.c.b16 %v447, %v446
          %v469 = vpack.c.b16 %v449, %v448
          %v470 = vpack.c.b16 %v451, %v450
          %v471 = vpack.c.b16 %v453, %v452
          %v472 = vpack.c.b16 %v455, %v454
          %v473 = vpack.c.b16 %v457, %v456
          %490 = vst [vmem:[#allocation2] sm:$0xff] %v458
          %491 = vst [vmem:[#allocation2 + $0x10] sm:$0xff] %v459
          %492 = vst [vmem:[#allocation2 + $0x20] sm:$0xff] %v460
          %493 = vst [vmem:[#allocation2 + $0x30] sm:$0xff] %v461
          %494 = vst [vmem:[#allocation2 + $0x40] sm:$0xff] %v462
          %495 = vst [vmem:[#allocation2 + $0x50] sm:$0xff] %v463
          %496 = vst [vmem:[#allocation2 + $0x60] sm:$0xff] %v464
          %497 = vst [vmem:[#allocation2 + $0x70] sm:$0xff] %v465
          %498 = vst [vmem:[#allocation2 + $0x80] sm:$0xff] %v466
          %499 = vst [vmem:[#allocation2 + $0x90] sm:$0xff] %v467
          %500 = vst [vmem:[#allocation2 + $0xa0] sm:$0xff] %v468
          %501 = vst [vmem:[#allocation2 + $0xb0] sm:$0xff] %v469
          %502 = vst [vmem:[#allocation2 + $0xc0] sm:$0xff] %v470
          %503 = vst [vmem:[#allocation2 + $0xd0] sm:$0xff] %v471
          %504 = vst [vmem:[#allocation2 + $0xe0] sm:$0xff] %v472
          %505 = vst [vmem:[#allocation2 + $0xf0] sm:$0xff] %v473
          %s506 = scalar_lea.vmem %s1, 256
          %p508 = scmp.lt.u32.totalorder 256, 8
          %p509 = pneg %p508
          // Predicated region
          $region67: #{clip_loss.1} parent=31 // pred_check
            _
          $region68: #{clip_loss.1} parent=31 // pred_check_branch
            %511 = sbr.rel (%p508) target = $region70
          $region69: #{clip_loss.1} parent=31 // pred_region
            %s527 = sand.u32 256, 7
            %p528 = scmp.eq.s32.totalorder %s527, 0
            // Predicated region
            $region82: #{clip_loss.1} parent=69 // pred_check
              %p529 = pneg %p528
            $region83: #{clip_loss.1} parent=69 // pred_check_branch
              %531 = sbr.rel (%p529) target = $region85
            $region84: #{clip_loss.1} parent=69 // pred_region
              loop: start=0, step=1, limit=1
              $region86: #{clip_loss.1} parent=84 // loop_pre_header
                _
              $region87: #{clip_loss.1} parent=84 // loop_header
                %s533 = sphi 0, %s537
                %p534 = scmp.ge.s32.totalorder %s533, 1
                %s538 = sphi %s506, %s506
                %s539 = sphi [#allocation3], [#allocation3]
              $region88: #{clip_loss.1} parent=84 // loop_header_branch
                %536 = sbr.rel (%p534) target = $region92
              $region89: #{clip_loss.1} parent=84 // loop_body
                %v540 = vld [vmem:[%s538] sm:$0xff]
                %541 = vst [vmem:[%s539] sm:$0xff] %v540
                %v542 = vld [vmem:[%s538 + $0x8] sm:$0xff]
                %543 = vst [vmem:[%s539 + $0x8] sm:$0xff] %v542
                %v544 = vld [vmem:[%s538 + $0x10] sm:$0xff]
                %545 = vst [vmem:[%s539 + $0x10] sm:$0xff] %v544
                %v546 = vld [vmem:[%s538 + $0x18] sm:$0xff]
                %547 = vst [vmem:[%s539 + $0x18] sm:$0xff] %v546
                %v548 = vld [vmem:[%s538 + $0x20] sm:$0xff]
                %549 = vst [vmem:[%s539 + $0x20] sm:$0xff] %v548
                %v550 = vld [vmem:[%s538 + $0x28] sm:$0xff]
                %551 = vst [vmem:[%s539 + $0x28] sm:$0xff] %v550
                %v552 = vld [vmem:[%s538 + $0x30] sm:$0xff]
                %553 = vst [vmem:[%s539 + $0x30] sm:$0xff] %v552
                %v554 = vld [vmem:[%s538 + $0x38] sm:$0xff]
                %555 = vst [vmem:[%s539 + $0x38] sm:$0xff] %v554
                %v556 = vld [vmem:[%s538 + $0x40] sm:$0xff]
                %557 = vst [vmem:[%s539 + $0x40] sm:$0xff] %v556
                %v558 = vld [vmem:[%s538 + $0x48] sm:$0xff]
                %559 = vst [vmem:[%s539 + $0x48] sm:$0xff] %v558
                %v560 = vld [vmem:[%s538 + $0x50] sm:$0xff]
                %561 = vst [vmem:[%s539 + $0x50] sm:$0xff] %v560
                %v562 = vld [vmem:[%s538 + $0x58] sm:$0xff]
                %563 = vst [vmem:[%s539 + $0x58] sm:$0xff] %v562
                %v564 = vld [vmem:[%s538 + $0x60] sm:$0xff]
                %565 = vst [vmem:[%s539 + $0x60] sm:$0xff] %v564
                %v566 = vld [vmem:[%s538 + $0x68] sm:$0xff]
                %567 = vst [vmem:[%s539 + $0x68] sm:$0xff] %v566
                %v568 = vld [vmem:[%s538 + $0x70] sm:$0xff]
                %569 = vst [vmem:[%s539 + $0x70] sm:$0xff] %v568
                %v570 = vld [vmem:[%s538 + $0x78] sm:$0xff]
                %571 = vst [vmem:[%s539 + $0x78] sm:$0xff] %v570
                %v572 = vld [vmem:[%s538 + $0x80] sm:$0xff]
                %573 = vst [vmem:[%s539 + $0x80] sm:$0xff] %v572
                %v574 = vld [vmem:[%s538 + $0x88] sm:$0xff]
                %575 = vst [vmem:[%s539 + $0x88] sm:$0xff] %v574
                %v576 = vld [vmem:[%s538 + $0x90] sm:$0xff]
                %577 = vst [vmem:[%s539 + $0x90] sm:$0xff] %v576
                %v578 = vld [vmem:[%s538 + $0x98] sm:$0xff]
                %579 = vst [vmem:[%s539 + $0x98] sm:$0xff] %v578
                %v580 = vld [vmem:[%s538 + $0xa0] sm:$0xff]
                %581 = vst [vmem:[%s539 + $0xa0] sm:$0xff] %v580
                %v582 = vld [vmem:[%s538 + $0xa8] sm:$0xff]
                %583 = vst [vmem:[%s539 + $0xa8] sm:$0xff] %v582
                %v584 = vld [vmem:[%s538 + $0xb0] sm:$0xff]
                %585 = vst [vmem:[%s539 + $0xb0] sm:$0xff] %v584
                %v586 = vld [vmem:[%s538 + $0xb8] sm:$0xff]
                %587 = vst [vmem:[%s539 + $0xb8] sm:$0xff] %v586
                %v588 = vld [vmem:[%s538 + $0xc0] sm:$0xff]
                %589 = vst [vmem:[%s539 + $0xc0] sm:$0xff] %v588
                %v590 = vld [vmem:[%s538 + $0xc8] sm:$0xff]
                %591 = vst [vmem:[%s539 + $0xc8] sm:$0xff] %v590
                %v592 = vld [vmem:[%s538 + $0xd0] sm:$0xff]
                %593 = vst [vmem:[%s539 + $0xd0] sm:$0xff] %v592
                %v594 = vld [vmem:[%s538 + $0xd8] sm:$0xff]
                %595 = vst [vmem:[%s539 + $0xd8] sm:$0xff] %v594
                %v596 = vld [vmem:[%s538 + $0xe0] sm:$0xff]
                %597 = vst [vmem:[%s539 + $0xe0] sm:$0xff] %v596
                %v598 = vld [vmem:[%s538 + $0xe8] sm:$0xff]
                %599 = vst [vmem:[%s539 + $0xe8] sm:$0xff] %v598
                %v600 = vld [vmem:[%s538 + $0xf0] sm:$0xff]
                %601 = vst [vmem:[%s539 + $0xf0] sm:$0xff] %v600
                %v602 = vld [vmem:[%s538 + $0xf8] sm:$0xff]
                %603 = vst [vmem:[%s539 + $0xf8] sm:$0xff] %v602
              $region90: #{clip_loss.1} parent=84 // loop_footer
                %s537 = sadd.s32 1, %s533
              $region91: #{clip_loss.1} parent=84 // loop_footer_branch
                %532 = sbr.rel target = $region87
              $region92: #{clip_loss.1} parent=84 // loop_exit
                _
            $region85: #{clip_loss.1} parent=69 // pred_fallthru
              _
            %p604 = pneg %p528
            // Predicated region
            $region93: #{clip_loss.1} parent=69 // pred_check
              _
            $region94: #{clip_loss.1} parent=69 // pred_check_branch
              %606 = sbr.rel (%p528) target = $region96
            $region95: #{clip_loss.1} parent=69 // pred_region
              %s607 = sand.u32 256, 7
            $region96: #{clip_loss.1} parent=69 // pred_fallthru
              _
          $region70: #{clip_loss.1} parent=31 // pred_fallthru
            _
          // Predicated region
          $region71: #{clip_loss.1} parent=31 // pred_check
            %p512 = pneg %p508
          $region72: #{clip_loss.1} parent=31 // pred_check_branch
            %514 = sbr.rel (%p512) target = $region74
          $region73: #{clip_loss.1} parent=31 // pred_region
            %s515 = sshll.u32 1, 256
            %s516 = ssub.s32 %s515, 1
            loop: start=0, step=1, limit=1
            $region75: #{clip_loss.1} parent=73 // loop_pre_header
              _
            $region76: #{clip_loss.1} parent=73 // loop_header
              %s518 = sphi 0, %s522
              %p519 = scmp.ge.s32.totalorder %s518, 1
              %s523 = sphi %s506, %s506
              %s524 = sphi [#allocation3], [#allocation3]
            $region77: #{clip_loss.1} parent=73 // loop_header_branch
              %521 = sbr.rel (%p519) target = $region81
            $region78: #{clip_loss.1} parent=73 // loop_body
              %v525 = vld [vmem:[%s523] sm:%s516]
              %526 = vst [vmem:[%s524] sm:%s516] %v525
            $region79: #{clip_loss.1} parent=73 // loop_footer
              %s522 = sadd.s32 1, %s518
            $region80: #{clip_loss.1} parent=73 // loop_footer_branch
              %517 = sbr.rel target = $region76
            $region81: #{clip_loss.1} parent=73 // loop_exit
              _
          $region74: #{clip_loss.1} parent=31 // pred_fallthru
            _
          // Predicated region
          $region97: #{clip_loss.1} parent=31 // pred_check
            _
          $region98: #{clip_loss.1} parent=31 // pred_check_branch
            %610 = sbr.rel (0) target = $region100
          $region99: #{clip_loss.1} parent=31 // pred_region
            %611 = vsyncadd [#allocation4], 4096
          $region100: #{clip_loss.1} parent=31 // pred_fallthru
            _
          %s612 = sshll.u32 %s246, 4
          %613 = dma.done [#allocation4], %s612
          %v614 = vld [vmem:[#allocation3] sm:$0xff]
          %v615 = vld [vmem:[#allocation3 + $0x8] sm:$0xff]
          %v616 = vld [vmem:[#allocation3 + $0x10] sm:$0xff]
          %v617 = vld [vmem:[#allocation3 + $0x18] sm:$0xff]
          %v618 = vld [vmem:[#allocation3 + $0x20] sm:$0xff]
          %v619 = vld [vmem:[#allocation3 + $0x28] sm:$0xff]
          %v620 = vld [vmem:[#allocation3 + $0x30] sm:$0xff]
          %v621 = vld [vmem:[#allocation3 + $0x38] sm:$0xff]
          %v622 = vld [vmem:[#allocation3 + $0x40] sm:$0xff]
          %v623 = vld [vmem:[#allocation3 + $0x48] sm:$0xff]
          %v624 = vld [vmem:[#allocation3 + $0x50] sm:$0xff]
          %v625 = vld [vmem:[#allocation3 + $0x58] sm:$0xff]
          %v626 = vld [vmem:[#allocation3 + $0x60] sm:$0xff]
          %v627 = vld [vmem:[#allocation3 + $0x68] sm:$0xff]
          %v628 = vld [vmem:[#allocation3 + $0x70] sm:$0xff]
          %v629 = vld [vmem:[#allocation3 + $0x78] sm:$0xff]
          %v630 = vld [vmem:[#allocation3 + $0x80] sm:$0xff]
          %v631 = vld [vmem:[#allocation3 + $0x88] sm:$0xff]
          %v632 = vld [vmem:[#allocation3 + $0x90] sm:$0xff]
          %v633 = vld [vmem:[#allocation3 + $0x98] sm:$0xff]
          %v634 = vld [vmem:[#allocation3 + $0xa0] sm:$0xff]
          %v635 = vld [vmem:[#allocation3 + $0xa8] sm:$0xff]
          %v636 = vld [vmem:[#allocation3 + $0xb0] sm:$0xff]
          %v637 = vld [vmem:[#allocation3 + $0xb8] sm:$0xff]
          %v638 = vld [vmem:[#allocation3 + $0xc0] sm:$0xff]
          %v639 = vld [vmem:[#allocation3 + $0xc8] sm:$0xff]
          %v640 = vld [vmem:[#allocation3 + $0xd0] sm:$0xff]
          %v641 = vld [vmem:[#allocation3 + $0xd8] sm:$0xff]
          %v642 = vld [vmem:[#allocation3 + $0xe0] sm:$0xff]
          %v643 = vld [vmem:[#allocation3 + $0xe8] sm:$0xff]
          %v644 = vld [vmem:[#allocation3 + $0xf0] sm:$0xff]
          %v645 = vld [vmem:[#allocation3 + $0xf8] sm:$0xff]
          %v646 = vmul.f32 %v614, %v614
          %v647 = vmul.f32 %v615, %v615
          %v648 = vmul.f32 %v616, %v616
          %v649 = vmul.f32 %v617, %v617
          %v650 = vmul.f32 %v618, %v618
          %v651 = vmul.f32 %v619, %v619
          %v652 = vmul.f32 %v620, %v620
          %v653 = vmul.f32 %v621, %v621
          %v654 = vmul.f32 %v622, %v622
          %v655 = vmul.f32 %v623, %v623
          %v656 = vmul.f32 %v624, %v624
          %v657 = vmul.f32 %v625, %v625
          %v658 = vmul.f32 %v626, %v626
          %v659 = vmul.f32 %v627, %v627
          %v660 = vmul.f32 %v628, %v628
          %v661 = vmul.f32 %v629, %v629
          %v662 = vmul.f32 %v630, %v630
          %v663 = vmul.f32 %v631, %v631
          %v664 = vmul.f32 %v632, %v632
          %v665 = vmul.f32 %v633, %v633
          %v666 = vmul.f32 %v634, %v634
          %v667 = vmul.f32 %v635, %v635
          %v668 = vmul.f32 %v636, %v636
          %v669 = vmul.f32 %v637, %v637
          %v670 = vmul.f32 %v638, %v638
          %v671 = vmul.f32 %v639, %v639
          %v672 = vmul.f32 %v640, %v640
          %v673 = vmul.f32 %v641, %v641
          %v674 = vmul.f32 %v642, %v642
          %v675 = vmul.f32 %v643, %v643
          %v676 = vmul.f32 %v644, %v644
          %v677 = vmul.f32 %v645, %v645
          %v678 = vadd.f32 %v646, %v648
          %v679 = vadd.f32 %v678, %v650
          %v680 = vadd.f32 %v679, %v652
          %v681 = vadd.f32 %v680, %v654
          %v682 = vadd.f32 %v681, %v656
          %v683 = vadd.f32 %v682, %v658
          %v684 = vadd.f32 %v683, %v660
          %v685 = vadd.f32 %v684, %v662
          %v686 = vadd.f32 %v685, %v664
          %v687 = vadd.f32 %v686, %v666
          %v688 = vadd.f32 %v687, %v668
          %v689 = vadd.f32 %v688, %v670
          %v690 = vadd.f32 %v689, %v672
          %v691 = vadd.f32 %v690, %v674
          %v692 = vadd.f32 %v691, %v676
          %v693 = vrot.slane %v692, 4
          %v694 = vadd.f32 %v692, %v693
          %v695 = vrot.slane %v694, 2
          %v696 = vadd.f32 %v694, %v695
          %v697 = vrot.slane %v696, 1
          %v698 = vadd.f32 %v696, %v697
          %v699 = vadd.f32 %v647, %v649
          %v700 = vadd.f32 %v699, %v651
          %v701 = vadd.f32 %v700, %v653
          %v702 = vadd.f32 %v701, %v655
          %v703 = vadd.f32 %v702, %v657
          %v704 = vadd.f32 %v703, %v659
          %v705 = vadd.f32 %v704, %v661
          %v706 = vadd.f32 %v705, %v663
          %v707 = vadd.f32 %v706, %v665
          %v708 = vadd.f32 %v707, %v667
          %v709 = vadd.f32 %v708, %v669
          %v710 = vadd.f32 %v709, %v671
          %v711 = vadd.f32 %v710, %v673
          %v712 = vadd.f32 %v711, %v675
          %v713 = vadd.f32 %v712, %v677
          %v714 = vrot.slane %v713, 4
          %v715 = vadd.f32 %v713, %v714
          %v716 = vrot.slane %v715, 2
          %v717 = vadd.f32 %v715, %v716
          %v718 = vrot.slane %v717, 1
          %v719 = vadd.f32 %v717, %v718
          %v720 = vmax.f32 %v698, 1e-24
          %v721 = vmax.f32 %v719, 1e-24
          %v722 = vrsqrt.pop %v720
          %v723 = vrsqrt.pop %v721
          %v724 = vmul.f32 %v722, %v359
          %v725 = vmul.f32 %v723, %v359
          %v726 = vmul.f32 %v614, %v724
          %v727 = vmul.f32 %v615, %v725
          %v728 = vmul.f32 %v616, %v724
          %v729 = vmul.f32 %v617, %v725
          %v730 = vmul.f32 %v618, %v724
          %v731 = vmul.f32 %v619, %v725
          %v732 = vmul.f32 %v620, %v724
          %v733 = vmul.f32 %v621, %v725
          %v734 = vmul.f32 %v622, %v724
          %v735 = vmul.f32 %v623, %v725
          %v736 = vmul.f32 %v624, %v724
          %v737 = vmul.f32 %v625, %v725
          %v738 = vmul.f32 %v626, %v724
          %v739 = vmul.f32 %v627, %v725
          %v740 = vmul.f32 %v628, %v724
          %v741 = vmul.f32 %v629, %v725
          %v742 = vmul.f32 %v630, %v724
          %v743 = vmul.f32 %v631, %v725
          %v744 = vmul.f32 %v632, %v724
          %v745 = vmul.f32 %v633, %v725
          %v746 = vmul.f32 %v634, %v724
          %v747 = vmul.f32 %v635, %v725
          %v748 = vmul.f32 %v636, %v724
          %v749 = vmul.f32 %v637, %v725
          %v750 = vmul.f32 %v638, %v724
          %v751 = vmul.f32 %v639, %v725
          %v752 = vmul.f32 %v640, %v724
          %v753 = vmul.f32 %v641, %v725
          %v754 = vmul.f32 %v642, %v724
          %v755 = vmul.f32 %v643, %v725
          %v756 = vmul.f32 %v644, %v724
          %v757 = vmul.f32 %v645, %v725
          %v758 = vpack.c.bf16 %v728, %v726
          %v759 = vpack.c.bf16 %v729, %v727
          %v760 = vpack.c.bf16 %v732, %v730
          %v761 = vpack.c.bf16 %v733, %v731
          %v762 = vpack.c.bf16 %v736, %v734
          %v763 = vpack.c.bf16 %v737, %v735
          %v764 = vpack.c.bf16 %v740, %v738
          %v765 = vpack.c.bf16 %v741, %v739
          %v766 = vpack.c.bf16 %v744, %v742
          %v767 = vpack.c.bf16 %v745, %v743
          %v768 = vpack.c.bf16 %v748, %v746
          %v769 = vpack.c.bf16 %v749, %v747
          %v770 = vpack.c.bf16 %v752, %v750
          %v771 = vpack.c.bf16 %v753, %v751
          %v772 = vpack.c.bf16 %v756, %v754
          %v773 = vpack.c.bf16 %v757, %v755
          %v790 = vunpack.c.l.b16 %v758
          %v791 = vunpack.c.l.b16 %v759
          %v792 = vunpack.c.h.b16 %v758
          %v793 = vunpack.c.h.b16 %v759
          %v794 = vunpack.c.l.b16 %v760
          %v795 = vunpack.c.l.b16 %v761
          %v796 = vunpack.c.h.b16 %v760
          %v797 = vunpack.c.h.b16 %v761
          %v798 = vunpack.c.l.b16 %v762
          %v799 = vunpack.c.l.b16 %v763
          %v800 = vunpack.c.h.b16 %v762
          %v801 = vunpack.c.h.b16 %v763
          %v802 = vunpack.c.l.b16 %v764
          %v803 = vunpack.c.l.b16 %v765
          %v804 = vunpack.c.h.b16 %v764
          %v805 = vunpack.c.h.b16 %v765
          %v806 = vunpack.c.l.b16 %v766
          %v807 = vunpack.c.l.b16 %v767
          %v808 = vunpack.c.h.b16 %v766
          %v809 = vunpack.c.h.b16 %v767
          %v810 = vunpack.c.l.b16 %v768
          %v811 = vunpack.c.l.b16 %v769
          %v812 = vunpack.c.h.b16 %v768
          %v813 = vunpack.c.h.b16 %v769
          %v814 = vunpack.c.l.b16 %v770
          %v815 = vunpack.c.l.b16 %v771
          %v816 = vunpack.c.h.b16 %v770
          %v817 = vunpack.c.h.b16 %v771
          %v818 = vunpack.c.l.b16 %v772
          %v819 = vunpack.c.l.b16 %v773
          %v820 = vunpack.c.h.b16 %v772
          %v821 = vunpack.c.h.b16 %v773
          %v822 = vpack.c.b16 %v791, %v790
          %v823 = vpack.c.b16 %v793, %v792
          %v824 = vpack.c.b16 %v795, %v794
          %v825 = vpack.c.b16 %v797, %v796
          %v826 = vpack.c.b16 %v799, %v798
          %v827 = vpack.c.b16 %v801, %v800
          %v828 = vpack.c.b16 %v803, %v802
          %v829 = vpack.c.b16 %v805, %v804
          %v830 = vpack.c.b16 %v807, %v806
          %v831 = vpack.c.b16 %v809, %v808
          %v832 = vpack.c.b16 %v811, %v810
          %v833 = vpack.c.b16 %v813, %v812
          %v834 = vpack.c.b16 %v815, %v814
          %v835 = vpack.c.b16 %v817, %v816
          %v836 = vpack.c.b16 %v819, %v818
          %v837 = vpack.c.b16 %v821, %v820
          %854 = vst [vmem:[#allocation2 + $0x8] sm:$0xff] %v822
          %855 = vst [vmem:[#allocation2 + $0x18] sm:$0xff] %v823
          %856 = vst [vmem:[#allocation2 + $0x28] sm:$0xff] %v824
          %857 = vst [vmem:[#allocation2 + $0x38] sm:$0xff] %v825
          %858 = vst [vmem:[#allocation2 + $0x48] sm:$0xff] %v826
          %859 = vst [vmem:[#allocation2 + $0x58] sm:$0xff] %v827
          %860 = vst [vmem:[#allocation2 + $0x68] sm:$0xff] %v828
          %861 = vst [vmem:[#allocation2 + $0x78] sm:$0xff] %v829
          %862 = vst [vmem:[#allocation2 + $0x88] sm:$0xff] %v830
          %863 = vst [vmem:[#allocation2 + $0x98] sm:$0xff] %v831
          %864 = vst [vmem:[#allocation2 + $0xa8] sm:$0xff] %v832
          %865 = vst [vmem:[#allocation2 + $0xb8] sm:$0xff] %v833
          %866 = vst [vmem:[#allocation2 + $0xc8] sm:$0xff] %v834
          %867 = vst [vmem:[#allocation2 + $0xd8] sm:$0xff] %v835
          %868 = vst [vmem:[#allocation2 + $0xe8] sm:$0xff] %v836
          %869 = vst [vmem:[#allocation2 + $0xf8] sm:$0xff] %v837
          %v870 = vlaneseq
          %vm871 = vcmp.ge.s32.totalorder %v870, 0
          %vm872 = vcmp.lt.s32.totalorder %v870, 512
          %vm873 = vmand %vm871, %vm872
          %874 = vst.msk [vmem:[#allocation5] sm:$0xf] %vm873, -1e+30
          %875 = vst.msk [vmem:[#allocation6] sm:$0xf] %vm873, 0.0
          %vm876 = vcmask 0
          %877 = vst.msk [vmem:[#allocation7] sm:$0x1] %vm876, 0.0
          %878 = vst.msk [vmem:[#allocation8] sm:$0x1] %vm876, 0.0
        $region32: #{clip_loss.1} parent=27 // pred_fallthru
          _
        %v879 = vld [vmem:[%s132] sm:$0xff]
        %v880 = vld [vmem:[%s132 + $0x8] sm:$0xff]
        %v881 = vld [vmem:[%s132 + $0x10] sm:$0xff]
        %v882 = vld [vmem:[%s132 + $0x18] sm:$0xff]
        %v883 = vld [vmem:[%s132 + $0x20] sm:$0xff]
        %v884 = vld [vmem:[%s132 + $0x28] sm:$0xff]
        %v885 = vld [vmem:[%s132 + $0x30] sm:$0xff]
        %v886 = vld [vmem:[%s132 + $0x38] sm:$0xff]
        %v887 = vld [vmem:[%s132 + $0x40] sm:$0xff]
        %v888 = vld [vmem:[%s132 + $0x48] sm:$0xff]
        %v889 = vld [vmem:[%s132 + $0x50] sm:$0xff]
        %v890 = vld [vmem:[%s132 + $0x58] sm:$0xff]
        %v891 = vld [vmem:[%s132 + $0x60] sm:$0xff]
        %v892 = vld [vmem:[%s132 + $0x68] sm:$0xff]
        %v893 = vld [vmem:[%s132 + $0x70] sm:$0xff]
        %v894 = vld [vmem:[%s132 + $0x78] sm:$0xff]
        %v895 = vld [vmem:[%s132 + $0x80] sm:$0xff]
        %v896 = vld [vmem:[%s132 + $0x88] sm:$0xff]
        %v897 = vld [vmem:[%s132 + $0x90] sm:$0xff]
        %v898 = vld [vmem:[%s132 + $0x98] sm:$0xff]
        %v899 = vld [vmem:[%s132 + $0xa0] sm:$0xff]
        %v900 = vld [vmem:[%s132 + $0xa8] sm:$0xff]
        %v901 = vld [vmem:[%s132 + $0xb0] sm:$0xff]
        %v902 = vld [vmem:[%s132 + $0xb8] sm:$0xff]
        %v903 = vld [vmem:[%s132 + $0xc0] sm:$0xff]
        %v904 = vld [vmem:[%s132 + $0xc8] sm:$0xff]
        %v905 = vld [vmem:[%s132 + $0xd0] sm:$0xff]
        %v906 = vld [vmem:[%s132 + $0xd8] sm:$0xff]
        %v907 = vld [vmem:[%s132 + $0xe0] sm:$0xff]
        %v908 = vld [vmem:[%s132 + $0xe8] sm:$0xff]
        %v909 = vld [vmem:[%s132 + $0xf0] sm:$0xff]
        %v910 = vld [vmem:[%s132 + $0xf8] sm:$0xff]
        %v911 = vmul.f32 %v879, %v879
        %v912 = vmul.f32 %v880, %v880
        %v913 = vmul.f32 %v881, %v881
        %v914 = vmul.f32 %v882, %v882
        %v915 = vmul.f32 %v883, %v883
        %v916 = vmul.f32 %v884, %v884
        %v917 = vmul.f32 %v885, %v885
        %v918 = vmul.f32 %v886, %v886
        %v919 = vmul.f32 %v887, %v887
        %v920 = vmul.f32 %v888, %v888
        %v921 = vmul.f32 %v889, %v889
        %v922 = vmul.f32 %v890, %v890
        %v923 = vmul.f32 %v891, %v891
        %v924 = vmul.f32 %v892, %v892
        %v925 = vmul.f32 %v893, %v893
        %v926 = vmul.f32 %v894, %v894
        %v927 = vmul.f32 %v895, %v895
        %v928 = vmul.f32 %v896, %v896
        %v929 = vmul.f32 %v897, %v897
        %v930 = vmul.f32 %v898, %v898
        %v931 = vmul.f32 %v899, %v899
        %v932 = vmul.f32 %v900, %v900
        %v933 = vmul.f32 %v901, %v901
        %v934 = vmul.f32 %v902, %v902
        %v935 = vmul.f32 %v903, %v903
        %v936 = vmul.f32 %v904, %v904
        %v937 = vmul.f32 %v905, %v905
        %v938 = vmul.f32 %v906, %v906
        %v939 = vmul.f32 %v907, %v907
        %v940 = vmul.f32 %v908, %v908
        %v941 = vmul.f32 %v909, %v909
        %v942 = vmul.f32 %v910, %v910
        %943 = vadd.xlane.f32.xlu0 %v911
        %v944 = vpop.xlane.xlu0 %943
        %945 = vadd.xlane.f32.xlu0 %v912
        %v946 = vpop.xlane.xlu0 %945
        %947 = vadd.xlane.f32.xlu0 %v913
        %v948 = vpop.xlane.xlu0 %947
        %949 = vadd.xlane.f32.xlu0 %v914
        %v950 = vpop.xlane.xlu0 %949
        %951 = vadd.xlane.f32.xlu0 %v915
        %v952 = vpop.xlane.xlu0 %951
        %953 = vadd.xlane.f32.xlu0 %v916
        %v954 = vpop.xlane.xlu0 %953
        %955 = vadd.xlane.f32.xlu0 %v917
        %v956 = vpop.xlane.xlu0 %955
        %957 = vadd.xlane.f32.xlu0 %v918
        %v958 = vpop.xlane.xlu0 %957
        %959 = vadd.xlane.f32.xlu0 %v919
        %v960 = vpop.xlane.xlu0 %959
        %961 = vadd.xlane.f32.xlu0 %v920
        %v962 = vpop.xlane.xlu0 %961
        %963 = vadd.xlane.f32.xlu0 %v921
        %v964 = vpop.xlane.xlu0 %963
        %965 = vadd.xlane.f32.xlu0 %v922
        %v966 = vpop.xlane.xlu0 %965
        %967 = vadd.xlane.f32.xlu0 %v923
        %v968 = vpop.xlane.xlu0 %967
        %969 = vadd.xlane.f32.xlu0 %v924
        %v970 = vpop.xlane.xlu0 %969
        %971 = vadd.xlane.f32.xlu0 %v925
        %v972 = vpop.xlane.xlu0 %971
        %973 = vadd.xlane.f32.xlu0 %v926
        %v974 = vpop.xlane.xlu0 %973
        %975 = vadd.xlane.f32.xlu0 %v927
        %v976 = vpop.xlane.xlu0 %975
        %977 = vadd.xlane.f32.xlu0 %v928
        %v978 = vpop.xlane.xlu0 %977
        %979 = vadd.xlane.f32.xlu0 %v929
        %v980 = vpop.xlane.xlu0 %979
        %981 = vadd.xlane.f32.xlu0 %v930
        %v982 = vpop.xlane.xlu0 %981
        %983 = vadd.xlane.f32.xlu0 %v931
        %v984 = vpop.xlane.xlu0 %983
        %985 = vadd.xlane.f32.xlu0 %v932
        %v986 = vpop.xlane.xlu0 %985
        %987 = vadd.xlane.f32.xlu0 %v933
        %v988 = vpop.xlane.xlu0 %987
        %989 = vadd.xlane.f32.xlu0 %v934
        %v990 = vpop.xlane.xlu0 %989
        %991 = vadd.xlane.f32.xlu0 %v935
        %v992 = vpop.xlane.xlu0 %991
        %993 = vadd.xlane.f32.xlu0 %v936
        %v994 = vpop.xlane.xlu0 %993
        %995 = vadd.xlane.f32.xlu0 %v937
        %v996 = vpop.xlane.xlu0 %995
        %997 = vadd.xlane.f32.xlu0 %v938
        %v998 = vpop.xlane.xlu0 %997
        %999 = vadd.xlane.f32.xlu0 %v939
        %v1000 = vpop.xlane.xlu0 %999
        %1001 = vadd.xlane.f32.xlu0 %v940
        %v1002 = vpop.xlane.xlu0 %1001
        %1003 = vadd.xlane.f32.xlu0 %v941
        %v1004 = vpop.xlane.xlu0 %1003
        %1005 = vadd.xlane.f32.xlu0 %v942
        %v1006 = vpop.xlane.xlu0 %1005
        %v1007 = vmax.f32 %v944, 1e-24
        %v1008 = vmax.f32 %v946, 1e-24
        %v1009 = vmax.f32 %v948, 1e-24
        %v1010 = vmax.f32 %v950, 1e-24
        %v1011 = vmax.f32 %v952, 1e-24
        %v1012 = vmax.f32 %v954, 1e-24
        %v1013 = vmax.f32 %v956, 1e-24
        %v1014 = vmax.f32 %v958, 1e-24
        %v1015 = vmax.f32 %v960, 1e-24
        %v1016 = vmax.f32 %v962, 1e-24
        %v1017 = vmax.f32 %v964, 1e-24
        %v1018 = vmax.f32 %v966, 1e-24
        %v1019 = vmax.f32 %v968, 1e-24
        %v1020 = vmax.f32 %v970, 1e-24
        %v1021 = vmax.f32 %v972, 1e-24
        %v1022 = vmax.f32 %v974, 1e-24
        %v1023 = vmax.f32 %v976, 1e-24
        %v1024 = vmax.f32 %v978, 1e-24
        %v1025 = vmax.f32 %v980, 1e-24
        %v1026 = vmax.f32 %v982, 1e-24
        %v1027 = vmax.f32 %v984, 1e-24
        %v1028 = vmax.f32 %v986, 1e-24
        %v1029 = vmax.f32 %v988, 1e-24
        %v1030 = vmax.f32 %v990, 1e-24
        %v1031 = vmax.f32 %v992, 1e-24
        %v1032 = vmax.f32 %v994, 1e-24
        %v1033 = vmax.f32 %v996, 1e-24
        %v1034 = vmax.f32 %v998, 1e-24
        %v1035 = vmax.f32 %v1000, 1e-24
        %v1036 = vmax.f32 %v1002, 1e-24
        %v1037 = vmax.f32 %v1004, 1e-24
        %v1038 = vmax.f32 %v1006, 1e-24
        %v1039 = vrsqrt.pop %v1007
        %v1040 = vrsqrt.pop %v1008
        %v1041 = vrsqrt.pop %v1009
        %v1042 = vrsqrt.pop %v1010
        %v1043 = vrsqrt.pop %v1011
        %v1044 = vrsqrt.pop %v1012
        %v1045 = vrsqrt.pop %v1013
        %v1046 = vrsqrt.pop %v1014
        %v1047 = vrsqrt.pop %v1015
        %v1048 = vrsqrt.pop %v1016
        %v1049 = vrsqrt.pop %v1017
        %v1050 = vrsqrt.pop %v1018
        %v1051 = vrsqrt.pop %v1019
        %v1052 = vrsqrt.pop %v1020
        %v1053 = vrsqrt.pop %v1021
        %v1054 = vrsqrt.pop %v1022
        %v1055 = vrsqrt.pop %v1023
        %v1056 = vrsqrt.pop %v1024
        %v1057 = vrsqrt.pop %v1025
        %v1058 = vrsqrt.pop %v1026
        %v1059 = vrsqrt.pop %v1027
        %v1060 = vrsqrt.pop %v1028
        %v1061 = vrsqrt.pop %v1029
        %v1062 = vrsqrt.pop %v1030
        %v1063 = vrsqrt.pop %v1031
        %v1064 = vrsqrt.pop %v1032
        %v1065 = vrsqrt.pop %v1033
        %v1066 = vrsqrt.pop %v1034
        %v1067 = vrsqrt.pop %v1035
        %v1068 = vrsqrt.pop %v1036
        %v1069 = vrsqrt.pop %v1037
        %v1070 = vrsqrt.pop %v1038
        %v1071 = vmul.f32 %v879, %v1039
        %v1072 = vmul.f32 %v880, %v1040
        %v1073 = vmul.f32 %v881, %v1041
        %v1074 = vmul.f32 %v882, %v1042
        %v1075 = vmul.f32 %v883, %v1043
        %v1076 = vmul.f32 %v884, %v1044
        %v1077 = vmul.f32 %v885, %v1045
        %v1078 = vmul.f32 %v886, %v1046
        %v1079 = vmul.f32 %v887, %v1047
        %v1080 = vmul.f32 %v888, %v1048
        %v1081 = vmul.f32 %v889, %v1049
        %v1082 = vmul.f32 %v890, %v1050
        %v1083 = vmul.f32 %v891, %v1051
        %v1084 = vmul.f32 %v892, %v1052
        %v1085 = vmul.f32 %v893, %v1053
        %v1086 = vmul.f32 %v894, %v1054
        %v1087 = vmul.f32 %v895, %v1055
        %v1088 = vmul.f32 %v896, %v1056
        %v1089 = vmul.f32 %v897, %v1057
        %v1090 = vmul.f32 %v898, %v1058
        %v1091 = vmul.f32 %v899, %v1059
        %v1092 = vmul.f32 %v900, %v1060
        %v1093 = vmul.f32 %v901, %v1061
        %v1094 = vmul.f32 %v902, %v1062
        %v1095 = vmul.f32 %v903, %v1063
        %v1096 = vmul.f32 %v904, %v1064
        %v1097 = vmul.f32 %v905, %v1065
        %v1098 = vmul.f32 %v906, %v1066
        %v1099 = vmul.f32 %v907, %v1067
        %v1100 = vmul.f32 %v908, %v1068
        %v1101 = vmul.f32 %v909, %v1069
        %v1102 = vmul.f32 %v910, %v1070
        %v1103 = vpack.c.bf16 %v1072, %v1071
        %v1104 = vpack.c.bf16 %v1074, %v1073
        %v1105 = vpack.c.bf16 %v1076, %v1075
        %v1106 = vpack.c.bf16 %v1078, %v1077
        %v1107 = vpack.c.bf16 %v1080, %v1079
        %v1108 = vpack.c.bf16 %v1082, %v1081
        %v1109 = vpack.c.bf16 %v1084, %v1083
        %v1110 = vpack.c.bf16 %v1086, %v1085
        %v1111 = vpack.c.bf16 %v1088, %v1087
        %v1112 = vpack.c.bf16 %v1090, %v1089
        %v1113 = vpack.c.bf16 %v1092, %v1091
        %v1114 = vpack.c.bf16 %v1094, %v1093
        %v1115 = vpack.c.bf16 %v1096, %v1095
        %v1116 = vpack.c.bf16 %v1098, %v1097
        %v1117 = vpack.c.bf16 %v1100, %v1099
        %v1118 = vpack.c.bf16 %v1102, %v1101
        %v1119 = vld [vmem:[#allocation2] sm:$0xff]
        %v1120 = vld [vmem:[#allocation2 + $0x8] sm:$0xff]
        %v1121 = vld [vmem:[#allocation2 + $0x10] sm:$0xff]
        %v1122 = vld [vmem:[#allocation2 + $0x18] sm:$0xff]
        %v1123 = vld [vmem:[#allocation2 + $0x20] sm:$0xff]
        %v1124 = vld [vmem:[#allocation2 + $0x28] sm:$0xff]
        %v1125 = vld [vmem:[#allocation2 + $0x30] sm:$0xff]
        %v1126 = vld [vmem:[#allocation2 + $0x38] sm:$0xff]
        %v1127 = vld [vmem:[#allocation2 + $0x40] sm:$0xff]
        %v1128 = vld [vmem:[#allocation2 + $0x48] sm:$0xff]
        %v1129 = vld [vmem:[#allocation2 + $0x50] sm:$0xff]
        %v1130 = vld [vmem:[#allocation2 + $0x58] sm:$0xff]
        %v1131 = vld [vmem:[#allocation2 + $0x60] sm:$0xff]
        %v1132 = vld [vmem:[#allocation2 + $0x68] sm:$0xff]
        %v1133 = vld [vmem:[#allocation2 + $0x70] sm:$0xff]
        %v1134 = vld [vmem:[#allocation2 + $0x78] sm:$0xff]
        %v1135 = vld [vmem:[#allocation2 + $0x80] sm:$0xff]
        %v1136 = vld [vmem:[#allocation2 + $0x88] sm:$0xff]
        %v1137 = vld [vmem:[#allocation2 + $0x90] sm:$0xff]
        %v1138 = vld [vmem:[#allocation2 + $0x98] sm:$0xff]
        %v1139 = vld [vmem:[#allocation2 + $0xa0] sm:$0xff]
        %v1140 = vld [vmem:[#allocation2 + $0xa8] sm:$0xff]
        %v1141 = vld [vmem:[#allocation2 + $0xb0] sm:$0xff]
        %v1142 = vld [vmem:[#allocation2 + $0xb8] sm:$0xff]
        %v1143 = vld [vmem:[#allocation2 + $0xc0] sm:$0xff]
        %v1144 = vld [vmem:[#allocation2 + $0xc8] sm:$0xff]
        %v1145 = vld [vmem:[#allocation2 + $0xd0] sm:$0xff]
        %v1146 = vld [vmem:[#allocation2 + $0xd8] sm:$0xff]
        %v1147 = vld [vmem:[#allocation2 + $0xe0] sm:$0xff]
        %v1148 = vld [vmem:[#allocation2 + $0xe8] sm:$0xff]
        %v1149 = vld [vmem:[#allocation2 + $0xf0] sm:$0xff]
        %v1150 = vld [vmem:[#allocation2 + $0xf8] sm:$0xff]
        %v1183 = vunpack.c.l.b16 %v1119
        %v1184 = vunpack.c.h.b16 %v1119
        %v1185 = vunpack.c.l.b16 %v1120
        %v1186 = vunpack.c.h.b16 %v1120
        %v1187 = vunpack.c.l.b16 %v1121
        %v1188 = vunpack.c.h.b16 %v1121
        %v1189 = vunpack.c.l.b16 %v1122
        %v1190 = vunpack.c.h.b16 %v1122
        %v1191 = vunpack.c.l.b16 %v1123
        %v1192 = vunpack.c.h.b16 %v1123
        %v1193 = vunpack.c.l.b16 %v1124
        %v1194 = vunpack.c.h.b16 %v1124
        %v1195 = vunpack.c.l.b16 %v1125
        %v1196 = vunpack.c.h.b16 %v1125
        %v1197 = vunpack.c.l.b16 %v1126
        %v1198 = vunpack.c.h.b16 %v1126
        %v1199 = vunpack.c.l.b16 %v1127
        %v1200 = vunpack.c.h.b16 %v1127
        %v1201 = vunpack.c.l.b16 %v1128
        %v1202 = vunpack.c.h.b16 %v1128
        %v1203 = vunpack.c.l.b16 %v1129
        %v1204 = vunpack.c.h.b16 %v1129
        %v1205 = vunpack.c.l.b16 %v1130
        %v1206 = vunpack.c.h.b16 %v1130
        %v1207 = vunpack.c.l.b16 %v1131
        %v1208 = vunpack.c.h.b16 %v1131
        %v1209 = vunpack.c.l.b16 %v1132
        %v1210 = vunpack.c.h.b16 %v1132
        %v1211 = vunpack.c.l.b16 %v1133
        %v1212 = vunpack.c.h.b16 %v1133
        %v1213 = vunpack.c.l.b16 %v1134
        %v1214 = vunpack.c.h.b16 %v1134
        %v1215 = vunpack.c.l.b16 %v1135
        %v1216 = vunpack.c.h.b16 %v1135
        %v1217 = vunpack.c.l.b16 %v1136
        %v1218 = vunpack.c.h.b16 %v1136
        %v1219 = vunpack.c.l.b16 %v1137
        %v1220 = vunpack.c.h.b16 %v1137
        %v1221 = vunpack.c.l.b16 %v1138
        %v1222 = vunpack.c.h.b16 %v1138
        %v1223 = vunpack.c.l.b16 %v1139
        %v1224 = vunpack.c.h.b16 %v1139
        %v1225 = vunpack.c.l.b16 %v1140
        %v1226 = vunpack.c.h.b16 %v1140
        %v1227 = vunpack.c.l.b16 %v1141
        %v1228 = vunpack.c.h.b16 %v1141
        %v1229 = vunpack.c.l.b16 %v1142
        %v1230 = vunpack.c.h.b16 %v1142
        %v1231 = vunpack.c.l.b16 %v1143
        %v1232 = vunpack.c.h.b16 %v1143
        %v1233 = vunpack.c.l.b16 %v1144
        %v1234 = vunpack.c.h.b16 %v1144
        %v1235 = vunpack.c.l.b16 %v1145
        %v1236 = vunpack.c.h.b16 %v1145
        %v1237 = vunpack.c.l.b16 %v1146
        %v1238 = vunpack.c.h.b16 %v1146
        %v1239 = vunpack.c.l.b16 %v1147
        %v1240 = vunpack.c.h.b16 %v1147
        %v1241 = vunpack.c.l.b16 %v1148
        %v1242 = vunpack.c.h.b16 %v1148
        %v1243 = vunpack.c.l.b16 %v1149
        %v1244 = vunpack.c.h.b16 %v1149
        %v1245 = vunpack.c.l.b16 %v1150
        %v1246 = vunpack.c.h.b16 %v1150
        %v1247 = vpack.c.b16 %v1187, %v1183
        %v1248 = vpack.c.b16 %v1188, %v1184
        %v1249 = vpack.c.b16 %v1189, %v1185
        %v1250 = vpack.c.b16 %v1190, %v1186
        %v1251 = vpack.c.b16 %v1195, %v1191
        %v1252 = vpack.c.b16 %v1196, %v1192
        %v1253 = vpack.c.b16 %v1197, %v1193
        %v1254 = vpack.c.b16 %v1198, %v1194
        %v1255 = vpack.c.b16 %v1203, %v1199
        %v1256 = vpack.c.b16 %v1204, %v1200
        %v1257 = vpack.c.b16 %v1205, %v1201
        %v1258 = vpack.c.b16 %v1206, %v1202
        %v1259 = vpack.c.b16 %v1211, %v1207
        %v1260 = vpack.c.b16 %v1212, %v1208
        %v1261 = vpack.c.b16 %v1213, %v1209
        %v1262 = vpack.c.b16 %v1214, %v1210
        %v1263 = vpack.c.b16 %v1219, %v1215
        %v1264 = vpack.c.b16 %v1220, %v1216
        %v1265 = vpack.c.b16 %v1221, %v1217
        %v1266 = vpack.c.b16 %v1222, %v1218
        %v1267 = vpack.c.b16 %v1227, %v1223
        %v1268 = vpack.c.b16 %v1228, %v1224
        %v1269 = vpack.c.b16 %v1229, %v1225
        %v1270 = vpack.c.b16 %v1230, %v1226
        %v1271 = vpack.c.b16 %v1235, %v1231
        %v1272 = vpack.c.b16 %v1236, %v1232
        %v1273 = vpack.c.b16 %v1237, %v1233
        %v1274 = vpack.c.b16 %v1238, %v1234
        %v1275 = vpack.c.b16 %v1243, %v1239
        %v1276 = vpack.c.b16 %v1244, %v1240
        %v1277 = vpack.c.b16 %v1245, %v1241
        %v1278 = vpack.c.b16 %v1246, %v1242
        %1311 = vmatprep.subr.bf16.mxu0 %v1276
        %1312 = vmatpush1.bf16.msra.mxu0 %v1275
        %1313 = vmatprep.subr.bf16.mxu0 %v1272
        %1314 = vmatpush1.bf16.msra.mxu0 %v1271
        %1315 = vmatprep.subr.bf16.mxu0 %v1268
        %1316 = vmatpush1.bf16.msra.mxu0 %v1267
        %1317 = vmatprep.subr.bf16.mxu0 %v1264
        %1318 = vmatpush1.bf16.msra.mxu0 %v1263
        %1319 = vmatprep.subr.bf16.mxu0 %v1260
        %1320 = vmatpush1.bf16.msra.mxu0 %v1259
        %1321 = vmatprep.subr.bf16.mxu0 %v1256
        %1322 = vmatpush1.bf16.msra.mxu0 %v1255
        %1323 = vmatprep.subr.bf16.mxu0 %v1252
        %1324 = vmatpush1.bf16.msra.mxu0 %v1251
        %1325 = vmatprep.subr.bf16.mxu0 %v1248
        %1326 = vmatpush1.bf16.msra.mxu0 %v1247
        %1327 = vmatprep.subr.bf16.mxu0 0
        %1328 = vmatpush2.bf16.msra.mxu0 0
        %1329 = vmatprep.subr.bf16.mxu0 0
        %1330 = vmatpush2.bf16.msra.mxu0 0
        %1331 = vmatprep.subr.bf16.mxu0 0
        %1332 = vmatpush2.bf16.msra.mxu0 0
        %1333 = vmatprep.subr.bf16.mxu0 0
        %1334 = vmatpush2.bf16.msra.mxu0 0
        %1335 = vmatprep.subr.bf16.mxu0 0
        %1336 = vmatpush2.bf16.msra.mxu0 0
        %1337 = vmatprep.subr.bf16.mxu0 0
        %1338 = vmatpush2.bf16.msra.mxu0 0
        %1339 = vmatprep.subr.bf16.mxu0 0
        %1340 = vmatpush2.bf16.msra.mxu0 0
        %1341 = vmatprep.subr.bf16.mxu0 0
        %1342 = vmatpush2.bf16.msra.mxu0 0
        %1343 = vmatprep.mubr.bf16.mxu0 0
        %1344 = vmatmul.mubr.bf16.gmra.mxu0 %v1103
        %v1345 = vpop.f32.mrf.mxu0
        %v1346 = vadd.f32 0.0, %v1345
        %v1347 = vpop.f32.mrf.mxu0
        %v1348 = vadd.f32 0.0, %v1347
        %v1349 = vpop.f32.mrf.mxu0
        %v1350 = vadd.f32 0.0, %v1349
        %v1351 = vpop.f32.mrf.mxu0
        %v1352 = vadd.f32 0.0, %v1351
        %1353 = vmatprep.mubr.bf16.mxu0 0
        %1354 = vmatmul.mubr.bf16.gmra.mxu0 %v1104
        %v1355 = vpop.f32.mrf.mxu0
        %v1356 = vadd.f32 0.0, %v1355
        %v1357 = vpop.f32.mrf.mxu0
        %v1358 = vadd.f32 0.0, %v1357
        %v1359 = vpop.f32.mrf.mxu0
        %v1360 = vadd.f32 0.0, %v1359
        %v1361 = vpop.f32.mrf.mxu0
        %v1362 = vadd.f32 0.0, %v1361
        %1363 = vmatprep.mubr.bf16.mxu0 0
        %1364 = vmatmul.mubr.bf16.gmra.mxu0 %v1105
        %v1365 = vpop.f32.mrf.mxu0
        %v1366 = vadd.f32 0.0, %v1365
        %v1367 = vpop.f32.mrf.mxu0
        %v1368 = vadd.f32 0.0, %v1367
        %v1369 = vpop.f32.mrf.mxu0
        %v1370 = vadd.f32 0.0, %v1369
        %v1371 = vpop.f32.mrf.mxu0
        %v1372 = vadd.f32 0.0, %v1371
        %1373 = vmatprep.mubr.bf16.mxu0 0
        %1374 = vmatmul.mubr.bf16.gmra.mxu0 %v1106
        %v1375 = vpop.f32.mrf.mxu0
        %v1376 = vadd.f32 0.0, %v1375
        %v1377 = vpop.f32.mrf.mxu0
        %v1378 = vadd.f32 0.0, %v1377
        %v1379 = vpop.f32.mrf.mxu0
        %v1380 = vadd.f32 0.0, %v1379
        %v1381 = vpop.f32.mrf.mxu0
        %v1382 = vadd.f32 0.0, %v1381
        %1383 = vmatprep.mubr.bf16.mxu0 0
        %1384 = vmatmul.mubr.bf16.gmra.mxu0 %v1107
        %v1385 = vpop.f32.mrf.mxu0
        %v1386 = vadd.f32 0.0, %v1385
        %v1387 = vpop.f32.mrf.mxu0
        %v1388 = vadd.f32 0.0, %v1387
        %v1389 = vpop.f32.mrf.mxu0
        %v1390 = vadd.f32 0.0, %v1389
        %v1391 = vpop.f32.mrf.mxu0
        %v1392 = vadd.f32 0.0, %v1391
        %1393 = vmatprep.mubr.bf16.mxu0 0
        %1394 = vmatmul.mubr.bf16.gmra.mxu0 %v1108
        %v1395 = vpop.f32.mrf.mxu0
        %v1396 = vadd.f32 0.0, %v1395
        %v1397 = vpop.f32.mrf.mxu0
        %v1398 = vadd.f32 0.0, %v1397
        %v1399 = vpop.f32.mrf.mxu0
        %v1400 = vadd.f32 0.0, %v1399
        %v1401 = vpop.f32.mrf.mxu0
        %v1402 = vadd.f32 0.0, %v1401
        %1403 = vmatprep.mubr.bf16.mxu0 0
        %1404 = vmatmul.mubr.bf16.gmra.mxu0 %v1109
        %v1405 = vpop.f32.mrf.mxu0
        %v1406 = vadd.f32 0.0, %v1405
        %v1407 = vpop.f32.mrf.mxu0
        %v1408 = vadd.f32 0.0, %v1407
        %v1409 = vpop.f32.mrf.mxu0
        %v1410 = vadd.f32 0.0, %v1409
        %v1411 = vpop.f32.mrf.mxu0
        %v1412 = vadd.f32 0.0, %v1411
        %1413 = vmatprep.mubr.bf16.mxu0 0
        %1414 = vmatmul.mubr.bf16.gmra.mxu0 %v1110
        %v1415 = vpop.f32.mrf.mxu0
        %v1416 = vadd.f32 0.0, %v1415
        %v1417 = vpop.f32.mrf.mxu0
        %v1418 = vadd.f32 0.0, %v1417
        %v1419 = vpop.f32.mrf.mxu0
        %v1420 = vadd.f32 0.0, %v1419
        %v1421 = vpop.f32.mrf.mxu0
        %v1422 = vadd.f32 0.0, %v1421
        %1423 = vmatprep.mubr.bf16.mxu0 0
        %1424 = vmatmul.mubr.bf16.gmra.mxu0 %v1111
        %v1425 = vpop.f32.mrf.mxu0
        %v1426 = vadd.f32 0.0, %v1425
        %v1427 = vpop.f32.mrf.mxu0
        %v1428 = vadd.f32 0.0, %v1427
        %v1429 = vpop.f32.mrf.mxu0
        %v1430 = vadd.f32 0.0, %v1429
        %v1431 = vpop.f32.mrf.mxu0
        %v1432 = vadd.f32 0.0, %v1431
        %1433 = vmatprep.mubr.bf16.mxu0 0
        %1434 = vmatmul.mubr.bf16.gmra.mxu0 %v1112
        %v1435 = vpop.f32.mrf.mxu0
        %v1436 = vadd.f32 0.0, %v1435
        %v1437 = vpop.f32.mrf.mxu0
        %v1438 = vadd.f32 0.0, %v1437
        %v1439 = vpop.f32.mrf.mxu0
        %v1440 = vadd.f32 0.0, %v1439
        %v1441 = vpop.f32.mrf.mxu0
        %v1442 = vadd.f32 0.0, %v1441
        %1443 = vmatprep.mubr.bf16.mxu0 0
        %1444 = vmatmul.mubr.bf16.gmra.mxu0 %v1113
        %v1445 = vpop.f32.mrf.mxu0
        %v1446 = vadd.f32 0.0, %v1445
        %v1447 = vpop.f32.mrf.mxu0
        %v1448 = vadd.f32 0.0, %v1447
        %v1449 = vpop.f32.mrf.mxu0
        %v1450 = vadd.f32 0.0, %v1449
        %v1451 = vpop.f32.mrf.mxu0
        %v1452 = vadd.f32 0.0, %v1451
        %1453 = vmatprep.mubr.bf16.mxu0 0
        %1454 = vmatmul.mubr.bf16.gmra.mxu0 %v1114
        %v1455 = vpop.f32.mrf.mxu0
        %v1456 = vadd.f32 0.0, %v1455
        %v1457 = vpop.f32.mrf.mxu0
        %v1458 = vadd.f32 0.0, %v1457
        %v1459 = vpop.f32.mrf.mxu0
        %v1460 = vadd.f32 0.0, %v1459
        %v1461 = vpop.f32.mrf.mxu0
        %v1462 = vadd.f32 0.0, %v1461
        %1463 = vmatprep.mubr.bf16.mxu0 0
        %1464 = vmatmul.mubr.bf16.gmra.mxu0 %v1115
        %v1465 = vpop.f32.mrf.mxu0
        %v1466 = vadd.f32 0.0, %v1465
        %v1467 = vpop.f32.mrf.mxu0
        %v1468 = vadd.f32 0.0, %v1467
        %v1469 = vpop.f32.mrf.mxu0
        %v1470 = vadd.f32 0.0, %v1469
        %v1471 = vpop.f32.mrf.mxu0
        %v1472 = vadd.f32 0.0, %v1471
        %1473 = vmatprep.mubr.bf16.mxu0 0
        %1474 = vmatmul.mubr.bf16.gmra.mxu0 %v1116
        %v1475 = vpop.f32.mrf.mxu0
        %v1476 = vadd.f32 0.0, %v1475
        %v1477 = vpop.f32.mrf.mxu0
        %v1478 = vadd.f32 0.0, %v1477
        %v1479 = vpop.f32.mrf.mxu0
        %v1480 = vadd.f32 0.0, %v1479
        %v1481 = vpop.f32.mrf.mxu0
        %v1482 = vadd.f32 0.0, %v1481
        %1483 = vmatprep.mubr.bf16.mxu0 0
        %1484 = vmatmul.mubr.bf16.gmra.mxu0 %v1117
        %v1485 = vpop.f32.mrf.mxu0
        %v1486 = vadd.f32 0.0, %v1485
        %v1487 = vpop.f32.mrf.mxu0
        %v1488 = vadd.f32 0.0, %v1487
        %v1489 = vpop.f32.mrf.mxu0
        %v1490 = vadd.f32 0.0, %v1489
        %v1491 = vpop.f32.mrf.mxu0
        %v1492 = vadd.f32 0.0, %v1491
        %1493 = vmatprep.mubr.bf16.mxu0 0
        %1494 = vmatmul.mubr.bf16.gmra.mxu0 %v1118
        %v1495 = vpop.f32.mrf.mxu0
        %v1496 = vadd.f32 0.0, %v1495
        %v1497 = vpop.f32.mrf.mxu0
        %v1498 = vadd.f32 0.0, %v1497
        %v1499 = vpop.f32.mrf.mxu0
        %v1500 = vadd.f32 0.0, %v1499
        %v1501 = vpop.f32.mrf.mxu0
        %v1502 = vadd.f32 0.0, %v1501
        %1503 = vdwg.mxu0
        %1504 = vmatprep.subr.bf16.mxu0 %v1278
        %1505 = vmatpush1.bf16.msra.mxu0 %v1277
        %1506 = vmatprep.subr.bf16.mxu0 %v1274
        %1507 = vmatpush1.bf16.msra.mxu0 %v1273
        %1508 = vmatprep.subr.bf16.mxu0 %v1270
        %1509 = vmatpush1.bf16.msra.mxu0 %v1269
        %1510 = vmatprep.subr.bf16.mxu0 %v1266
        %1511 = vmatpush1.bf16.msra.mxu0 %v1265
        %1512 = vmatprep.subr.bf16.mxu0 %v1262
        %1513 = vmatpush1.bf16.msra.mxu0 %v1261
        %1514 = vmatprep.subr.bf16.mxu0 %v1258
        %1515 = vmatpush1.bf16.msra.mxu0 %v1257
        %1516 = vmatprep.subr.bf16.mxu0 %v1254
        %1517 = vmatpush1.bf16.msra.mxu0 %v1253
        %1518 = vmatprep.subr.bf16.mxu0 %v1250
        %1519 = vmatpush1.bf16.msra.mxu0 %v1249
        %1520 = vmatprep.subr.bf16.mxu0 0
        %1521 = vmatpush2.bf16.msra.mxu0 0
        %1522 = vmatprep.subr.bf16.mxu0 0
        %1523 = vmatpush2.bf16.msra.mxu0 0
        %1524 = vmatprep.subr.bf16.mxu0 0
        %1525 = vmatpush2.bf16.msra.mxu0 0
        %1526 = vmatprep.subr.bf16.mxu0 0
        %1527 = vmatpush2.bf16.msra.mxu0 0
        %1528 = vmatprep.subr.bf16.mxu0 0
        %1529 = vmatpush2.bf16.msra.mxu0 0
        %1530 = vmatprep.subr.bf16.mxu0 0
        %1531 = vmatpush2.bf16.msra.mxu0 0
        %1532 = vmatprep.subr.bf16.mxu0 0
        %1533 = vmatpush2.bf16.msra.mxu0 0
        %1534 = vmatprep.subr.bf16.mxu0 0
        %1535 = vmatpush2.bf16.msra.mxu0 0
        %1536 = vmatprep.mubr.bf16.mxu0 0
        %1537 = vmatmul.mubr.bf16.gmra.mxu0 %v1103
        %v1538 = vpop.f32.mrf.mxu0
        %v1539 = vadd.f32 0.0, %v1538
        %v1540 = vpop.f32.mrf.mxu0
        %v1541 = vadd.f32 0.0, %v1540
        %v1542 = vpop.f32.mrf.mxu0
        %v1543 = vadd.f32 0.0, %v1542
        %v1544 = vpop.f32.mrf.mxu0
        %v1545 = vadd.f32 0.0, %v1544
        %1546 = vmatprep.mubr.bf16.mxu0 0
        %1547 = vmatmul.mubr.bf16.gmra.mxu0 %v1104
        %v1548 = vpop.f32.mrf.mxu0
        %v1549 = vadd.f32 0.0, %v1548
        %v1550 = vpop.f32.mrf.mxu0
        %v1551 = vadd.f32 0.0, %v1550
        %v1552 = vpop.f32.mrf.mxu0
        %v1553 = vadd.f32 0.0, %v1552
        %v1554 = vpop.f32.mrf.mxu0
        %v1555 = vadd.f32 0.0, %v1554
        %1556 = vmatprep.mubr.bf16.mxu0 0
        %1557 = vmatmul.mubr.bf16.gmra.mxu0 %v1105
        %v1558 = vpop.f32.mrf.mxu0
        %v1559 = vadd.f32 0.0, %v1558
        %v1560 = vpop.f32.mrf.mxu0
        %v1561 = vadd.f32 0.0, %v1560
        %v1562 = vpop.f32.mrf.mxu0
        %v1563 = vadd.f32 0.0, %v1562
        %v1564 = vpop.f32.mrf.mxu0
        %v1565 = vadd.f32 0.0, %v1564
        %1566 = vmatprep.mubr.bf16.mxu0 0
        %1567 = vmatmul.mubr.bf16.gmra.mxu0 %v1106
        %v1568 = vpop.f32.mrf.mxu0
        %v1569 = vadd.f32 0.0, %v1568
        %v1570 = vpop.f32.mrf.mxu0
        %v1571 = vadd.f32 0.0, %v1570
        %v1572 = vpop.f32.mrf.mxu0
        %v1573 = vadd.f32 0.0, %v1572
        %v1574 = vpop.f32.mrf.mxu0
        %v1575 = vadd.f32 0.0, %v1574
        %1576 = vmatprep.mubr.bf16.mxu0 0
        %1577 = vmatmul.mubr.bf16.gmra.mxu0 %v1107
        %v1578 = vpop.f32.mrf.mxu0
        %v1579 = vadd.f32 0.0, %v1578
        %v1580 = vpop.f32.mrf.mxu0
        %v1581 = vadd.f32 0.0, %v1580
        %v1582 = vpop.f32.mrf.mxu0
        %v1583 = vadd.f32 0.0, %v1582
        %v1584 = vpop.f32.mrf.mxu0
        %v1585 = vadd.f32 0.0, %v1584
        %1586 = vmatprep.mubr.bf16.mxu0 0
        %1587 = vmatmul.mubr.bf16.gmra.mxu0 %v1108
        %v1588 = vpop.f32.mrf.mxu0
        %v1589 = vadd.f32 0.0, %v1588
        %v1590 = vpop.f32.mrf.mxu0
        %v1591 = vadd.f32 0.0, %v1590
        %v1592 = vpop.f32.mrf.mxu0
        %v1593 = vadd.f32 0.0, %v1592
        %v1594 = vpop.f32.mrf.mxu0
        %v1595 = vadd.f32 0.0, %v1594
        %1596 = vmatprep.mubr.bf16.mxu0 0
        %1597 = vmatmul.mubr.bf16.gmra.mxu0 %v1109
        %v1598 = vpop.f32.mrf.mxu0
        %v1599 = vadd.f32 0.0, %v1598
        %v1600 = vpop.f32.mrf.mxu0
        %v1601 = vadd.f32 0.0, %v1600
        %v1602 = vpop.f32.mrf.mxu0
        %v1603 = vadd.f32 0.0, %v1602
        %v1604 = vpop.f32.mrf.mxu0
        %v1605 = vadd.f32 0.0, %v1604
        %1606 = vmatprep.mubr.bf16.mxu0 0
        %1607 = vmatmul.mubr.bf16.gmra.mxu0 %v1110
        %v1608 = vpop.f32.mrf.mxu0
        %v1609 = vadd.f32 0.0, %v1608
        %v1610 = vpop.f32.mrf.mxu0
        %v1611 = vadd.f32 0.0, %v1610
        %v1612 = vpop.f32.mrf.mxu0
        %v1613 = vadd.f32 0.0, %v1612
        %v1614 = vpop.f32.mrf.mxu0
        %v1615 = vadd.f32 0.0, %v1614
        %1616 = vmatprep.mubr.bf16.mxu0 0
        %1617 = vmatmul.mubr.bf16.gmra.mxu0 %v1111
        %v1618 = vpop.f32.mrf.mxu0
        %v1619 = vadd.f32 0.0, %v1618
        %v1620 = vpop.f32.mrf.mxu0
        %v1621 = vadd.f32 0.0, %v1620
        %v1622 = vpop.f32.mrf.mxu0
        %v1623 = vadd.f32 0.0, %v1622
        %v1624 = vpop.f32.mrf.mxu0
        %v1625 = vadd.f32 0.0, %v1624
        %1626 = vmatprep.mubr.bf16.mxu0 0
        %1627 = vmatmul.mubr.bf16.gmra.mxu0 %v1112
        %v1628 = vpop.f32.mrf.mxu0
        %v1629 = vadd.f32 0.0, %v1628
        %v1630 = vpop.f32.mrf.mxu0
        %v1631 = vadd.f32 0.0, %v1630
        %v1632 = vpop.f32.mrf.mxu0
        %v1633 = vadd.f32 0.0, %v1632
        %v1634 = vpop.f32.mrf.mxu0
        %v1635 = vadd.f32 0.0, %v1634
        %1636 = vmatprep.mubr.bf16.mxu0 0
        %1637 = vmatmul.mubr.bf16.gmra.mxu0 %v1113
        %v1638 = vpop.f32.mrf.mxu0
        %v1639 = vadd.f32 0.0, %v1638
        %v1640 = vpop.f32.mrf.mxu0
        %v1641 = vadd.f32 0.0, %v1640
        %v1642 = vpop.f32.mrf.mxu0
        %v1643 = vadd.f32 0.0, %v1642
        %v1644 = vpop.f32.mrf.mxu0
        %v1645 = vadd.f32 0.0, %v1644
        %1646 = vmatprep.mubr.bf16.mxu0 0
        %1647 = vmatmul.mubr.bf16.gmra.mxu0 %v1114
        %v1648 = vpop.f32.mrf.mxu0
        %v1649 = vadd.f32 0.0, %v1648
        %v1650 = vpop.f32.mrf.mxu0
        %v1651 = vadd.f32 0.0, %v1650
        %v1652 = vpop.f32.mrf.mxu0
        %v1653 = vadd.f32 0.0, %v1652
        %v1654 = vpop.f32.mrf.mxu0
        %v1655 = vadd.f32 0.0, %v1654
        %1656 = vmatprep.mubr.bf16.mxu0 0
        %1657 = vmatmul.mubr.bf16.gmra.mxu0 %v1115
        %v1658 = vpop.f32.mrf.mxu0
        %v1659 = vadd.f32 0.0, %v1658
        %v1660 = vpop.f32.mrf.mxu0
        %v1661 = vadd.f32 0.0, %v1660
        %v1662 = vpop.f32.mrf.mxu0
        %v1663 = vadd.f32 0.0, %v1662
        %v1664 = vpop.f32.mrf.mxu0
        %v1665 = vadd.f32 0.0, %v1664
        %1666 = vmatprep.mubr.bf16.mxu0 0
        %1667 = vmatmul.mubr.bf16.gmra.mxu0 %v1116
        %v1668 = vpop.f32.mrf.mxu0
        %v1669 = vadd.f32 0.0, %v1668
        %v1670 = vpop.f32.mrf.mxu0
        %v1671 = vadd.f32 0.0, %v1670
        %v1672 = vpop.f32.mrf.mxu0
        %v1673 = vadd.f32 0.0, %v1672
        %v1674 = vpop.f32.mrf.mxu0
        %v1675 = vadd.f32 0.0, %v1674
        %1676 = vmatprep.mubr.bf16.mxu0 0
        %1677 = vmatmul.mubr.bf16.gmra.mxu0 %v1117
        %v1678 = vpop.f32.mrf.mxu0
        %v1679 = vadd.f32 0.0, %v1678
        %v1680 = vpop.f32.mrf.mxu0
        %v1681 = vadd.f32 0.0, %v1680
        %v1682 = vpop.f32.mrf.mxu0
        %v1683 = vadd.f32 0.0, %v1682
        %v1684 = vpop.f32.mrf.mxu0
        %v1685 = vadd.f32 0.0, %v1684
        %1686 = vmatprep.mubr.bf16.mxu0 0
        %1687 = vmatmul.mubr.bf16.gmra.mxu0 %v1118
        %v1688 = vpop.f32.mrf.mxu0
        %v1689 = vadd.f32 0.0, %v1688
        %v1690 = vpop.f32.mrf.mxu0
        %v1691 = vadd.f32 0.0, %v1690
        %v1692 = vpop.f32.mrf.mxu0
        %v1693 = vadd.f32 0.0, %v1692
        %v1694 = vpop.f32.mrf.mxu0
        %v1695 = vadd.f32 0.0, %v1694
        %1696 = vdwg.mxu0
        %v1697 = vlaneseq
        %v1698 = vshrl.u32 %v1697, 7
        %v1699 = vadd.s32 %v1698, 8
        %v1700 = vadd.s32 %v1698, 16
        %v1701 = vadd.s32 %v1698, 24
        %v1702 = vadd.s32 %v1698, 32
        %v1703 = vadd.s32 %v1698, 40
        %v1704 = vadd.s32 %v1698, 48
        %v1705 = vadd.s32 %v1698, 56
        %v1706 = vadd.s32 %v1698, 64
        %v1707 = vadd.s32 %v1698, 72
        %v1708 = vadd.s32 %v1698, 80
        %v1709 = vadd.s32 %v1698, 88
        %v1710 = vadd.s32 %v1698, 96
        %v1711 = vadd.s32 %v1698, 104
        %v1712 = vadd.s32 %v1698, 112
        %v1713 = vadd.s32 %v1698, 120
        %v1714 = vadd.s32 %v1698, 128
        %v1715 = vadd.s32 %v1698, 136
        %v1716 = vadd.s32 %v1698, 144
        %v1717 = vadd.s32 %v1698, 152
        %v1718 = vadd.s32 %v1698, 160
        %v1719 = vadd.s32 %v1698, 168
        %v1720 = vadd.s32 %v1698, 176
        %v1721 = vadd.s32 %v1698, 184
        %v1722 = vadd.s32 %v1698, 192
        %v1723 = vadd.s32 %v1698, 200
        %v1724 = vadd.s32 %v1698, 208
        %v1725 = vadd.s32 %v1698, 216
        %v1726 = vadd.s32 %v1698, 224
        %v1727 = vadd.s32 %v1698, 232
        %v1728 = vadd.s32 %v1698, 240
        %v1729 = vadd.s32 %v1698, 248
        %s1730 = smul.u32 %s16, 256
        %v1731 = vstv %s1730
        %v1732 = vadd.s32 %v1698, %v1731
        %v1733 = vadd.s32 %v1699, %v1731
        %v1734 = vadd.s32 %v1700, %v1731
        %v1735 = vadd.s32 %v1701, %v1731
        %v1736 = vadd.s32 %v1702, %v1731
        %v1737 = vadd.s32 %v1703, %v1731
        %v1738 = vadd.s32 %v1704, %v1731
        %v1739 = vadd.s32 %v1705, %v1731
        %v1740 = vadd.s32 %v1706, %v1731
        %v1741 = vadd.s32 %v1707, %v1731
        %v1742 = vadd.s32 %v1708, %v1731
        %v1743 = vadd.s32 %v1709, %v1731
        %v1744 = vadd.s32 %v1710, %v1731
        %v1745 = vadd.s32 %v1711, %v1731
        %v1746 = vadd.s32 %v1712, %v1731
        %v1747 = vadd.s32 %v1713, %v1731
        %v1748 = vadd.s32 %v1714, %v1731
        %v1749 = vadd.s32 %v1715, %v1731
        %v1750 = vadd.s32 %v1716, %v1731
        %v1751 = vadd.s32 %v1717, %v1731
        %v1752 = vadd.s32 %v1718, %v1731
        %v1753 = vadd.s32 %v1719, %v1731
        %v1754 = vadd.s32 %v1720, %v1731
        %v1755 = vadd.s32 %v1721, %v1731
        %v1756 = vadd.s32 %v1722, %v1731
        %v1757 = vadd.s32 %v1723, %v1731
        %v1758 = vadd.s32 %v1724, %v1731
        %v1759 = vadd.s32 %v1725, %v1731
        %v1760 = vadd.s32 %v1726, %v1731
        %v1761 = vadd.s32 %v1727, %v1731
        %v1762 = vadd.s32 %v1728, %v1731
        %v1763 = vadd.s32 %v1729, %v1731
        %v1764 = vlaneseq
        %v1765 = vand.u32 %v1764, 127
        %v1766 = vadd.s32 %v1765, 128
        %v1767 = vadd.s32 %v1765, 256
        %v1768 = vadd.s32 %v1765, 384
        %v1769 = vmax.f32 %v1346, %v1348
        %v1770 = vmax.f32 %v1769, %v1539
        %v1771 = vmax.f32 %v1770, %v1541
        %1772 = vmax.xlane.f32.xlu0 %v1771
        %v1773 = vpop.xlane.xlu0 %1772
        %v1774 = vmax.f32 %v1350, %v1352
        %v1775 = vmax.f32 %v1774, %v1543
        %v1776 = vmax.f32 %v1775, %v1545
        %1777 = vmax.xlane.f32.xlu0 %v1776
        %v1778 = vpop.xlane.xlu0 %1777
        %v1779 = vmax.f32 %v1356, %v1358
        %v1780 = vmax.f32 %v1779, %v1549
        %v1781 = vmax.f32 %v1780, %v1551
        %1782 = vmax.xlane.f32.xlu0 %v1781
        %v1783 = vpop.xlane.xlu0 %1782
        %v1784 = vmax.f32 %v1360, %v1362
        %v1785 = vmax.f32 %v1784, %v1553
        %v1786 = vmax.f32 %v1785, %v1555
        %1787 = vmax.xlane.f32.xlu0 %v1786
        %v1788 = vpop.xlane.xlu0 %1787
        %v1789 = vmax.f32 %v1366, %v1368
        %v1790 = vmax.f32 %v1789, %v1559
        %v1791 = vmax.f32 %v1790, %v1561
        %1792 = vmax.xlane.f32.xlu0 %v1791
        %v1793 = vpop.xlane.xlu0 %1792
        %v1794 = vmax.f32 %v1370, %v1372
        %v1795 = vmax.f32 %v1794, %v1563
        %v1796 = vmax.f32 %v1795, %v1565
        %1797 = vmax.xlane.f32.xlu0 %v1796
        %v1798 = vpop.xlane.xlu0 %1797
        %v1799 = vmax.f32 %v1376, %v1378
        %v1800 = vmax.f32 %v1799, %v1569
        %v1801 = vmax.f32 %v1800, %v1571
        %1802 = vmax.xlane.f32.xlu0 %v1801
        %v1803 = vpop.xlane.xlu0 %1802
        %v1804 = vmax.f32 %v1380, %v1382
        %v1805 = vmax.f32 %v1804, %v1573
        %v1806 = vmax.f32 %v1805, %v1575
        %1807 = vmax.xlane.f32.xlu0 %v1806
        %v1808 = vpop.xlane.xlu0 %1807
        %v1809 = vmax.f32 %v1386, %v1388
        %v1810 = vmax.f32 %v1809, %v1579
        %v1811 = vmax.f32 %v1810, %v1581
        %1812 = vmax.xlane.f32.xlu0 %v1811
        %v1813 = vpop.xlane.xlu0 %1812
        %v1814 = vmax.f32 %v1390, %v1392
        %v1815 = vmax.f32 %v1814, %v1583
        %v1816 = vmax.f32 %v1815, %v1585
        %1817 = vmax.xlane.f32.xlu0 %v1816
        %v1818 = vpop.xlane.xlu0 %1817
        %v1819 = vmax.f32 %v1396, %v1398
        %v1820 = vmax.f32 %v1819, %v1589
        %v1821 = vmax.f32 %v1820, %v1591
        %1822 = vmax.xlane.f32.xlu0 %v1821
        %v1823 = vpop.xlane.xlu0 %1822
        %v1824 = vmax.f32 %v1400, %v1402
        %v1825 = vmax.f32 %v1824, %v1593
        %v1826 = vmax.f32 %v1825, %v1595
        %1827 = vmax.xlane.f32.xlu0 %v1826
        %v1828 = vpop.xlane.xlu0 %1827
        %v1829 = vmax.f32 %v1406, %v1408
        %v1830 = vmax.f32 %v1829, %v1599
        %v1831 = vmax.f32 %v1830, %v1601
        %1832 = vmax.xlane.f32.xlu0 %v1831
        %v1833 = vpop.xlane.xlu0 %1832
        %v1834 = vmax.f32 %v1410, %v1412
        %v1835 = vmax.f32 %v1834, %v1603
        %v1836 = vmax.f32 %v1835, %v1605
        %1837 = vmax.xlane.f32.xlu0 %v1836
        %v1838 = vpop.xlane.xlu0 %1837
        %v1839 = vmax.f32 %v1416, %v1418
        %v1840 = vmax.f32 %v1839, %v1609
        %v1841 = vmax.f32 %v1840, %v1611
        %1842 = vmax.xlane.f32.xlu0 %v1841
        %v1843 = vpop.xlane.xlu0 %1842
        %v1844 = vmax.f32 %v1420, %v1422
        %v1845 = vmax.f32 %v1844, %v1613
        %v1846 = vmax.f32 %v1845, %v1615
        %1847 = vmax.xlane.f32.xlu0 %v1846
        %v1848 = vpop.xlane.xlu0 %1847
        %v1849 = vmax.f32 %v1426, %v1428
        %v1850 = vmax.f32 %v1849, %v1619
        %v1851 = vmax.f32 %v1850, %v1621
        %1852 = vmax.xlane.f32.xlu0 %v1851
        %v1853 = vpop.xlane.xlu0 %1852
        %v1854 = vmax.f32 %v1430, %v1432
        %v1855 = vmax.f32 %v1854, %v1623
        %v1856 = vmax.f32 %v1855, %v1625
        %1857 = vmax.xlane.f32.xlu0 %v1856
        %v1858 = vpop.xlane.xlu0 %1857
        %v1859 = vmax.f32 %v1436, %v1438
        %v1860 = vmax.f32 %v1859, %v1629
        %v1861 = vmax.f32 %v1860, %v1631
        %1862 = vmax.xlane.f32.xlu0 %v1861
        %v1863 = vpop.xlane.xlu0 %1862
        %v1864 = vmax.f32 %v1440, %v1442
        %v1865 = vmax.f32 %v1864, %v1633
        %v1866 = vmax.f32 %v1865, %v1635
        %1867 = vmax.xlane.f32.xlu0 %v1866
        %v1868 = vpop.xlane.xlu0 %1867
        %v1869 = vmax.f32 %v1446, %v1448
        %v1870 = vmax.f32 %v1869, %v1639
        %v1871 = vmax.f32 %v1870, %v1641
        %1872 = vmax.xlane.f32.xlu0 %v1871
        %v1873 = vpop.xlane.xlu0 %1872
        %v1874 = vmax.f32 %v1450, %v1452
        %v1875 = vmax.f32 %v1874, %v1643
        %v1876 = vmax.f32 %v1875, %v1645
        %1877 = vmax.xlane.f32.xlu0 %v1876
        %v1878 = vpop.xlane.xlu0 %1877
        %v1879 = vmax.f32 %v1456, %v1458
        %v1880 = vmax.f32 %v1879, %v1649
        %v1881 = vmax.f32 %v1880, %v1651
        %1882 = vmax.xlane.f32.xlu0 %v1881
        %v1883 = vpop.xlane.xlu0 %1882
        %v1884 = vmax.f32 %v1460, %v1462
        %v1885 = vmax.f32 %v1884, %v1653
        %v1886 = vmax.f32 %v1885, %v1655
        %1887 = vmax.xlane.f32.xlu0 %v1886
        %v1888 = vpop.xlane.xlu0 %1887
        %v1889 = vmax.f32 %v1466, %v1468
        %v1890 = vmax.f32 %v1889, %v1659
        %v1891 = vmax.f32 %v1890, %v1661
        %1892 = vmax.xlane.f32.xlu0 %v1891
        %v1893 = vpop.xlane.xlu0 %1892
        %v1894 = vmax.f32 %v1470, %v1472
        %v1895 = vmax.f32 %v1894, %v1663
        %v1896 = vmax.f32 %v1895, %v1665
        %1897 = vmax.xlane.f32.xlu0 %v1896
        %v1898 = vpop.xlane.xlu0 %1897
        %v1899 = vmax.f32 %v1476, %v1478
        %v1900 = vmax.f32 %v1899, %v1669
        %v1901 = vmax.f32 %v1900, %v1671
        %1902 = vmax.xlane.f32.xlu0 %v1901
        %v1903 = vpop.xlane.xlu0 %1902
        %v1904 = vmax.f32 %v1480, %v1482
        %v1905 = vmax.f32 %v1904, %v1673
        %v1906 = vmax.f32 %v1905, %v1675
        %1907 = vmax.xlane.f32.xlu0 %v1906
        %v1908 = vpop.xlane.xlu0 %1907
        %v1909 = vmax.f32 %v1486, %v1488
        %v1910 = vmax.f32 %v1909, %v1679
        %v1911 = vmax.f32 %v1910, %v1681
        %1912 = vmax.xlane.f32.xlu0 %v1911
        %v1913 = vpop.xlane.xlu0 %1912
        %v1914 = vmax.f32 %v1490, %v1492
        %v1915 = vmax.f32 %v1914, %v1683
        %v1916 = vmax.f32 %v1915, %v1685
        %1917 = vmax.xlane.f32.xlu0 %v1916
        %v1918 = vpop.xlane.xlu0 %1917
        %v1919 = vmax.f32 %v1496, %v1498
        %v1920 = vmax.f32 %v1919, %v1689
        %v1921 = vmax.f32 %v1920, %v1691
        %1922 = vmax.xlane.f32.xlu0 %v1921
        %v1923 = vpop.xlane.xlu0 %1922
        %v1924 = vmax.f32 %v1500, %v1502
        %v1925 = vmax.f32 %v1924, %v1693
        %v1926 = vmax.f32 %v1925, %v1695
        %1927 = vmax.xlane.f32.xlu0 %v1926
        %v1928 = vpop.xlane.xlu0 %1927
        %v1929 = vsub.f32 %v1346, %v1773
        %v1930 = vsub.f32 %v1348, %v1773
        %v1931 = vsub.f32 %v1539, %v1773
        %v1932 = vsub.f32 %v1541, %v1773
        %v1933 = vsub.f32 %v1350, %v1778
        %v1934 = vsub.f32 %v1352, %v1778
        %v1935 = vsub.f32 %v1543, %v1778
        %v1936 = vsub.f32 %v1545, %v1778
        %v1937 = vsub.f32 %v1356, %v1783
        %v1938 = vsub.f32 %v1358, %v1783
        %v1939 = vsub.f32 %v1549, %v1783
        %v1940 = vsub.f32 %v1551, %v1783
        %v1941 = vsub.f32 %v1360, %v1788
        %v1942 = vsub.f32 %v1362, %v1788
        %v1943 = vsub.f32 %v1553, %v1788
        %v1944 = vsub.f32 %v1555, %v1788
        %v1945 = vsub.f32 %v1366, %v1793
        %v1946 = vsub.f32 %v1368, %v1793
        %v1947 = vsub.f32 %v1559, %v1793
        %v1948 = vsub.f32 %v1561, %v1793
        %v1949 = vsub.f32 %v1370, %v1798
        %v1950 = vsub.f32 %v1372, %v1798
        %v1951 = vsub.f32 %v1563, %v1798
        %v1952 = vsub.f32 %v1565, %v1798
        %v1953 = vsub.f32 %v1376, %v1803
        %v1954 = vsub.f32 %v1378, %v1803
        %v1955 = vsub.f32 %v1569, %v1803
        %v1956 = vsub.f32 %v1571, %v1803
        %v1957 = vsub.f32 %v1380, %v1808
        %v1958 = vsub.f32 %v1382, %v1808
        %v1959 = vsub.f32 %v1573, %v1808
        %v1960 = vsub.f32 %v1575, %v1808
        %v1961 = vsub.f32 %v1386, %v1813
        %v1962 = vsub.f32 %v1388, %v1813
        %v1963 = vsub.f32 %v1579, %v1813
        %v1964 = vsub.f32 %v1581, %v1813
        %v1965 = vsub.f32 %v1390, %v1818
        %v1966 = vsub.f32 %v1392, %v1818
        %v1967 = vsub.f32 %v1583, %v1818
        %v1968 = vsub.f32 %v1585, %v1818
        %v1969 = vsub.f32 %v1396, %v1823
        %v1970 = vsub.f32 %v1398, %v1823
        %v1971 = vsub.f32 %v1589, %v1823
        %v1972 = vsub.f32 %v1591, %v1823
        %v1973 = vsub.f32 %v1400, %v1828
        %v1974 = vsub.f32 %v1402, %v1828
        %v1975 = vsub.f32 %v1593, %v1828
        %v1976 = vsub.f32 %v1595, %v1828
        %v1977 = vsub.f32 %v1406, %v1833
        %v1978 = vsub.f32 %v1408, %v1833
        %v1979 = vsub.f32 %v1599, %v1833
        %v1980 = vsub.f32 %v1601, %v1833
        %v1981 = vsub.f32 %v1410, %v1838
        %v1982 = vsub.f32 %v1412, %v1838
        %v1983 = vsub.f32 %v1603, %v1838
        %v1984 = vsub.f32 %v1605, %v1838
        %v1985 = vsub.f32 %v1416, %v1843
        %v1986 = vsub.f32 %v1418, %v1843
        %v1987 = vsub.f32 %v1609, %v1843
        %v1988 = vsub.f32 %v1611, %v1843
        %v1989 = vsub.f32 %v1420, %v1848
        %v1990 = vsub.f32 %v1422, %v1848
        %v1991 = vsub.f32 %v1613, %v1848
        %v1992 = vsub.f32 %v1615, %v1848
        %v1993 = vsub.f32 %v1426, %v1853
        %v1994 = vsub.f32 %v1428, %v1853
        %v1995 = vsub.f32 %v1619, %v1853
        %v1996 = vsub.f32 %v1621, %v1853
        %v1997 = vsub.f32 %v1430, %v1858
        %v1998 = vsub.f32 %v1432, %v1858
        %v1999 = vsub.f32 %v1623, %v1858
        %v2000 = vsub.f32 %v1625, %v1858
        %v2001 = vsub.f32 %v1436, %v1863
        %v2002 = vsub.f32 %v1438, %v1863
        %v2003 = vsub.f32 %v1629, %v1863
        %v2004 = vsub.f32 %v1631, %v1863
        %v2005 = vsub.f32 %v1440, %v1868
        %v2006 = vsub.f32 %v1442, %v1868
        %v2007 = vsub.f32 %v1633, %v1868
        %v2008 = vsub.f32 %v1635, %v1868
        %v2009 = vsub.f32 %v1446, %v1873
        %v2010 = vsub.f32 %v1448, %v1873
        %v2011 = vsub.f32 %v1639, %v1873
        %v2012 = vsub.f32 %v1641, %v1873
        %v2013 = vsub.f32 %v1450, %v1878
        %v2014 = vsub.f32 %v1452, %v1878
        %v2015 = vsub.f32 %v1643, %v1878
        %v2016 = vsub.f32 %v1645, %v1878
        %v2017 = vsub.f32 %v1456, %v1883
        %v2018 = vsub.f32 %v1458, %v1883
        %v2019 = vsub.f32 %v1649, %v1883
        %v2020 = vsub.f32 %v1651, %v1883
        %v2021 = vsub.f32 %v1460, %v1888
        %v2022 = vsub.f32 %v1462, %v1888
        %v2023 = vsub.f32 %v1653, %v1888
        %v2024 = vsub.f32 %v1655, %v1888
        %v2025 = vsub.f32 %v1466, %v1893
        %v2026 = vsub.f32 %v1468, %v1893
        %v2027 = vsub.f32 %v1659, %v1893
        %v2028 = vsub.f32 %v1661, %v1893
        %v2029 = vsub.f32 %v1470, %v1898
        %v2030 = vsub.f32 %v1472, %v1898
        %v2031 = vsub.f32 %v1663, %v1898
        %v2032 = vsub.f32 %v1665, %v1898
        %v2033 = vsub.f32 %v1476, %v1903
        %v2034 = vsub.f32 %v1478, %v1903
        %v2035 = vsub.f32 %v1669, %v1903
        %v2036 = vsub.f32 %v1671, %v1903
        %v2037 = vsub.f32 %v1480, %v1908
        %v2038 = vsub.f32 %v1482, %v1908
        %v2039 = vsub.f32 %v1673, %v1908
        %v2040 = vsub.f32 %v1675, %v1908
        %v2041 = vsub.f32 %v1486, %v1913
        %v2042 = vsub.f32 %v1488, %v1913
        %v2043 = vsub.f32 %v1679, %v1913
        %v2044 = vsub.f32 %v1681, %v1913
        %v2045 = vsub.f32 %v1490, %v1918
        %v2046 = vsub.f32 %v1492, %v1918
        %v2047 = vsub.f32 %v1683, %v1918
        %v2048 = vsub.f32 %v1685, %v1918
        %v2049 = vsub.f32 %v1496, %v1923
        %v2050 = vsub.f32 %v1498, %v1923
        %v2051 = vsub.f32 %v1689, %v1923
        %v2052 = vsub.f32 %v1691, %v1923
        %v2053 = vsub.f32 %v1500, %v1928
        %v2054 = vsub.f32 %v1502, %v1928
        %v2055 = vsub.f32 %v1693, %v1928
        %v2056 = vsub.f32 %v1695, %v1928
        %v2057 = vmul.f32 %v1929, 1.442695
        %v2058 = vpow.pop %v2057
        %v2059 = vmul.f32 %v1930, 1.442695
        %v2060 = vpow.pop %v2059
        %v2061 = vmul.f32 %v1931, 1.442695
        %v2062 = vpow.pop %v2061
        %v2063 = vmul.f32 %v1932, 1.442695
        %v2064 = vpow.pop %v2063
        %v2065 = vmul.f32 %v1933, 1.442695
        %v2066 = vpow.pop %v2065
        %v2067 = vmul.f32 %v1934, 1.442695
        %v2068 = vpow.pop %v2067
        %v2069 = vmul.f32 %v1935, 1.442695
        %v2070 = vpow.pop %v2069
        %v2071 = vmul.f32 %v1936, 1.442695
        %v2072 = vpow.pop %v2071
        %v2073 = vmul.f32 %v1937, 1.442695
        %v2074 = vpow.pop %v2073
        %v2075 = vmul.f32 %v1938, 1.442695
        %v2076 = vpow.pop %v2075
        %v2077 = vmul.f32 %v1939, 1.442695
        %v2078 = vpow.pop %v2077
        %v2079 = vmul.f32 %v1940, 1.442695
        %v2080 = vpow.pop %v2079
        %v2081 = vmul.f32 %v1941, 1.442695
        %v2082 = vpow.pop %v2081
        %v2083 = vmul.f32 %v1942, 1.442695
        %v2084 = vpow.pop %v2083
        %v2085 = vmul.f32 %v1943, 1.442695
        %v2086 = vpow.pop %v2085
        %v2087 = vmul.f32 %v1944, 1.442695
        %v2088 = vpow.pop %v2087
        %v2089 = vmul.f32 %v1945, 1.442695
        %v2090 = vpow.pop %v2089
        %v2091 = vmul.f32 %v1946, 1.442695
        %v2092 = vpow.pop %v2091
        %v2093 = vmul.f32 %v1947, 1.442695
        %v2094 = vpow.pop %v2093
        %v2095 = vmul.f32 %v1948, 1.442695
        %v2096 = vpow.pop %v2095
        %v2097 = vmul.f32 %v1949, 1.442695
        %v2098 = vpow.pop %v2097
        %v2099 = vmul.f32 %v1950, 1.442695
        %v2100 = vpow.pop %v2099
        %v2101 = vmul.f32 %v1951, 1.442695
        %v2102 = vpow.pop %v2101
        %v2103 = vmul.f32 %v1952, 1.442695
        %v2104 = vpow.pop %v2103
        %v2105 = vmul.f32 %v1953, 1.442695
        %v2106 = vpow.pop %v2105
        %v2107 = vmul.f32 %v1954, 1.442695
        %v2108 = vpow.pop %v2107
        %v2109 = vmul.f32 %v1955, 1.442695
        %v2110 = vpow.pop %v2109
        %v2111 = vmul.f32 %v1956, 1.442695
        %v2112 = vpow.pop %v2111
        %v2113 = vmul.f32 %v1957, 1.442695
        %v2114 = vpow.pop %v2113
        %v2115 = vmul.f32 %v1958, 1.442695
        %v2116 = vpow.pop %v2115
        %v2117 = vmul.f32 %v1959, 1.442695
        %v2118 = vpow.pop %v2117
        %v2119 = vmul.f32 %v1960, 1.442695
        %v2120 = vpow.pop %v2119
        %v2121 = vmul.f32 %v1961, 1.442695
        %v2122 = vpow.pop %v2121
        %v2123 = vmul.f32 %v1962, 1.442695
        %v2124 = vpow.pop %v2123
        %v2125 = vmul.f32 %v1963, 1.442695
        %v2126 = vpow.pop %v2125
        %v2127 = vmul.f32 %v1964, 1.442695
        %v2128 = vpow.pop %v2127
        %v2129 = vmul.f32 %v1965, 1.442695
        %v2130 = vpow.pop %v2129
        %v2131 = vmul.f32 %v1966, 1.442695
        %v2132 = vpow.pop %v2131
        %v2133 = vmul.f32 %v1967, 1.442695
        %v2134 = vpow.pop %v2133
        %v2135 = vmul.f32 %v1968, 1.442695
        %v2136 = vpow.pop %v2135
        %v2137 = vmul.f32 %v1969, 1.442695
        %v2138 = vpow.pop %v2137
        %v2139 = vmul.f32 %v1970, 1.442695
        %v2140 = vpow.pop %v2139
        %v2141 = vmul.f32 %v1971, 1.442695
        %v2142 = vpow.pop %v2141
        %v2143 = vmul.f32 %v1972, 1.442695
        %v2144 = vpow.pop %v2143
        %v2145 = vmul.f32 %v1973, 1.442695
        %v2146 = vpow.pop %v2145
        %v2147 = vmul.f32 %v1974, 1.442695
        %v2148 = vpow.pop %v2147
        %v2149 = vmul.f32 %v1975, 1.442695
        %v2150 = vpow.pop %v2149
        %v2151 = vmul.f32 %v1976, 1.442695
        %v2152 = vpow.pop %v2151
        %v2153 = vmul.f32 %v1977, 1.442695
        %v2154 = vpow.pop %v2153
        %v2155 = vmul.f32 %v1978, 1.442695
        %v2156 = vpow.pop %v2155
        %v2157 = vmul.f32 %v1979, 1.442695
        %v2158 = vpow.pop %v2157
        %v2159 = vmul.f32 %v1980, 1.442695
        %v2160 = vpow.pop %v2159
        %v2161 = vmul.f32 %v1981, 1.442695
        %v2162 = vpow.pop %v2161
        %v2163 = vmul.f32 %v1982, 1.442695
        %v2164 = vpow.pop %v2163
        %v2165 = vmul.f32 %v1983, 1.442695
        %v2166 = vpow.pop %v2165
        %v2167 = vmul.f32 %v1984, 1.442695
        %v2168 = vpow.pop %v2167
        %v2169 = vmul.f32 %v1985, 1.442695
        %v2170 = vpow.pop %v2169
        %v2171 = vmul.f32 %v1986, 1.442695
        %v2172 = vpow.pop %v2171
        %v2173 = vmul.f32 %v1987, 1.442695
        %v2174 = vpow.pop %v2173
        %v2175 = vmul.f32 %v1988, 1.442695
        %v2176 = vpow.pop %v2175
        %v2177 = vmul.f32 %v1989, 1.442695
        %v2178 = vpow.pop %v2177
        %v2179 = vmul.f32 %v1990, 1.442695
        %v2180 = vpow.pop %v2179
        %v2181 = vmul.f32 %v1991, 1.442695
        %v2182 = vpow.pop %v2181
        %v2183 = vmul.f32 %v1992, 1.442695
        %v2184 = vpow.pop %v2183
        %v2185 = vmul.f32 %v1993, 1.442695
        %v2186 = vpow.pop %v2185
        %v2187 = vmul.f32 %v1994, 1.442695
        %v2188 = vpow.pop %v2187
        %v2189 = vmul.f32 %v1995, 1.442695
        %v2190 = vpow.pop %v2189
        %v2191 = vmul.f32 %v1996, 1.442695
        %v2192 = vpow.pop %v2191
        %v2193 = vmul.f32 %v1997, 1.442695
        %v2194 = vpow.pop %v2193
        %v2195 = vmul.f32 %v1998, 1.442695
        %v2196 = vpow.pop %v2195
        %v2197 = vmul.f32 %v1999, 1.442695
        %v2198 = vpow.pop %v2197
        %v2199 = vmul.f32 %v2000, 1.442695
        %v2200 = vpow.pop %v2199
        %v2201 = vmul.f32 %v2001, 1.442695
        %v2202 = vpow.pop %v2201
        %v2203 = vmul.f32 %v2002, 1.442695
        %v2204 = vpow.pop %v2203
        %v2205 = vmul.f32 %v2003, 1.442695
        %v2206 = vpow.pop %v2205
        %v2207 = vmul.f32 %v2004, 1.442695
        %v2208 = vpow.pop %v2207
        %v2209 = vmul.f32 %v2005, 1.442695
        %v2210 = vpow.pop %v2209
        %v2211 = vmul.f32 %v2006, 1.442695
        %v2212 = vpow.pop %v2211
        %v2213 = vmul.f32 %v2007, 1.442695
        %v2214 = vpow.pop %v2213
        %v2215 = vmul.f32 %v2008, 1.442695
        %v2216 = vpow.pop %v2215
        %v2217 = vmul.f32 %v2009, 1.442695
        %v2218 = vpow.pop %v2217
        %v2219 = vmul.f32 %v2010, 1.442695
        %v2220 = vpow.pop %v2219
        %v2221 = vmul.f32 %v2011, 1.442695
        %v2222 = vpow.pop %v2221
        %v2223 = vmul.f32 %v2012, 1.442695
        %v2224 = vpow.pop %v2223
        %v2225 = vmul.f32 %v2013, 1.442695
        %v2226 = vpow.pop %v2225
        %v2227 = vmul.f32 %v2014, 1.442695
        %v2228 = vpow.pop %v2227
        %v2229 = vmul.f32 %v2015, 1.442695
        %v2230 = vpow.pop %v2229
        %v2231 = vmul.f32 %v2016, 1.442695
        %v2232 = vpow.pop %v2231
        %v2233 = vmul.f32 %v2017, 1.442695
        %v2234 = vpow.pop %v2233
        %v2235 = vmul.f32 %v2018, 1.442695
        %v2236 = vpow.pop %v2235
        %v2237 = vmul.f32 %v2019, 1.442695
        %v2238 = vpow.pop %v2237
        %v2239 = vmul.f32 %v2020, 1.442695
        %v2240 = vpow.pop %v2239
        %v2241 = vmul.f32 %v2021, 1.442695
        %v2242 = vpow.pop %v2241
        %v2243 = vmul.f32 %v2022, 1.442695
        %v2244 = vpow.pop %v2243
        %v2245 = vmul.f32 %v2023, 1.442695
        %v2246 = vpow.pop %v2245
        %v2247 = vmul.f32 %v2024, 1.442695
        %v2248 = vpow.pop %v2247
        %v2249 = vmul.f32 %v2025, 1.442695
        %v2250 = vpow.pop %v2249
        %v2251 = vmul.f32 %v2026, 1.442695
        %v2252 = vpow.pop %v2251
        %v2253 = vmul.f32 %v2027, 1.442695
        %v2254 = vpow.pop %v2253
        %v2255 = vmul.f32 %v2028, 1.442695
        %v2256 = vpow.pop %v2255
        %v2257 = vmul.f32 %v2029, 1.442695
        %v2258 = vpow.pop %v2257
        %v2259 = vmul.f32 %v2030, 1.442695
        %v2260 = vpow.pop %v2259
        %v2261 = vmul.f32 %v2031, 1.442695
        %v2262 = vpow.pop %v2261
        %v2263 = vmul.f32 %v2032, 1.442695
        %v2264 = vpow.pop %v2263
        %v2265 = vmul.f32 %v2033, 1.442695
        %v2266 = vpow.pop %v2265
        %v2267 = vmul.f32 %v2034, 1.442695
        %v2268 = vpow.pop %v2267
        %v2269 = vmul.f32 %v2035, 1.442695
        %v2270 = vpow.pop %v2269
        %v2271 = vmul.f32 %v2036, 1.442695
        %v2272 = vpow.pop %v2271
        %v2273 = vmul.f32 %v2037, 1.442695
        %v2274 = vpow.pop %v2273
        %v2275 = vmul.f32 %v2038, 1.442695
        %v2276 = vpow.pop %v2275
        %v2277 = vmul.f32 %v2039, 1.442695
        %v2278 = vpow.pop %v2277
        %v2279 = vmul.f32 %v2040, 1.442695
        %v2280 = vpow.pop %v2279
        %v2281 = vmul.f32 %v2041, 1.442695
        %v2282 = vpow.pop %v2281
        %v2283 = vmul.f32 %v2042, 1.442695
        %v2284 = vpow.pop %v2283
        %v2285 = vmul.f32 %v2043, 1.442695
        %v2286 = vpow.pop %v2285
        %v2287 = vmul.f32 %v2044, 1.442695
        %v2288 = vpow.pop %v2287
        %v2289 = vmul.f32 %v2045, 1.442695
        %v2290 = vpow.pop %v2289
        %v2291 = vmul.f32 %v2046, 1.442695
        %v2292 = vpow.pop %v2291
        %v2293 = vmul.f32 %v2047, 1.442695
        %v2294 = vpow.pop %v2293
        %v2295 = vmul.f32 %v2048, 1.442695
        %v2296 = vpow.pop %v2295
        %v2297 = vmul.f32 %v2049, 1.442695
        %v2298 = vpow.pop %v2297
        %v2299 = vmul.f32 %v2050, 1.442695
        %v2300 = vpow.pop %v2299
        %v2301 = vmul.f32 %v2051, 1.442695
        %v2302 = vpow.pop %v2301
        %v2303 = vmul.f32 %v2052, 1.442695
        %v2304 = vpow.pop %v2303
        %v2305 = vmul.f32 %v2053, 1.442695
        %v2306 = vpow.pop %v2305
        %v2307 = vmul.f32 %v2054, 1.442695
        %v2308 = vpow.pop %v2307
        %v2309 = vmul.f32 %v2055, 1.442695
        %v2310 = vpow.pop %v2309
        %v2311 = vmul.f32 %v2056, 1.442695
        %v2312 = vpow.pop %v2311
        %v2313 = vadd.f32 %v2058, %v2060
        %v2314 = vadd.f32 %v2313, %v2062
        %v2315 = vadd.f32 %v2314, %v2064
        %2316 = vadd.xlane.f32.xlu0 %v2315
        %v2317 = vpop.xlane.xlu0 %2316
        %v2318 = vadd.f32 %v2066, %v2068
        %v2319 = vadd.f32 %v2318, %v2070
        %v2320 = vadd.f32 %v2319, %v2072
        %2321 = vadd.xlane.f32.xlu0 %v2320
        %v2322 = vpop.xlane.xlu0 %2321
        %v2323 = vadd.f32 %v2074, %v2076
        %v2324 = vadd.f32 %v2323, %v2078
        %v2325 = vadd.f32 %v2324, %v2080
        %2326 = vadd.xlane.f32.xlu0 %v2325
        %v2327 = vpop.xlane.xlu0 %2326
        %v2328 = vadd.f32 %v2082, %v2084
        %v2329 = vadd.f32 %v2328, %v2086
        %v2330 = vadd.f32 %v2329, %v2088
        %2331 = vadd.xlane.f32.xlu0 %v2330
        %v2332 = vpop.xlane.xlu0 %2331
        %v2333 = vadd.f32 %v2090, %v2092
        %v2334 = vadd.f32 %v2333, %v2094
        %v2335 = vadd.f32 %v2334, %v2096
        %2336 = vadd.xlane.f32.xlu0 %v2335
        %v2337 = vpop.xlane.xlu0 %2336
        %v2338 = vadd.f32 %v2098, %v2100
        %v2339 = vadd.f32 %v2338, %v2102
        %v2340 = vadd.f32 %v2339, %v2104
        %2341 = vadd.xlane.f32.xlu0 %v2340
        %v2342 = vpop.xlane.xlu0 %2341
        %v2343 = vadd.f32 %v2106, %v2108
        %v2344 = vadd.f32 %v2343, %v2110
        %v2345 = vadd.f32 %v2344, %v2112
        %2346 = vadd.xlane.f32.xlu0 %v2345
        %v2347 = vpop.xlane.xlu0 %2346
        %v2348 = vadd.f32 %v2114, %v2116
        %v2349 = vadd.f32 %v2348, %v2118
        %v2350 = vadd.f32 %v2349, %v2120
        %2351 = vadd.xlane.f32.xlu0 %v2350
        %v2352 = vpop.xlane.xlu0 %2351
        %v2353 = vadd.f32 %v2122, %v2124
        %v2354 = vadd.f32 %v2353, %v2126
        %v2355 = vadd.f32 %v2354, %v2128
        %2356 = vadd.xlane.f32.xlu0 %v2355
        %v2357 = vpop.xlane.xlu0 %2356
        %v2358 = vadd.f32 %v2130, %v2132
        %v2359 = vadd.f32 %v2358, %v2134
        %v2360 = vadd.f32 %v2359, %v2136
        %2361 = vadd.xlane.f32.xlu0 %v2360
        %v2362 = vpop.xlane.xlu0 %2361
        %v2363 = vadd.f32 %v2138, %v2140
        %v2364 = vadd.f32 %v2363, %v2142
        %v2365 = vadd.f32 %v2364, %v2144
        %2366 = vadd.xlane.f32.xlu0 %v2365
        %v2367 = vpop.xlane.xlu0 %2366
        %v2368 = vadd.f32 %v2146, %v2148
        %v2369 = vadd.f32 %v2368, %v2150
        %v2370 = vadd.f32 %v2369, %v2152
        %2371 = vadd.xlane.f32.xlu0 %v2370
        %v2372 = vpop.xlane.xlu0 %2371
        %v2373 = vadd.f32 %v2154, %v2156
        %v2374 = vadd.f32 %v2373, %v2158
        %v2375 = vadd.f32 %v2374, %v2160
        %2376 = vadd.xlane.f32.xlu0 %v2375
        %v2377 = vpop.xlane.xlu0 %2376
        %v2378 = vadd.f32 %v2162, %v2164
        %v2379 = vadd.f32 %v2378, %v2166
        %v2380 = vadd.f32 %v2379, %v2168
        %2381 = vadd.xlane.f32.xlu0 %v2380
        %v2382 = vpop.xlane.xlu0 %2381
        %v2383 = vadd.f32 %v2170, %v2172
        %v2384 = vadd.f32 %v2383, %v2174
        %v2385 = vadd.f32 %v2384, %v2176
        %2386 = vadd.xlane.f32.xlu0 %v2385
        %v2387 = vpop.xlane.xlu0 %2386
        %v2388 = vadd.f32 %v2178, %v2180
        %v2389 = vadd.f32 %v2388, %v2182
        %v2390 = vadd.f32 %v2389, %v2184
        %2391 = vadd.xlane.f32.xlu0 %v2390
        %v2392 = vpop.xlane.xlu0 %2391
        %v2393 = vadd.f32 %v2186, %v2188
        %v2394 = vadd.f32 %v2393, %v2190
        %v2395 = vadd.f32 %v2394, %v2192
        %2396 = vadd.xlane.f32.xlu0 %v2395
        %v2397 = vpop.xlane.xlu0 %2396
        %v2398 = vadd.f32 %v2194, %v2196
        %v2399 = vadd.f32 %v2398, %v2198
        %v2400 = vadd.f32 %v2399, %v2200
        %2401 = vadd.xlane.f32.xlu0 %v2400
        %v2402 = vpop.xlane.xlu0 %2401
        %v2403 = vadd.f32 %v2202, %v2204
        %v2404 = vadd.f32 %v2403, %v2206
        %v2405 = vadd.f32 %v2404, %v2208
        %2406 = vadd.xlane.f32.xlu0 %v2405
        %v2407 = vpop.xlane.xlu0 %2406
        %v2408 = vadd.f32 %v2210, %v2212
        %v2409 = vadd.f32 %v2408, %v2214
        %v2410 = vadd.f32 %v2409, %v2216
        %2411 = vadd.xlane.f32.xlu0 %v2410
        %v2412 = vpop.xlane.xlu0 %2411
        %v2413 = vadd.f32 %v2218, %v2220
        %v2414 = vadd.f32 %v2413, %v2222
        %v2415 = vadd.f32 %v2414, %v2224
        %2416 = vadd.xlane.f32.xlu0 %v2415
        %v2417 = vpop.xlane.xlu0 %2416
        %v2418 = vadd.f32 %v2226, %v2228
        %v2419 = vadd.f32 %v2418, %v2230
        %v2420 = vadd.f32 %v2419, %v2232
        %2421 = vadd.xlane.f32.xlu0 %v2420
        %v2422 = vpop.xlane.xlu0 %2421
        %v2423 = vadd.f32 %v2234, %v2236
        %v2424 = vadd.f32 %v2423, %v2238
        %v2425 = vadd.f32 %v2424, %v2240
        %2426 = vadd.xlane.f32.xlu0 %v2425
        %v2427 = vpop.xlane.xlu0 %2426
        %v2428 = vadd.f32 %v2242, %v2244
        %v2429 = vadd.f32 %v2428, %v2246
        %v2430 = vadd.f32 %v2429, %v2248
        %2431 = vadd.xlane.f32.xlu0 %v2430
        %v2432 = vpop.xlane.xlu0 %2431
        %v2433 = vadd.f32 %v2250, %v2252
        %v2434 = vadd.f32 %v2433, %v2254
        %v2435 = vadd.f32 %v2434, %v2256
        %2436 = vadd.xlane.f32.xlu0 %v2435
        %v2437 = vpop.xlane.xlu0 %2436
        %v2438 = vadd.f32 %v2258, %v2260
        %v2439 = vadd.f32 %v2438, %v2262
        %v2440 = vadd.f32 %v2439, %v2264
        %2441 = vadd.xlane.f32.xlu0 %v2440
        %v2442 = vpop.xlane.xlu0 %2441
        %v2443 = vadd.f32 %v2266, %v2268
        %v2444 = vadd.f32 %v2443, %v2270
        %v2445 = vadd.f32 %v2444, %v2272
        %2446 = vadd.xlane.f32.xlu0 %v2445
        %v2447 = vpop.xlane.xlu0 %2446
        %v2448 = vadd.f32 %v2274, %v2276
        %v2449 = vadd.f32 %v2448, %v2278
        %v2450 = vadd.f32 %v2449, %v2280
        %2451 = vadd.xlane.f32.xlu0 %v2450
        %v2452 = vpop.xlane.xlu0 %2451
        %v2453 = vadd.f32 %v2282, %v2284
        %v2454 = vadd.f32 %v2453, %v2286
        %v2455 = vadd.f32 %v2454, %v2288
        %2456 = vadd.xlane.f32.xlu0 %v2455
        %v2457 = vpop.xlane.xlu0 %2456
        %v2458 = vadd.f32 %v2290, %v2292
        %v2459 = vadd.f32 %v2458, %v2294
        %v2460 = vadd.f32 %v2459, %v2296
        %2461 = vadd.xlane.f32.xlu0 %v2460
        %v2462 = vpop.xlane.xlu0 %2461
        %v2463 = vadd.f32 %v2298, %v2300
        %v2464 = vadd.f32 %v2463, %v2302
        %v2465 = vadd.f32 %v2464, %v2304
        %2466 = vadd.xlane.f32.xlu0 %v2465
        %v2467 = vpop.xlane.xlu0 %2466
        %v2468 = vadd.f32 %v2306, %v2308
        %v2469 = vadd.f32 %v2468, %v2310
        %v2470 = vadd.f32 %v2469, %v2312
        %2471 = vadd.xlane.f32.xlu0 %v2470
        %v2472 = vpop.xlane.xlu0 %2471
        %v2473 = vlog2.pop %v2317
        %v2474 = vmul.f32 %v2473, 0.6931472
        %v2475 = vlog2.pop %v2322
        %v2476 = vmul.f32 %v2475, 0.6931472
        %v2477 = vlog2.pop %v2327
        %v2478 = vmul.f32 %v2477, 0.6931472
        %v2479 = vlog2.pop %v2332
        %v2480 = vmul.f32 %v2479, 0.6931472
        %v2481 = vlog2.pop %v2337
        %v2482 = vmul.f32 %v2481, 0.6931472
        %v2483 = vlog2.pop %v2342
        %v2484 = vmul.f32 %v2483, 0.6931472
        %v2485 = vlog2.pop %v2347
        %v2486 = vmul.f32 %v2485, 0.6931472
        %v2487 = vlog2.pop %v2352
        %v2488 = vmul.f32 %v2487, 0.6931472
        %v2489 = vlog2.pop %v2357
        %v2490 = vmul.f32 %v2489, 0.6931472
        %v2491 = vlog2.pop %v2362
        %v2492 = vmul.f32 %v2491, 0.6931472
        %v2493 = vlog2.pop %v2367
        %v2494 = vmul.f32 %v2493, 0.6931472
        %v2495 = vlog2.pop %v2372
        %v2496 = vmul.f32 %v2495, 0.6931472
        %v2497 = vlog2.pop %v2377
        %v2498 = vmul.f32 %v2497, 0.6931472
        %v2499 = vlog2.pop %v2382
        %v2500 = vmul.f32 %v2499, 0.6931472
        %v2501 = vlog2.pop %v2387
        %v2502 = vmul.f32 %v2501, 0.6931472
        %v2503 = vlog2.pop %v2392
        %v2504 = vmul.f32 %v2503, 0.6931472
        %v2505 = vlog2.pop %v2397
        %v2506 = vmul.f32 %v2505, 0.6931472
        %v2507 = vlog2.pop %v2402
        %v2508 = vmul.f32 %v2507, 0.6931472
        %v2509 = vlog2.pop %v2407
        %v2510 = vmul.f32 %v2509, 0.6931472
        %v2511 = vlog2.pop %v2412
        %v2512 = vmul.f32 %v2511, 0.6931472
        %v2513 = vlog2.pop %v2417
        %v2514 = vmul.f32 %v2513, 0.6931472
        %v2515 = vlog2.pop %v2422
        %v2516 = vmul.f32 %v2515, 0.6931472
        %v2517 = vlog2.pop %v2427
        %v2518 = vmul.f32 %v2517, 0.6931472
        %v2519 = vlog2.pop %v2432
        %v2520 = vmul.f32 %v2519, 0.6931472
        %v2521 = vlog2.pop %v2437
        %v2522 = vmul.f32 %v2521, 0.6931472
        %v2523 = vlog2.pop %v2442
        %v2524 = vmul.f32 %v2523, 0.6931472
        %v2525 = vlog2.pop %v2447
        %v2526 = vmul.f32 %v2525, 0.6931472
        %v2527 = vlog2.pop %v2452
        %v2528 = vmul.f32 %v2527, 0.6931472
        %v2529 = vlog2.pop %v2457
        %v2530 = vmul.f32 %v2529, 0.6931472
        %v2531 = vlog2.pop %v2462
        %v2532 = vmul.f32 %v2531, 0.6931472
        %v2533 = vlog2.pop %v2467
        %v2534 = vmul.f32 %v2533, 0.6931472
        %v2535 = vlog2.pop %v2472
        %v2536 = vmul.f32 %v2535, 0.6931472
        %v2537 = vadd.f32 %v1773, %v2474
        %v2538 = vadd.f32 %v1778, %v2476
        %v2539 = vadd.f32 %v1783, %v2478
        %v2540 = vadd.f32 %v1788, %v2480
        %v2541 = vadd.f32 %v1793, %v2482
        %v2542 = vadd.f32 %v1798, %v2484
        %v2543 = vadd.f32 %v1803, %v2486
        %v2544 = vadd.f32 %v1808, %v2488
        %v2545 = vadd.f32 %v1813, %v2490
        %v2546 = vadd.f32 %v1818, %v2492
        %v2547 = vadd.f32 %v1823, %v2494
        %v2548 = vadd.f32 %v1828, %v2496
        %v2549 = vadd.f32 %v1833, %v2498
        %v2550 = vadd.f32 %v1838, %v2500
        %v2551 = vadd.f32 %v1843, %v2502
        %v2552 = vadd.f32 %v1848, %v2504
        %v2553 = vadd.f32 %v1853, %v2506
        %v2554 = vadd.f32 %v1858, %v2508
        %v2555 = vadd.f32 %v1863, %v2510
        %v2556 = vadd.f32 %v1868, %v2512
        %v2557 = vadd.f32 %v1873, %v2514
        %v2558 = vadd.f32 %v1878, %v2516
        %v2559 = vadd.f32 %v1883, %v2518
        %v2560 = vadd.f32 %v1888, %v2520
        %v2561 = vadd.f32 %v1893, %v2522
        %v2562 = vadd.f32 %v1898, %v2524
        %v2563 = vadd.f32 %v1903, %v2526
        %v2564 = vadd.f32 %v1908, %v2528
        %v2565 = vadd.f32 %v1913, %v2530
        %v2566 = vadd.f32 %v1918, %v2532
        %v2567 = vadd.f32 %v1923, %v2534
        %v2568 = vadd.f32 %v1928, %v2536
        %v2569 = vld [vmem:[#allocation7] sm:$0x1]
        %vm2570 = vcmask 7168
        %v2571 = vsel %vm2570, %v2537, 0.0
        %v2572 = vsel %vm2570, %v2538, 0.0
        %v2573 = vadd.f32 %v2571, %v2572
        %v2574 = vsel %vm2570, %v2539, 0.0
        %v2575 = vadd.f32 %v2573, %v2574
        %v2576 = vsel %vm2570, %v2540, 0.0
        %v2577 = vadd.f32 %v2575, %v2576
        %v2578 = vsel %vm2570, %v2541, 0.0
        %v2579 = vadd.f32 %v2577, %v2578
        %v2580 = vsel %vm2570, %v2542, 0.0
        %v2581 = vadd.f32 %v2579, %v2580
        %v2582 = vsel %vm2570, %v2543, 0.0
        %v2583 = vadd.f32 %v2581, %v2582
        %v2584 = vsel %vm2570, %v2544, 0.0
        %v2585 = vadd.f32 %v2583, %v2584
        %v2586 = vsel %vm2570, %v2545, 0.0
        %v2587 = vadd.f32 %v2585, %v2586
        %v2588 = vsel %vm2570, %v2546, 0.0
        %v2589 = vadd.f32 %v2587, %v2588
        %v2590 = vsel %vm2570, %v2547, 0.0
        %v2591 = vadd.f32 %v2589, %v2590
        %v2592 = vsel %vm2570, %v2548, 0.0
        %v2593 = vadd.f32 %v2591, %v2592
        %v2594 = vsel %vm2570, %v2549, 0.0
        %v2595 = vadd.f32 %v2593, %v2594
        %v2596 = vsel %vm2570, %v2550, 0.0
        %v2597 = vadd.f32 %v2595, %v2596
        %v2598 = vsel %vm2570, %v2551, 0.0
        %v2599 = vadd.f32 %v2597, %v2598
        %v2600 = vsel %vm2570, %v2552, 0.0
        %v2601 = vadd.f32 %v2599, %v2600
        %v2602 = vsel %vm2570, %v2553, 0.0
        %v2603 = vadd.f32 %v2601, %v2602
        %v2604 = vsel %vm2570, %v2554, 0.0
        %v2605 = vadd.f32 %v2603, %v2604
        %v2606 = vsel %vm2570, %v2555, 0.0
        %v2607 = vadd.f32 %v2605, %v2606
        %v2608 = vsel %vm2570, %v2556, 0.0
        %v2609 = vadd.f32 %v2607, %v2608
        %v2610 = vsel %vm2570, %v2557, 0.0
        %v2611 = vadd.f32 %v2609, %v2610
        %v2612 = vsel %vm2570, %v2558, 0.0
        %v2613 = vadd.f32 %v2611, %v2612
        %v2614 = vsel %vm2570, %v2559, 0.0
        %v2615 = vadd.f32 %v2613, %v2614
        %v2616 = vsel %vm2570, %v2560, 0.0
        %v2617 = vadd.f32 %v2615, %v2616
        %v2618 = vsel %vm2570, %v2561, 0.0
        %v2619 = vadd.f32 %v2617, %v2618
        %v2620 = vsel %vm2570, %v2562, 0.0
        %v2621 = vadd.f32 %v2619, %v2620
        %v2622 = vsel %vm2570, %v2563, 0.0
        %v2623 = vadd.f32 %v2621, %v2622
        %v2624 = vsel %vm2570, %v2564, 0.0
        %v2625 = vadd.f32 %v2623, %v2624
        %v2626 = vsel %vm2570, %v2565, 0.0
        %v2627 = vadd.f32 %v2625, %v2626
        %v2628 = vsel %vm2570, %v2566, 0.0
        %v2629 = vadd.f32 %v2627, %v2628
        %v2630 = vsel %vm2570, %v2567, 0.0
        %v2631 = vadd.f32 %v2629, %v2630
        %v2632 = vsel %vm2570, %v2568, 0.0
        %v2633 = vadd.f32 %v2631, %v2632
        %2634 = vadd.xlane.f32.xlu0 %v2633
        %v2635 = vpop.xlane.xlu0 %2634
        %v2636 = vrot.slane %v2635, 4
        %v2637 = vadd.f32 %v2635, %v2636
        %v2638 = vrot.slane %v2637, 2
        %v2639 = vadd.f32 %v2637, %v2638
        %v2640 = vrot.slane %v2639, 1
        %v2641 = vadd.f32 %v2639, %v2640
        %s2642 = vtos %v2641
        %v2643 = vstv %s2642
        %v2644 = vadd.f32 %v2569, %v2643
        %vm2645 = vcmask 0
        %2646 = vst.msk [vmem:[#allocation7] sm:$0x1] %vm2645, %v2644
        %vm2647 = vcmp.eq.s32.totalorder %v1765, %v1732
        %vm2648 = vcmp.eq.s32.totalorder %v1766, %v1732
        %vm2649 = vcmp.eq.s32.totalorder %v1767, %v1732
        %vm2650 = vcmp.eq.s32.totalorder %v1768, %v1732
        %vm2651 = vcmp.eq.s32.totalorder %v1765, %v1733
        %vm2652 = vcmp.eq.s32.totalorder %v1766, %v1733
        %vm2653 = vcmp.eq.s32.totalorder %v1767, %v1733
        %vm2654 = vcmp.eq.s32.totalorder %v1768, %v1733
        %vm2655 = vcmp.eq.s32.totalorder %v1765, %v1734
        %vm2656 = vcmp.eq.s32.totalorder %v1766, %v1734
        %vm2657 = vcmp.eq.s32.totalorder %v1767, %v1734
        %vm2658 = vcmp.eq.s32.totalorder %v1768, %v1734
        %vm2659 = vcmp.eq.s32.totalorder %v1765, %v1735
        %vm2660 = vcmp.eq.s32.totalorder %v1766, %v1735
        %vm2661 = vcmp.eq.s32.totalorder %v1767, %v1735
        %vm2662 = vcmp.eq.s32.totalorder %v1768, %v1735
        %vm2663 = vcmp.eq.s32.totalorder %v1765, %v1736
        %vm2664 = vcmp.eq.s32.totalorder %v1766, %v1736
        %vm2665 = vcmp.eq.s32.totalorder %v1767, %v1736
        %vm2666 = vcmp.eq.s32.totalorder %v1768, %v1736
        %vm2667 = vcmp.eq.s32.totalorder %v1765, %v1737
        %vm2668 = vcmp.eq.s32.totalorder %v1766, %v1737
        %vm2669 = vcmp.eq.s32.totalorder %v1767, %v1737
        %vm2670 = vcmp.eq.s32.totalorder %v1768, %v1737
        %vm2671 = vcmp.eq.s32.totalorder %v1765, %v1738
        %vm2672 = vcmp.eq.s32.totalorder %v1766, %v1738
        %vm2673 = vcmp.eq.s32.totalorder %v1767, %v1738
        %vm2674 = vcmp.eq.s32.totalorder %v1768, %v1738
        %vm2675 = vcmp.eq.s32.totalorder %v1765, %v1739
        %vm2676 = vcmp.eq.s32.totalorder %v1766, %v1739
        %vm2677 = vcmp.eq.s32.totalorder %v1767, %v1739
        %vm2678 = vcmp.eq.s32.totalorder %v1768, %v1739
        %vm2679 = vcmp.eq.s32.totalorder %v1765, %v1740
        %vm2680 = vcmp.eq.s32.totalorder %v1766, %v1740
        %vm2681 = vcmp.eq.s32.totalorder %v1767, %v1740
        %vm2682 = vcmp.eq.s32.totalorder %v1768, %v1740
        %vm2683 = vcmp.eq.s32.totalorder %v1765, %v1741
        %vm2684 = vcmp.eq.s32.totalorder %v1766, %v1741
        %vm2685 = vcmp.eq.s32.totalorder %v1767, %v1741
        %vm2686 = vcmp.eq.s32.totalorder %v1768, %v1741
        %vm2687 = vcmp.eq.s32.totalorder %v1765, %v1742
        %vm2688 = vcmp.eq.s32.totalorder %v1766, %v1742
        %vm2689 = vcmp.eq.s32.totalorder %v1767, %v1742
        %vm2690 = vcmp.eq.s32.totalorder %v1768, %v1742
        %vm2691 = vcmp.eq.s32.totalorder %v1765, %v1743
        %vm2692 = vcmp.eq.s32.totalorder %v1766, %v1743
        %vm2693 = vcmp.eq.s32.totalorder %v1767, %v1743
        %vm2694 = vcmp.eq.s32.totalorder %v1768, %v1743
        %vm2695 = vcmp.eq.s32.totalorder %v1765, %v1744
        %vm2696 = vcmp.eq.s32.totalorder %v1766, %v1744
        %vm2697 = vcmp.eq.s32.totalorder %v1767, %v1744
        %vm2698 = vcmp.eq.s32.totalorder %v1768, %v1744
        %vm2699 = vcmp.eq.s32.totalorder %v1765, %v1745
        %vm2700 = vcmp.eq.s32.totalorder %v1766, %v1745
        %vm2701 = vcmp.eq.s32.totalorder %v1767, %v1745
        %vm2702 = vcmp.eq.s32.totalorder %v1768, %v1745
        %vm2703 = vcmp.eq.s32.totalorder %v1765, %v1746
        %vm2704 = vcmp.eq.s32.totalorder %v1766, %v1746
        %vm2705 = vcmp.eq.s32.totalorder %v1767, %v1746
        %vm2706 = vcmp.eq.s32.totalorder %v1768, %v1746
        %vm2707 = vcmp.eq.s32.totalorder %v1765, %v1747
        %vm2708 = vcmp.eq.s32.totalorder %v1766, %v1747
        %vm2709 = vcmp.eq.s32.totalorder %v1767, %v1747
        %vm2710 = vcmp.eq.s32.totalorder %v1768, %v1747
        %vm2711 = vcmp.eq.s32.totalorder %v1765, %v1748
        %vm2712 = vcmp.eq.s32.totalorder %v1766, %v1748
        %vm2713 = vcmp.eq.s32.totalorder %v1767, %v1748
        %vm2714 = vcmp.eq.s32.totalorder %v1768, %v1748
        %vm2715 = vcmp.eq.s32.totalorder %v1765, %v1749
        %vm2716 = vcmp.eq.s32.totalorder %v1766, %v1749
        %vm2717 = vcmp.eq.s32.totalorder %v1767, %v1749
        %vm2718 = vcmp.eq.s32.totalorder %v1768, %v1749
        %vm2719 = vcmp.eq.s32.totalorder %v1765, %v1750
        %vm2720 = vcmp.eq.s32.totalorder %v1766, %v1750
        %vm2721 = vcmp.eq.s32.totalorder %v1767, %v1750
        %vm2722 = vcmp.eq.s32.totalorder %v1768, %v1750
        %vm2723 = vcmp.eq.s32.totalorder %v1765, %v1751
        %vm2724 = vcmp.eq.s32.totalorder %v1766, %v1751
        %vm2725 = vcmp.eq.s32.totalorder %v1767, %v1751
        %vm2726 = vcmp.eq.s32.totalorder %v1768, %v1751
        %vm2727 = vcmp.eq.s32.totalorder %v1765, %v1752
        %vm2728 = vcmp.eq.s32.totalorder %v1766, %v1752
        %vm2729 = vcmp.eq.s32.totalorder %v1767, %v1752
        %vm2730 = vcmp.eq.s32.totalorder %v1768, %v1752
        %vm2731 = vcmp.eq.s32.totalorder %v1765, %v1753
        %vm2732 = vcmp.eq.s32.totalorder %v1766, %v1753
        %vm2733 = vcmp.eq.s32.totalorder %v1767, %v1753
        %vm2734 = vcmp.eq.s32.totalorder %v1768, %v1753
        %vm2735 = vcmp.eq.s32.totalorder %v1765, %v1754
        %vm2736 = vcmp.eq.s32.totalorder %v1766, %v1754
        %vm2737 = vcmp.eq.s32.totalorder %v1767, %v1754
        %vm2738 = vcmp.eq.s32.totalorder %v1768, %v1754
        %vm2739 = vcmp.eq.s32.totalorder %v1765, %v1755
        %vm2740 = vcmp.eq.s32.totalorder %v1766, %v1755
        %vm2741 = vcmp.eq.s32.totalorder %v1767, %v1755
        %vm2742 = vcmp.eq.s32.totalorder %v1768, %v1755
        %vm2743 = vcmp.eq.s32.totalorder %v1765, %v1756
        %vm2744 = vcmp.eq.s32.totalorder %v1766, %v1756
        %vm2745 = vcmp.eq.s32.totalorder %v1767, %v1756
        %vm2746 = vcmp.eq.s32.totalorder %v1768, %v1756
        %vm2747 = vcmp.eq.s32.totalorder %v1765, %v1757
        %vm2748 = vcmp.eq.s32.totalorder %v1766, %v1757
        %vm2749 = vcmp.eq.s32.totalorder %v1767, %v1757
        %vm2750 = vcmp.eq.s32.totalorder %v1768, %v1757
        %vm2751 = vcmp.eq.s32.totalorder %v1765, %v1758
        %vm2752 = vcmp.eq.s32.totalorder %v1766, %v1758
        %vm2753 = vcmp.eq.s32.totalorder %v1767, %v1758
        %vm2754 = vcmp.eq.s32.totalorder %v1768, %v1758
        %vm2755 = vcmp.eq.s32.totalorder %v1765, %v1759
        %vm2756 = vcmp.eq.s32.totalorder %v1766, %v1759
        %vm2757 = vcmp.eq.s32.totalorder %v1767, %v1759
        %vm2758 = vcmp.eq.s32.totalorder %v1768, %v1759
        %vm2759 = vcmp.eq.s32.totalorder %v1765, %v1760
        %vm2760 = vcmp.eq.s32.totalorder %v1766, %v1760
        %vm2761 = vcmp.eq.s32.totalorder %v1767, %v1760
        %vm2762 = vcmp.eq.s32.totalorder %v1768, %v1760
        %vm2763 = vcmp.eq.s32.totalorder %v1765, %v1761
        %vm2764 = vcmp.eq.s32.totalorder %v1766, %v1761
        %vm2765 = vcmp.eq.s32.totalorder %v1767, %v1761
        %vm2766 = vcmp.eq.s32.totalorder %v1768, %v1761
        %vm2767 = vcmp.eq.s32.totalorder %v1765, %v1762
        %vm2768 = vcmp.eq.s32.totalorder %v1766, %v1762
        %vm2769 = vcmp.eq.s32.totalorder %v1767, %v1762
        %vm2770 = vcmp.eq.s32.totalorder %v1768, %v1762
        %vm2771 = vcmp.eq.s32.totalorder %v1765, %v1763
        %vm2772 = vcmp.eq.s32.totalorder %v1766, %v1763
        %vm2773 = vcmp.eq.s32.totalorder %v1767, %v1763
        %vm2774 = vcmp.eq.s32.totalorder %v1768, %v1763
        %v2775 = vld [vmem:[#allocation8] sm:$0x1]
        %v2776 = vsel %vm2647, %v1346, 0.0
        %v2777 = vsel %vm2648, %v1348, 0.0
        %v2778 = vsel %vm2649, %v1539, 0.0
        %v2779 = vsel %vm2650, %v1541, 0.0
        %v2780 = vsel %vm2651, %v1350, 0.0
        %v2781 = vsel %vm2652, %v1352, 0.0
        %v2782 = vsel %vm2653, %v1543, 0.0
        %v2783 = vsel %vm2654, %v1545, 0.0
        %v2784 = vsel %vm2655, %v1356, 0.0
        %v2785 = vsel %vm2656, %v1358, 0.0
        %v2786 = vsel %vm2657, %v1549, 0.0
        %v2787 = vsel %vm2658, %v1551, 0.0
        %v2788 = vsel %vm2659, %v1360, 0.0
        %v2789 = vsel %vm2660, %v1362, 0.0
        %v2790 = vsel %vm2661, %v1553, 0.0
        %v2791 = vsel %vm2662, %v1555, 0.0
        %v2792 = vsel %vm2663, %v1366, 0.0
        %v2793 = vsel %vm2664, %v1368, 0.0
        %v2794 = vsel %vm2665, %v1559, 0.0
        %v2795 = vsel %vm2666, %v1561, 0.0
        %v2796 = vsel %vm2667, %v1370, 0.0
        %v2797 = vsel %vm2668, %v1372, 0.0
        %v2798 = vsel %vm2669, %v1563, 0.0
        %v2799 = vsel %vm2670, %v1565, 0.0
        %v2800 = vsel %vm2671, %v1376, 0.0
        %v2801 = vsel %vm2672, %v1378, 0.0
        %v2802 = vsel %vm2673, %v1569, 0.0
        %v2803 = vsel %vm2674, %v1571, 0.0
        %v2804 = vsel %vm2675, %v1380, 0.0
        %v2805 = vsel %vm2676, %v1382, 0.0
        %v2806 = vsel %vm2677, %v1573, 0.0
        %v2807 = vsel %vm2678, %v1575, 0.0
        %v2808 = vsel %vm2679, %v1386, 0.0
        %v2809 = vsel %vm2680, %v1388, 0.0
        %v2810 = vsel %vm2681, %v1579, 0.0
        %v2811 = vsel %vm2682, %v1581, 0.0
        %v2812 = vsel %vm2683, %v1390, 0.0
        %v2813 = vsel %vm2684, %v1392, 0.0
        %v2814 = vsel %vm2685, %v1583, 0.0
        %v2815 = vsel %vm2686, %v1585, 0.0
        %v2816 = vsel %vm2687, %v1396, 0.0
        %v2817 = vsel %vm2688, %v1398, 0.0
        %v2818 = vsel %vm2689, %v1589, 0.0
        %v2819 = vsel %vm2690, %v1591, 0.0
        %v2820 = vsel %vm2691, %v1400, 0.0
        %v2821 = vsel %vm2692, %v1402, 0.0
        %v2822 = vsel %vm2693, %v1593, 0.0
        %v2823 = vsel %vm2694, %v1595, 0.0
        %v2824 = vsel %vm2695, %v1406, 0.0
        %v2825 = vsel %vm2696, %v1408, 0.0
        %v2826 = vsel %vm2697, %v1599, 0.0
        %v2827 = vsel %vm2698, %v1601, 0.0
        %v2828 = vsel %vm2699, %v1410, 0.0
        %v2829 = vsel %vm2700, %v1412, 0.0
        %v2830 = vsel %vm2701, %v1603, 0.0
        %v2831 = vsel %vm2702, %v1605, 0.0
        %v2832 = vsel %vm2703, %v1416, 0.0
        %v2833 = vsel %vm2704, %v1418, 0.0
        %v2834 = vsel %vm2705, %v1609, 0.0
        %v2835 = vsel %vm2706, %v1611, 0.0
        %v2836 = vsel %vm2707, %v1420, 0.0
        %v2837 = vsel %vm2708, %v1422, 0.0
        %v2838 = vsel %vm2709, %v1613, 0.0
        %v2839 = vsel %vm2710, %v1615, 0.0
        %v2840 = vsel %vm2711, %v1426, 0.0
        %v2841 = vsel %vm2712, %v1428, 0.0
        %v2842 = vsel %vm2713, %v1619, 0.0
        %v2843 = vsel %vm2714, %v1621, 0.0
        %v2844 = vsel %vm2715, %v1430, 0.0
        %v2845 = vsel %vm2716, %v1432, 0.0
        %v2846 = vsel %vm2717, %v1623, 0.0
        %v2847 = vsel %vm2718, %v1625, 0.0
        %v2848 = vsel %vm2719, %v1436, 0.0
        %v2849 = vsel %vm2720, %v1438, 0.0
        %v2850 = vsel %vm2721, %v1629, 0.0
        %v2851 = vsel %vm2722, %v1631, 0.0
        %v2852 = vsel %vm2723, %v1440, 0.0
        %v2853 = vsel %vm2724, %v1442, 0.0
        %v2854 = vsel %vm2725, %v1633, 0.0
        %v2855 = vsel %vm2726, %v1635, 0.0
        %v2856 = vsel %vm2727, %v1446, 0.0
        %v2857 = vsel %vm2728, %v1448, 0.0
        %v2858 = vsel %vm2729, %v1639, 0.0
        %v2859 = vsel %vm2730, %v1641, 0.0
        %v2860 = vsel %vm2731, %v1450, 0.0
        %v2861 = vsel %vm2732, %v1452, 0.0
        %v2862 = vsel %vm2733, %v1643, 0.0
        %v2863 = vsel %vm2734, %v1645, 0.0
        %v2864 = vsel %vm2735, %v1456, 0.0
        %v2865 = vsel %vm2736, %v1458, 0.0
        %v2866 = vsel %vm2737, %v1649, 0.0
        %v2867 = vsel %vm2738, %v1651, 0.0
        %v2868 = vsel %vm2739, %v1460, 0.0
        %v2869 = vsel %vm2740, %v1462, 0.0
        %v2870 = vsel %vm2741, %v1653, 0.0
        %v2871 = vsel %vm2742, %v1655, 0.0
        %v2872 = vsel %vm2743, %v1466, 0.0
        %v2873 = vsel %vm2744, %v1468, 0.0
        %v2874 = vsel %vm2745, %v1659, 0.0
        %v2875 = vsel %vm2746, %v1661, 0.0
        %v2876 = vsel %vm2747, %v1470, 0.0
        %v2877 = vsel %vm2748, %v1472, 0.0
        %v2878 = vsel %vm2749, %v1663, 0.0
        %v2879 = vsel %vm2750, %v1665, 0.0
        %v2880 = vsel %vm2751, %v1476, 0.0
        %v2881 = vsel %vm2752, %v1478, 0.0
        %v2882 = vsel %vm2753, %v1669, 0.0
        %v2883 = vsel %vm2754, %v1671, 0.0
        %v2884 = vsel %vm2755, %v1480, 0.0
        %v2885 = vsel %vm2756, %v1482, 0.0
        %v2886 = vsel %vm2757, %v1673, 0.0
        %v2887 = vsel %vm2758, %v1675, 0.0
        %v2888 = vsel %vm2759, %v1486, 0.0
        %v2889 = vsel %vm2760, %v1488, 0.0
        %v2890 = vsel %vm2761, %v1679, 0.0
        %v2891 = vsel %vm2762, %v1681, 0.0
        %v2892 = vsel %vm2763, %v1490, 0.0
        %v2893 = vsel %vm2764, %v1492, 0.0
        %v2894 = vsel %vm2765, %v1683, 0.0
        %v2895 = vsel %vm2766, %v1685, 0.0
        %v2896 = vsel %vm2767, %v1496, 0.0
        %v2897 = vsel %vm2768, %v1498, 0.0
        %v2898 = vsel %vm2769, %v1689, 0.0
        %v2899 = vsel %vm2770, %v1691, 0.0
        %v2900 = vsel %vm2771, %v1500, 0.0
        %v2901 = vsel %vm2772, %v1502, 0.0
        %v2902 = vsel %vm2773, %v1693, 0.0
        %v2903 = vsel %vm2774, %v1695, 0.0
        %v2904 = vadd.f32 %v2776, %v2777
        %v2905 = vadd.f32 %v2904, %v2778
        %v2906 = vadd.f32 %v2905, %v2779
        %v2907 = vadd.f32 %v2906, %v2780
        %v2908 = vadd.f32 %v2907, %v2781
        %v2909 = vadd.f32 %v2908, %v2782
        %v2910 = vadd.f32 %v2909, %v2783
        %v2911 = vadd.f32 %v2910, %v2784
        %v2912 = vadd.f32 %v2911, %v2785
        %v2913 = vadd.f32 %v2912, %v2786
        %v2914 = vadd.f32 %v2913, %v2787
        %v2915 = vadd.f32 %v2914, %v2788
        %v2916 = vadd.f32 %v2915, %v2789
        %v2917 = vadd.f32 %v2916, %v2790
        %v2918 = vadd.f32 %v2917, %v2791
        %v2919 = vadd.f32 %v2918, %v2792
        %v2920 = vadd.f32 %v2919, %v2793
        %v2921 = vadd.f32 %v2920, %v2794
        %v2922 = vadd.f32 %v2921, %v2795
        %v2923 = vadd.f32 %v2922, %v2796
        %v2924 = vadd.f32 %v2923, %v2797
        %v2925 = vadd.f32 %v2924, %v2798
        %v2926 = vadd.f32 %v2925, %v2799
        %v2927 = vadd.f32 %v2926, %v2800
        %v2928 = vadd.f32 %v2927, %v2801
        %v2929 = vadd.f32 %v2928, %v2802
        %v2930 = vadd.f32 %v2929, %v2803
        %v2931 = vadd.f32 %v2930, %v2804
        %v2932 = vadd.f32 %v2931, %v2805
        %v2933 = vadd.f32 %v2932, %v2806
        %v2934 = vadd.f32 %v2933, %v2807
        %v2935 = vadd.f32 %v2934, %v2808
        %v2936 = vadd.f32 %v2935, %v2809
        %v2937 = vadd.f32 %v2936, %v2810
        %v2938 = vadd.f32 %v2937, %v2811
        %v2939 = vadd.f32 %v2938, %v2812
        %v2940 = vadd.f32 %v2939, %v2813
        %v2941 = vadd.f32 %v2940, %v2814
        %v2942 = vadd.f32 %v2941, %v2815
        %v2943 = vadd.f32 %v2942, %v2816
        %v2944 = vadd.f32 %v2943, %v2817
        %v2945 = vadd.f32 %v2944, %v2818
        %v2946 = vadd.f32 %v2945, %v2819
        %v2947 = vadd.f32 %v2946, %v2820
        %v2948 = vadd.f32 %v2947, %v2821
        %v2949 = vadd.f32 %v2948, %v2822
        %v2950 = vadd.f32 %v2949, %v2823
        %v2951 = vadd.f32 %v2950, %v2824
        %v2952 = vadd.f32 %v2951, %v2825
        %v2953 = vadd.f32 %v2952, %v2826
        %v2954 = vadd.f32 %v2953, %v2827
        %v2955 = vadd.f32 %v2954, %v2828
        %v2956 = vadd.f32 %v2955, %v2829
        %v2957 = vadd.f32 %v2956, %v2830
        %v2958 = vadd.f32 %v2957, %v2831
        %v2959 = vadd.f32 %v2958, %v2832
        %v2960 = vadd.f32 %v2959, %v2833
        %v2961 = vadd.f32 %v2960, %v2834
        %v2962 = vadd.f32 %v2961, %v2835
        %v2963 = vadd.f32 %v2962, %v2836
        %v2964 = vadd.f32 %v2963, %v2837
        %v2965 = vadd.f32 %v2964, %v2838
        %v2966 = vadd.f32 %v2965, %v2839
        %v2967 = vadd.f32 %v2966, %v2840
        %v2968 = vadd.f32 %v2967, %v2841
        %v2969 = vadd.f32 %v2968, %v2842
        %v2970 = vadd.f32 %v2969, %v2843
        %v2971 = vadd.f32 %v2970, %v2844
        %v2972 = vadd.f32 %v2971, %v2845
        %v2973 = vadd.f32 %v2972, %v2846
        %v2974 = vadd.f32 %v2973, %v2847
        %v2975 = vadd.f32 %v2974, %v2848
        %v2976 = vadd.f32 %v2975, %v2849
        %v2977 = vadd.f32 %v2976, %v2850
        %v2978 = vadd.f32 %v2977, %v2851
        %v2979 = vadd.f32 %v2978, %v2852
        %v2980 = vadd.f32 %v2979, %v2853
        %v2981 = vadd.f32 %v2980, %v2854
        %v2982 = vadd.f32 %v2981, %v2855
        %v2983 = vadd.f32 %v2982, %v2856
        %v2984 = vadd.f32 %v2983, %v2857
        %v2985 = vadd.f32 %v2984, %v2858
        %v2986 = vadd.f32 %v2985, %v2859
        %v2987 = vadd.f32 %v2986, %v2860
        %v2988 = vadd.f32 %v2987, %v2861
        %v2989 = vadd.f32 %v2988, %v2862
        %v2990 = vadd.f32 %v2989, %v2863
        %v2991 = vadd.f32 %v2990, %v2864
        %v2992 = vadd.f32 %v2991, %v2865
        %v2993 = vadd.f32 %v2992, %v2866
        %v2994 = vadd.f32 %v2993, %v2867
        %v2995 = vadd.f32 %v2994, %v2868
        %v2996 = vadd.f32 %v2995, %v2869
        %v2997 = vadd.f32 %v2996, %v2870
        %v2998 = vadd.f32 %v2997, %v2871
        %v2999 = vadd.f32 %v2998, %v2872
        %v3000 = vadd.f32 %v2999, %v2873
        %v3001 = vadd.f32 %v3000, %v2874
        %v3002 = vadd.f32 %v3001, %v2875
        %v3003 = vadd.f32 %v3002, %v2876
        %v3004 = vadd.f32 %v3003, %v2877
        %v3005 = vadd.f32 %v3004, %v2878
        %v3006 = vadd.f32 %v3005, %v2879
        %v3007 = vadd.f32 %v3006, %v2880
        %v3008 = vadd.f32 %v3007, %v2881
        %v3009 = vadd.f32 %v3008, %v2882
        %v3010 = vadd.f32 %v3009, %v2883
        %v3011 = vadd.f32 %v3010, %v2884
        %v3012 = vadd.f32 %v3011, %v2885
        %v3013 = vadd.f32 %v3012, %v2886
        %v3014 = vadd.f32 %v3013, %v2887
        %v3015 = vadd.f32 %v3014, %v2888
        %v3016 = vadd.f32 %v3015, %v2889
        %v3017 = vadd.f32 %v3016, %v2890
        %v3018 = vadd.f32 %v3017, %v2891
        %v3019 = vadd.f32 %v3018, %v2892
        %v3020 = vadd.f32 %v3019, %v2893
        %v3021 = vadd.f32 %v3020, %v2894
        %v3022 = vadd.f32 %v3021, %v2895
        %v3023 = vadd.f32 %v3022, %v2896
        %v3024 = vadd.f32 %v3023, %v2897
        %v3025 = vadd.f32 %v3024, %v2898
        %v3026 = vadd.f32 %v3025, %v2899
        %v3027 = vadd.f32 %v3026, %v2900
        %v3028 = vadd.f32 %v3027, %v2901
        %v3029 = vadd.f32 %v3028, %v2902
        %v3030 = vadd.f32 %v3029, %v2903
        %3031 = vadd.xlane.f32.xlu0 %v3030
        %v3032 = vpop.xlane.xlu0 %3031
        %v3033 = vrot.slane %v3032, 4
        %v3034 = vadd.f32 %v3032, %v3033
        %v3035 = vrot.slane %v3034, 2
        %v3036 = vadd.f32 %v3034, %v3035
        %v3037 = vrot.slane %v3036, 1
        %v3038 = vadd.f32 %v3036, %v3037
        %s3039 = vtos %v3038
        %v3040 = vstv %s3039
        %v3041 = vadd.f32 %v2775, %v3040
        %3042 = vst.msk [vmem:[#allocation8] sm:$0x1] %vm2645, %v3041
        %v3043 = vmax.f32 %v1346, %v1350
        %v3044 = vmax.f32 %v3043, %v1356
        %v3045 = vmax.f32 %v3044, %v1360
        %v3046 = vmax.f32 %v3045, %v1366
        %v3047 = vmax.f32 %v3046, %v1370
        %v3048 = vmax.f32 %v3047, %v1376
        %v3049 = vmax.f32 %v3048, %v1380
        %v3050 = vmax.f32 %v3049, %v1386
        %v3051 = vmax.f32 %v3050, %v1390
        %v3052 = vmax.f32 %v3051, %v1396
        %v3053 = vmax.f32 %v3052, %v1400
        %v3054 = vmax.f32 %v3053, %v1406
        %v3055 = vmax.f32 %v3054, %v1410
        %v3056 = vmax.f32 %v3055, %v1416
        %v3057 = vmax.f32 %v3056, %v1420
        %v3058 = vmax.f32 %v3057, %v1426
        %v3059 = vmax.f32 %v3058, %v1430
        %v3060 = vmax.f32 %v3059, %v1436
        %v3061 = vmax.f32 %v3060, %v1440
        %v3062 = vmax.f32 %v3061, %v1446
        %v3063 = vmax.f32 %v3062, %v1450
        %v3064 = vmax.f32 %v3063, %v1456
        %v3065 = vmax.f32 %v3064, %v1460
        %v3066 = vmax.f32 %v3065, %v1466
        %v3067 = vmax.f32 %v3066, %v1470
        %v3068 = vmax.f32 %v3067, %v1476
        %v3069 = vmax.f32 %v3068, %v1480
        %v3070 = vmax.f32 %v3069, %v1486
        %v3071 = vmax.f32 %v3070, %v1490
        %v3072 = vmax.f32 %v3071, %v1496
        %v3073 = vmax.f32 %v3072, %v1500
        %v3074 = vrot.slane %v3073, 4
        %v3075 = vmax.f32 %v3073, %v3074
        %v3076 = vrot.slane %v3075, 2
        %v3077 = vmax.f32 %v3075, %v3076
        %v3078 = vrot.slane %v3077, 1
        %v3079 = vmax.f32 %v3077, %v3078
        %v3080 = vmax.f32 %v1348, %v1352
        %v3081 = vmax.f32 %v3080, %v1358
        %v3082 = vmax.f32 %v3081, %v1362
        %v3083 = vmax.f32 %v3082, %v1368
        %v3084 = vmax.f32 %v3083, %v1372
        %v3085 = vmax.f32 %v3084, %v1378
        %v3086 = vmax.f32 %v3085, %v1382
        %v3087 = vmax.f32 %v3086, %v1388
        %v3088 = vmax.f32 %v3087, %v1392
        %v3089 = vmax.f32 %v3088, %v1398
        %v3090 = vmax.f32 %v3089, %v1402
        %v3091 = vmax.f32 %v3090, %v1408
        %v3092 = vmax.f32 %v3091, %v1412
        %v3093 = vmax.f32 %v3092, %v1418
        %v3094 = vmax.f32 %v3093, %v1422
        %v3095 = vmax.f32 %v3094, %v1428
        %v3096 = vmax.f32 %v3095, %v1432
        %v3097 = vmax.f32 %v3096, %v1438
        %v3098 = vmax.f32 %v3097, %v1442
        %v3099 = vmax.f32 %v3098, %v1448
        %v3100 = vmax.f32 %v3099, %v1452
        %v3101 = vmax.f32 %v3100, %v1458
        %v3102 = vmax.f32 %v3101, %v1462
        %v3103 = vmax.f32 %v3102, %v1468
        %v3104 = vmax.f32 %v3103, %v1472
        %v3105 = vmax.f32 %v3104, %v1478
        %v3106 = vmax.f32 %v3105, %v1482
        %v3107 = vmax.f32 %v3106, %v1488
        %v3108 = vmax.f32 %v3107, %v1492
        %v3109 = vmax.f32 %v3108, %v1498
        %v3110 = vmax.f32 %v3109, %v1502
        %v3111 = vrot.slane %v3110, 4
        %v3112 = vmax.f32 %v3110, %v3111
        %v3113 = vrot.slane %v3112, 2
        %v3114 = vmax.f32 %v3112, %v3113
        %v3115 = vrot.slane %v3114, 1
        %v3116 = vmax.f32 %v3114, %v3115
        %v3117 = vmax.f32 %v1539, %v1543
        %v3118 = vmax.f32 %v3117, %v1549
        %v3119 = vmax.f32 %v3118, %v1553
        %v3120 = vmax.f32 %v3119, %v1559
        %v3121 = vmax.f32 %v3120, %v1563
        %v3122 = vmax.f32 %v3121, %v1569
        %v3123 = vmax.f32 %v3122, %v1573
        %v3124 = vmax.f32 %v3123, %v1579
        %v3125 = vmax.f32 %v3124, %v1583
        %v3126 = vmax.f32 %v3125, %v1589
        %v3127 = vmax.f32 %v3126, %v1593
        %v3128 = vmax.f32 %v3127, %v1599
        %v3129 = vmax.f32 %v3128, %v1603
        %v3130 = vmax.f32 %v3129, %v1609
        %v3131 = vmax.f32 %v3130, %v1613
        %v3132 = vmax.f32 %v3131, %v1619
        %v3133 = vmax.f32 %v3132, %v1623
        %v3134 = vmax.f32 %v3133, %v1629
        %v3135 = vmax.f32 %v3134, %v1633
        %v3136 = vmax.f32 %v3135, %v1639
        %v3137 = vmax.f32 %v3136, %v1643
        %v3138 = vmax.f32 %v3137, %v1649
        %v3139 = vmax.f32 %v3138, %v1653
        %v3140 = vmax.f32 %v3139, %v1659
        %v3141 = vmax.f32 %v3140, %v1663
        %v3142 = vmax.f32 %v3141, %v1669
        %v3143 = vmax.f32 %v3142, %v1673
        %v3144 = vmax.f32 %v3143, %v1679
        %v3145 = vmax.f32 %v3144, %v1683
        %v3146 = vmax.f32 %v3145, %v1689
        %v3147 = vmax.f32 %v3146, %v1693
        %v3148 = vrot.slane %v3147, 4
        %v3149 = vmax.f32 %v3147, %v3148
        %v3150 = vrot.slane %v3149, 2
        %v3151 = vmax.f32 %v3149, %v3150
        %v3152 = vrot.slane %v3151, 1
        %v3153 = vmax.f32 %v3151, %v3152
        %v3154 = vmax.f32 %v1541, %v1545
        %v3155 = vmax.f32 %v3154, %v1551
        %v3156 = vmax.f32 %v3155, %v1555
        %v3157 = vmax.f32 %v3156, %v1561
        %v3158 = vmax.f32 %v3157, %v1565
        %v3159 = vmax.f32 %v3158, %v1571
        %v3160 = vmax.f32 %v3159, %v1575
        %v3161 = vmax.f32 %v3160, %v1581
        %v3162 = vmax.f32 %v3161, %v1585
        %v3163 = vmax.f32 %v3162, %v1591
        %v3164 = vmax.f32 %v3163, %v1595
        %v3165 = vmax.f32 %v3164, %v1601
        %v3166 = vmax.f32 %v3165, %v1605
        %v3167 = vmax.f32 %v3166, %v1611
        %v3168 = vmax.f32 %v3167, %v1615
        %v3169 = vmax.f32 %v3168, %v1621
        %v3170 = vmax.f32 %v3169, %v1625
        %v3171 = vmax.f32 %v3170, %v1631
        %v3172 = vmax.f32 %v3171, %v1635
        %v3173 = vmax.f32 %v3172, %v1641
        %v3174 = vmax.f32 %v3173, %v1645
        %v3175 = vmax.f32 %v3174, %v1651
        %v3176 = vmax.f32 %v3175, %v1655
        %v3177 = vmax.f32 %v3176, %v1661
        %v3178 = vmax.f32 %v3177, %v1665
        %v3179 = vmax.f32 %v3178, %v1671
        %v3180 = vmax.f32 %v3179, %v1675
        %v3181 = vmax.f32 %v3180, %v1681
        %v3182 = vmax.f32 %v3181, %v1685
        %v3183 = vmax.f32 %v3182, %v1691
        %v3184 = vmax.f32 %v3183, %v1695
        %v3185 = vrot.slane %v3184, 4
        %v3186 = vmax.f32 %v3184, %v3185
        %v3187 = vrot.slane %v3186, 2
        %v3188 = vmax.f32 %v3186, %v3187
        %v3189 = vrot.slane %v3188, 1
        %v3190 = vmax.f32 %v3188, %v3189
        %v3191 = vld [vmem:[#allocation5] sm:$0xf]
        %v3196 = vcombine.low %v3079, %v3116
        %v3197 = vcombine.low %v3153, %v3190
        %v3199 = vunpack.c.l.s4 1966171168
        %v3200 = vunpack.c.0.s8 %v3199
        %v3201 = vlaneseq
        %v3202 = vshrl.u32 %v3201, 7
        %v3203 = vsub.s32 %v3200, %v3202
        %v3204 = vrot.slane %v3196, %v3203
        %v3206 = vunpack.c.l.s4 1966171168
        %v3207 = vunpack.c.0.s8 %v3206
        %v3208 = vlaneseq
        %v3209 = vshrl.u32 %v3208, 7
        %v3210 = vsub.s32 %v3207, %v3209
        %v3211 = vrot.slane %v3197, %v3210
        %v3212 = vcombine.low %v3204, %v3211
        %v3214 = vunpack.c.l.s4 1966171168
        %v3215 = vunpack.c.0.s8 %v3214
        %v3216 = vlaneseq
        %v3217 = vshrl.u32 %v3216, 7
        %v3218 = vsub.s32 %v3215, %v3217
        %v3219 = vrot.slane %v3212, %v3218
        %v3221 = vmax.f32 %v3191, %v3219
        %v3222 = vmax.f32 %v1773, %v1793
        %v3223 = vmax.f32 %v1778, %v1798
        %v3224 = vmax.f32 %v1783, %v1803
        %v3225 = vmax.f32 %v1788, %v1808
        %v3226 = vmax.f32 %v3222, %v1813
        %v3227 = vmax.f32 %v3223, %v1818
        %v3228 = vmax.f32 %v3224, %v1823
        %v3229 = vmax.f32 %v3225, %v1828
        %v3230 = vmax.f32 %v3226, %v1833
        %v3231 = vmax.f32 %v3227, %v1838
        %v3232 = vmax.f32 %v3228, %v1843
        %v3233 = vmax.f32 %v3229, %v1848
        %v3234 = vmax.f32 %v3230, %v1853
        %v3235 = vmax.f32 %v3231, %v1858
        %v3236 = vmax.f32 %v3232, %v1863
        %v3237 = vmax.f32 %v3233, %v1868
        %v3238 = vmax.f32 %v3234, %v1873
        %v3239 = vmax.f32 %v3235, %v1878
        %v3240 = vmax.f32 %v3236, %v1883
        %v3241 = vmax.f32 %v3237, %v1888
        %v3242 = vmax.f32 %v3238, %v1893
        %v3243 = vmax.f32 %v3239, %v1898
        %v3244 = vmax.f32 %v3240, %v1903
        %v3245 = vmax.f32 %v3241, %v1908
        %v3246 = vmax.f32 %v3242, %v1913
        %v3247 = vmax.f32 %v3243, %v1918
        %v3248 = vmax.f32 %v3244, %v1923
        %v3249 = vmax.f32 %v3245, %v1928
        %v3250 = vmax.f32 %v3246, %v3247
        %v3251 = vmax.f32 %v3248, %v3249
        %v3252 = vmax.f32 %v3250, %v3251
        %v3253 = vrot.slane %v3252, 4
        %v3254 = vmax.f32 %v3252, %v3253
        %v3255 = vrot.slane %v3254, 2
        %v3256 = vmax.f32 %v3254, %v3255
        %v3257 = vrot.slane %v3256, 1
        %v3258 = vmax.f32 %v3256, %v3257
        %v3259 = vsub.f32 %v1773, %v3258
        %v3260 = vsub.f32 %v1778, %v3258
        %v3261 = vsub.f32 %v1783, %v3258
        %v3262 = vsub.f32 %v1788, %v3258
        %v3263 = vsub.f32 %v1793, %v3258
        %v3264 = vsub.f32 %v1798, %v3258
        %v3265 = vsub.f32 %v1803, %v3258
        %v3266 = vsub.f32 %v1808, %v3258
        %v3267 = vsub.f32 %v1813, %v3258
        %v3268 = vsub.f32 %v1818, %v3258
        %v3269 = vsub.f32 %v1823, %v3258
        %v3270 = vsub.f32 %v1828, %v3258
        %v3271 = vsub.f32 %v1833, %v3258
        %v3272 = vsub.f32 %v1838, %v3258
        %v3273 = vsub.f32 %v1843, %v3258
        %v3274 = vsub.f32 %v1848, %v3258
        %v3275 = vsub.f32 %v1853, %v3258
        %v3276 = vsub.f32 %v1858, %v3258
        %v3277 = vsub.f32 %v1863, %v3258
        %v3278 = vsub.f32 %v1868, %v3258
        %v3279 = vsub.f32 %v1873, %v3258
        %v3280 = vsub.f32 %v1878, %v3258
        %v3281 = vsub.f32 %v1883, %v3258
        %v3282 = vsub.f32 %v1888, %v3258
        %v3283 = vsub.f32 %v1893, %v3258
        %v3284 = vsub.f32 %v1898, %v3258
        %v3285 = vsub.f32 %v1903, %v3258
        %v3286 = vsub.f32 %v1908, %v3258
        %v3287 = vsub.f32 %v1913, %v3258
        %v3288 = vsub.f32 %v1918, %v3258
        %v3289 = vsub.f32 %v1923, %v3258
        %v3290 = vsub.f32 %v1928, %v3258
        %v3291 = vmul.f32 %v3259, 1.442695
        %v3292 = vpow.pop %v3291
        %v3293 = vmul.f32 %v3260, 1.442695
        %v3294 = vpow.pop %v3293
        %v3295 = vmul.f32 %v3261, 1.442695
        %v3296 = vpow.pop %v3295
        %v3297 = vmul.f32 %v3262, 1.442695
        %v3298 = vpow.pop %v3297
        %v3299 = vmul.f32 %v3263, 1.442695
        %v3300 = vpow.pop %v3299
        %v3301 = vmul.f32 %v3264, 1.442695
        %v3302 = vpow.pop %v3301
        %v3303 = vmul.f32 %v3265, 1.442695
        %v3304 = vpow.pop %v3303
        %v3305 = vmul.f32 %v3266, 1.442695
        %v3306 = vpow.pop %v3305
        %v3307 = vmul.f32 %v3267, 1.442695
        %v3308 = vpow.pop %v3307
        %v3309 = vmul.f32 %v3268, 1.442695
        %v3310 = vpow.pop %v3309
        %v3311 = vmul.f32 %v3269, 1.442695
        %v3312 = vpow.pop %v3311
        %v3313 = vmul.f32 %v3270, 1.442695
        %v3314 = vpow.pop %v3313
        %v3315 = vmul.f32 %v3271, 1.442695
        %v3316 = vpow.pop %v3315
        %v3317 = vmul.f32 %v3272, 1.442695
        %v3318 = vpow.pop %v3317
        %v3319 = vmul.f32 %v3273, 1.442695
        %v3320 = vpow.pop %v3319
        %v3321 = vmul.f32 %v3274, 1.442695
        %v3322 = vpow.pop %v3321
        %v3323 = vmul.f32 %v3275, 1.442695
        %v3324 = vpow.pop %v3323
        %v3325 = vmul.f32 %v3276, 1.442695
        %v3326 = vpow.pop %v3325
        %v3327 = vmul.f32 %v3277, 1.442695
        %v3328 = vpow.pop %v3327
        %v3329 = vmul.f32 %v3278, 1.442695
        %v3330 = vpow.pop %v3329
        %v3331 = vmul.f32 %v3279, 1.442695
        %v3332 = vpow.pop %v3331
        %v3333 = vmul.f32 %v3280, 1.442695
        %v3334 = vpow.pop %v3333
        %v3335 = vmul.f32 %v3281, 1.442695
        %v3336 = vpow.pop %v3335
        %v3337 = vmul.f32 %v3282, 1.442695
        %v3338 = vpow.pop %v3337
        %v3339 = vmul.f32 %v3283, 1.442695
        %v3340 = vpow.pop %v3339
        %v3341 = vmul.f32 %v3284, 1.442695
        %v3342 = vpow.pop %v3341
        %v3343 = vmul.f32 %v3285, 1.442695
        %v3344 = vpow.pop %v3343
        %v3345 = vmul.f32 %v3286, 1.442695
        %v3346 = vpow.pop %v3345
        %v3347 = vmul.f32 %v3287, 1.442695
        %v3348 = vpow.pop %v3347
        %v3349 = vmul.f32 %v3288, 1.442695
        %v3350 = vpow.pop %v3349
        %v3351 = vmul.f32 %v3289, 1.442695
        %v3352 = vpow.pop %v3351
        %v3353 = vmul.f32 %v3290, 1.442695
        %v3354 = vpow.pop %v3353
        %v3355 = vsub.f32 %v3258, %v3221
        %v3356 = vmin.f32 %v3355, 80.0
        %v3357 = vmul.f32 %v3356, 1.442695
        %v3358 = vpow.pop %v3357
        %v3359 = vmul.f32 %v2058, %v3292
        %v3360 = vmul.f32 %v2060, %v3292
        %v3361 = vmul.f32 %v2062, %v3292
        %v3362 = vmul.f32 %v2064, %v3292
        %v3363 = vmul.f32 %v2066, %v3294
        %v3364 = vmul.f32 %v2068, %v3294
        %v3365 = vmul.f32 %v2070, %v3294
        %v3366 = vmul.f32 %v2072, %v3294
        %v3367 = vmul.f32 %v2074, %v3296
        %v3368 = vmul.f32 %v2076, %v3296
        %v3369 = vmul.f32 %v2078, %v3296
        %v3370 = vmul.f32 %v2080, %v3296
        %v3371 = vmul.f32 %v2082, %v3298
        %v3372 = vmul.f32 %v2084, %v3298
        %v3373 = vmul.f32 %v2086, %v3298
        %v3374 = vmul.f32 %v2088, %v3298
        %v3375 = vmul.f32 %v2090, %v3300
        %v3376 = vmul.f32 %v2092, %v3300
        %v3377 = vmul.f32 %v2094, %v3300
        %v3378 = vmul.f32 %v2096, %v3300
        %v3379 = vmul.f32 %v2098, %v3302
        %v3380 = vmul.f32 %v2100, %v3302
        %v3381 = vmul.f32 %v2102, %v3302
        %v3382 = vmul.f32 %v2104, %v3302
        %v3383 = vmul.f32 %v2106, %v3304
        %v3384 = vmul.f32 %v2108, %v3304
        %v3385 = vmul.f32 %v2110, %v3304
        %v3386 = vmul.f32 %v2112, %v3304
        %v3387 = vmul.f32 %v2114, %v3306
        %v3388 = vmul.f32 %v2116, %v3306
        %v3389 = vmul.f32 %v2118, %v3306
        %v3390 = vmul.f32 %v2120, %v3306
        %v3391 = vmul.f32 %v2122, %v3308
        %v3392 = vmul.f32 %v2124, %v3308
        %v3393 = vmul.f32 %v2126, %v3308
        %v3394 = vmul.f32 %v2128, %v3308
        %v3395 = vmul.f32 %v2130, %v3310
        %v3396 = vmul.f32 %v2132, %v3310
        %v3397 = vmul.f32 %v2134, %v3310
        %v3398 = vmul.f32 %v2136, %v3310
        %v3399 = vmul.f32 %v2138, %v3312
        %v3400 = vmul.f32 %v2140, %v3312
        %v3401 = vmul.f32 %v2142, %v3312
        %v3402 = vmul.f32 %v2144, %v3312
        %v3403 = vmul.f32 %v2146, %v3314
        %v3404 = vmul.f32 %v2148, %v3314
        %v3405 = vmul.f32 %v2150, %v3314
        %v3406 = vmul.f32 %v2152, %v3314
        %v3407 = vmul.f32 %v2154, %v3316
        %v3408 = vmul.f32 %v2156, %v3316
        %v3409 = vmul.f32 %v2158, %v3316
        %v3410 = vmul.f32 %v2160, %v3316
        %v3411 = vmul.f32 %v2162, %v3318
        %v3412 = vmul.f32 %v2164, %v3318
        %v3413 = vmul.f32 %v2166, %v3318
        %v3414 = vmul.f32 %v2168, %v3318
        %v3415 = vmul.f32 %v2170, %v3320
        %v3416 = vmul.f32 %v2172, %v3320
        %v3417 = vmul.f32 %v2174, %v3320
        %v3418 = vmul.f32 %v2176, %v3320
        %v3419 = vmul.f32 %v2178, %v3322
        %v3420 = vmul.f32 %v2180, %v3322
        %v3421 = vmul.f32 %v2182, %v3322
        %v3422 = vmul.f32 %v2184, %v3322
        %v3423 = vmul.f32 %v2186, %v3324
        %v3424 = vmul.f32 %v2188, %v3324
        %v3425 = vmul.f32 %v2190, %v3324
        %v3426 = vmul.f32 %v2192, %v3324
        %v3427 = vmul.f32 %v2194, %v3326
        %v3428 = vmul.f32 %v2196, %v3326
        %v3429 = vmul.f32 %v2198, %v3326
        %v3430 = vmul.f32 %v2200, %v3326
        %v3431 = vmul.f32 %v2202, %v3328
        %v3432 = vmul.f32 %v2204, %v3328
        %v3433 = vmul.f32 %v2206, %v3328
        %v3434 = vmul.f32 %v2208, %v3328
        %v3435 = vmul.f32 %v2210, %v3330
        %v3436 = vmul.f32 %v2212, %v3330
        %v3437 = vmul.f32 %v2214, %v3330
        %v3438 = vmul.f32 %v2216, %v3330
        %v3439 = vmul.f32 %v2218, %v3332
        %v3440 = vmul.f32 %v2220, %v3332
        %v3441 = vmul.f32 %v2222, %v3332
        %v3442 = vmul.f32 %v2224, %v3332
        %v3443 = vmul.f32 %v2226, %v3334
        %v3444 = vmul.f32 %v2228, %v3334
        %v3445 = vmul.f32 %v2230, %v3334
        %v3446 = vmul.f32 %v2232, %v3334
        %v3447 = vmul.f32 %v2234, %v3336
        %v3448 = vmul.f32 %v2236, %v3336
        %v3449 = vmul.f32 %v2238, %v3336
        %v3450 = vmul.f32 %v2240, %v3336
        %v3451 = vmul.f32 %v2242, %v3338
        %v3452 = vmul.f32 %v2244, %v3338
        %v3453 = vmul.f32 %v2246, %v3338
        %v3454 = vmul.f32 %v2248, %v3338
        %v3455 = vmul.f32 %v2250, %v3340
        %v3456 = vmul.f32 %v2252, %v3340
        %v3457 = vmul.f32 %v2254, %v3340
        %v3458 = vmul.f32 %v2256, %v3340
        %v3459 = vmul.f32 %v2258, %v3342
        %v3460 = vmul.f32 %v2260, %v3342
        %v3461 = vmul.f32 %v2262, %v3342
        %v3462 = vmul.f32 %v2264, %v3342
        %v3463 = vmul.f32 %v2266, %v3344
        %v3464 = vmul.f32 %v2268, %v3344
        %v3465 = vmul.f32 %v2270, %v3344
        %v3466 = vmul.f32 %v2272, %v3344
        %v3467 = vmul.f32 %v2274, %v3346
        %v3468 = vmul.f32 %v2276, %v3346
        %v3469 = vmul.f32 %v2278, %v3346
        %v3470 = vmul.f32 %v2280, %v3346
        %v3471 = vmul.f32 %v2282, %v3348
        %v3472 = vmul.f32 %v2284, %v3348
        %v3473 = vmul.f32 %v2286, %v3348
        %v3474 = vmul.f32 %v2288, %v3348
        %v3475 = vmul.f32 %v2290, %v3350
        %v3476 = vmul.f32 %v2292, %v3350
        %v3477 = vmul.f32 %v2294, %v3350
        %v3478 = vmul.f32 %v2296, %v3350
        %v3479 = vmul.f32 %v2298, %v3352
        %v3480 = vmul.f32 %v2300, %v3352
        %v3481 = vmul.f32 %v2302, %v3352
        %v3482 = vmul.f32 %v2304, %v3352
        %v3483 = vmul.f32 %v2306, %v3354
        %v3484 = vmul.f32 %v2308, %v3354
        %v3485 = vmul.f32 %v2310, %v3354
        %v3486 = vmul.f32 %v2312, %v3354
        %v3487 = vadd.f32 %v3359, %v3363
        %v3488 = vadd.f32 %v3487, %v3367
        %v3489 = vadd.f32 %v3488, %v3371
        %v3490 = vadd.f32 %v3489, %v3375
        %v3491 = vadd.f32 %v3490, %v3379
        %v3492 = vadd.f32 %v3491, %v3383
        %v3493 = vadd.f32 %v3492, %v3387
        %v3494 = vadd.f32 %v3493, %v3391
        %v3495 = vadd.f32 %v3494, %v3395
        %v3496 = vadd.f32 %v3495, %v3399
        %v3497 = vadd.f32 %v3496, %v3403
        %v3498 = vadd.f32 %v3497, %v3407
        %v3499 = vadd.f32 %v3498, %v3411
        %v3500 = vadd.f32 %v3499, %v3415
        %v3501 = vadd.f32 %v3500, %v3419
        %v3502 = vadd.f32 %v3501, %v3423
        %v3503 = vadd.f32 %v3502, %v3427
        %v3504 = vadd.f32 %v3503, %v3431
        %v3505 = vadd.f32 %v3504, %v3435
        %v3506 = vadd.f32 %v3505, %v3439
        %v3507 = vadd.f32 %v3506, %v3443
        %v3508 = vadd.f32 %v3507, %v3447
        %v3509 = vadd.f32 %v3508, %v3451
        %v3510 = vadd.f32 %v3509, %v3455
        %v3511 = vadd.f32 %v3510, %v3459
        %v3512 = vadd.f32 %v3511, %v3463
        %v3513 = vadd.f32 %v3512, %v3467
        %v3514 = vadd.f32 %v3513, %v3471
        %v3515 = vadd.f32 %v3514, %v3475
        %v3516 = vadd.f32 %v3515, %v3479
        %v3517 = vadd.f32 %v3516, %v3483
        %v3518 = vrot.slane %v3517, 4
        %v3519 = vadd.f32 %v3517, %v3518
        %v3520 = vrot.slane %v3519, 2
        %v3521 = vadd.f32 %v3519, %v3520
        %v3522 = vrot.slane %v3521, 1
        %v3523 = vadd.f32 %v3521, %v3522
        %v3524 = vadd.f32 %v3360, %v3364
        %v3525 = vadd.f32 %v3524, %v3368
        %v3526 = vadd.f32 %v3525, %v3372
        %v3527 = vadd.f32 %v3526, %v3376
        %v3528 = vadd.f32 %v3527, %v3380
        %v3529 = vadd.f32 %v3528, %v3384
        %v3530 = vadd.f32 %v3529, %v3388
        %v3531 = vadd.f32 %v3530, %v3392
        %v3532 = vadd.f32 %v3531, %v3396
        %v3533 = vadd.f32 %v3532, %v3400
        %v3534 = vadd.f32 %v3533, %v3404
        %v3535 = vadd.f32 %v3534, %v3408
        %v3536 = vadd.f32 %v3535, %v3412
        %v3537 = vadd.f32 %v3536, %v3416
        %v3538 = vadd.f32 %v3537, %v3420
        %v3539 = vadd.f32 %v3538, %v3424
        %v3540 = vadd.f32 %v3539, %v3428
        %v3541 = vadd.f32 %v3540, %v3432
        %v3542 = vadd.f32 %v3541, %v3436
        %v3543 = vadd.f32 %v3542, %v3440
        %v3544 = vadd.f32 %v3543, %v3444
        %v3545 = vadd.f32 %v3544, %v3448
        %v3546 = vadd.f32 %v3545, %v3452
        %v3547 = vadd.f32 %v3546, %v3456
        %v3548 = vadd.f32 %v3547, %v3460
        %v3549 = vadd.f32 %v3548, %v3464
        %v3550 = vadd.f32 %v3549, %v3468
        %v3551 = vadd.f32 %v3550, %v3472
        %v3552 = vadd.f32 %v3551, %v3476
        %v3553 = vadd.f32 %v3552, %v3480
        %v3554 = vadd.f32 %v3553, %v3484
        %v3555 = vrot.slane %v3554, 4
        %v3556 = vadd.f32 %v3554, %v3555
        %v3557 = vrot.slane %v3556, 2
        %v3558 = vadd.f32 %v3556, %v3557
        %v3559 = vrot.slane %v3558, 1
        %v3560 = vadd.f32 %v3558, %v3559
        %v3561 = vadd.f32 %v3361, %v3365
        %v3562 = vadd.f32 %v3561, %v3369
        %v3563 = vadd.f32 %v3562, %v3373
        %v3564 = vadd.f32 %v3563, %v3377
        %v3565 = vadd.f32 %v3564, %v3381
        %v3566 = vadd.f32 %v3565, %v3385
        %v3567 = vadd.f32 %v3566, %v3389
        %v3568 = vadd.f32 %v3567, %v3393
        %v3569 = vadd.f32 %v3568, %v3397
        %v3570 = vadd.f32 %v3569, %v3401
        %v3571 = vadd.f32 %v3570, %v3405
        %v3572 = vadd.f32 %v3571, %v3409
        %v3573 = vadd.f32 %v3572, %v3413
        %v3574 = vadd.f32 %v3573, %v3417
        %v3575 = vadd.f32 %v3574, %v3421
        %v3576 = vadd.f32 %v3575, %v3425
        %v3577 = vadd.f32 %v3576, %v3429
        %v3578 = vadd.f32 %v3577, %v3433
        %v3579 = vadd.f32 %v3578, %v3437
        %v3580 = vadd.f32 %v3579, %v3441
        %v3581 = vadd.f32 %v3580, %v3445
        %v3582 = vadd.f32 %v3581, %v3449
        %v3583 = vadd.f32 %v3582, %v3453
        %v3584 = vadd.f32 %v3583, %v3457
        %v3585 = vadd.f32 %v3584, %v3461
        %v3586 = vadd.f32 %v3585, %v3465
        %v3587 = vadd.f32 %v3586, %v3469
        %v3588 = vadd.f32 %v3587, %v3473
        %v3589 = vadd.f32 %v3588, %v3477
        %v3590 = vadd.f32 %v3589, %v3481
        %v3591 = vadd.f32 %v3590, %v3485
        %v3592 = vrot.slane %v3591, 4
        %v3593 = vadd.f32 %v3591, %v3592
        %v3594 = vrot.slane %v3593, 2
        %v3595 = vadd.f32 %v3593, %v3594
        %v3596 = vrot.slane %v3595, 1
        %v3597 = vadd.f32 %v3595, %v3596
        %v3598 = vadd.f32 %v3362, %v3366
        %v3599 = vadd.f32 %v3598, %v3370
        %v3600 = vadd.f32 %v3599, %v3374
        %v3601 = vadd.f32 %v3600, %v3378
        %v3602 = vadd.f32 %v3601, %v3382
        %v3603 = vadd.f32 %v3602, %v3386
        %v3604 = vadd.f32 %v3603, %v3390
        %v3605 = vadd.f32 %v3604, %v3394
        %v3606 = vadd.f32 %v3605, %v3398
        %v3607 = vadd.f32 %v3606, %v3402
        %v3608 = vadd.f32 %v3607, %v3406
        %v3609 = vadd.f32 %v3608, %v3410
        %v3610 = vadd.f32 %v3609, %v3414
        %v3611 = vadd.f32 %v3610, %v3418
        %v3612 = vadd.f32 %v3611, %v3422
        %v3613 = vadd.f32 %v3612, %v3426
        %v3614 = vadd.f32 %v3613, %v3430
        %v3615 = vadd.f32 %v3614, %v3434
        %v3616 = vadd.f32 %v3615, %v3438
        %v3617 = vadd.f32 %v3616, %v3442
        %v3618 = vadd.f32 %v3617, %v3446
        %v3619 = vadd.f32 %v3618, %v3450
        %v3620 = vadd.f32 %v3619, %v3454
        %v3621 = vadd.f32 %v3620, %v3458
        %v3622 = vadd.f32 %v3621, %v3462
        %v3623 = vadd.f32 %v3622, %v3466
        %v3624 = vadd.f32 %v3623, %v3470
        %v3625 = vadd.f32 %v3624, %v3474
        %v3626 = vadd.f32 %v3625, %v3478
        %v3627 = vadd.f32 %v3626, %v3482
        %v3628 = vadd.f32 %v3627, %v3486
        %v3629 = vrot.slane %v3628, 4
        %v3630 = vadd.f32 %v3628, %v3629
        %v3631 = vrot.slane %v3630, 2
        %v3632 = vadd.f32 %v3630, %v3631
        %v3633 = vrot.slane %v3632, 1
        %v3634 = vadd.f32 %v3632, %v3633
        %v3636 = vlaneseq
        %v3637 = vshrl.u32 %v3636, 7
        %v3638 = vsub.s32 0, %v3637
        %v3639 = vrot.slane %v3358, %v3638
        %v3640 = vlaneseq
        %v3641 = vshrl.u32 %v3640, 7
        %v3642 = vsub.s32 1, %v3641
        %v3643 = vrot.slane %v3358, %v3642
        %v3644 = vlaneseq
        %v3645 = vshrl.u32 %v3644, 7
        %v3646 = vsub.s32 2, %v3645
        %v3647 = vrot.slane %v3358, %v3646
        %v3648 = vlaneseq
        %v3649 = vshrl.u32 %v3648, 7
        %v3650 = vsub.s32 3, %v3649
        %v3651 = vrot.slane %v3358, %v3650
        %v3656 = vmul.f32 %v3523, %v3639
        %v3657 = vmul.f32 %v3560, %v3643
        %v3658 = vmul.f32 %v3597, %v3647
        %v3659 = vmul.f32 %v3634, %v3651
        %v3660 = vld [vmem:[#allocation6] sm:$0xf]
        %v3661 = vsub.f32 %v3191, %v3221
        %v3662 = vmul.f32 %v3661, 1.442695
        %v3663 = vpow.pop %v3662
        %v3664 = vmul.f32 %v3660, %v3663
        %v3669 = vcombine.low %v3656, %v3657
        %v3670 = vcombine.low %v3658, %v3659
        %v3672 = vunpack.c.l.s4 1966171168
        %v3673 = vunpack.c.0.s8 %v3672
        %v3674 = vlaneseq
        %v3675 = vshrl.u32 %v3674, 7
        %v3676 = vsub.s32 %v3673, %v3675
        %v3677 = vrot.slane %v3669, %v3676
        %v3679 = vunpack.c.l.s4 1966171168
        %v3680 = vunpack.c.0.s8 %v3679
        %v3681 = vlaneseq
        %v3682 = vshrl.u32 %v3681, 7
        %v3683 = vsub.s32 %v3680, %v3682
        %v3684 = vrot.slane %v3670, %v3683
        %v3685 = vcombine.low %v3677, %v3684
        %v3687 = vunpack.c.l.s4 1966171168
        %v3688 = vunpack.c.0.s8 %v3687
        %v3689 = vlaneseq
        %v3690 = vshrl.u32 %v3689, 7
        %v3691 = vsub.s32 %v3688, %v3690
        %v3692 = vrot.slane %v3685, %v3691
        %v3694 = vadd.f32 %v3664, %v3692
        %v3695 = vlaneseq
        %vm3696 = vcmp.ge.s32.totalorder %v3695, 0
        %vm3697 = vcmp.lt.s32.totalorder %v3695, 512
        %vm3698 = vmand %vm3696, %vm3697
        %3699 = vst.msk [vmem:[#allocation6] sm:$0xf] %vm3698, %v3694
        %3700 = vst.msk [vmem:[#allocation5] sm:$0xf] %vm3698, %v3221
        %p3701 = scmp.eq.s32.totalorder %s16, 1
        // Predicated region
        $region101: #{clip_loss.1} parent=27 // pred_check
          %p3702 = pneg %p3701
        $region102: #{clip_loss.1} parent=27 // pred_check_branch
          %3704 = sbr.rel (%p3702) target = $region104
        $region103: #{clip_loss.1} parent=27 // pred_region
          %v3705 = vld [vmem:[#allocation5] sm:$0xf]
          %v3706 = vld [vmem:[#allocation6] sm:$0xf]
          %v3707 = vlog2.pop %v3706
          %v3708 = vmul.f32 %v3707, 0.6931472
          %v3709 = vadd.f32 %v3705, %v3708
          %v3711 = vlaneseq
          %v3712 = vshrl.u32 %v3711, 7
          %v3713 = vsub.s32 0, %v3712
          %v3714 = vrot.slane %v3709, %v3713
          %v3715 = vlaneseq
          %v3716 = vshrl.u32 %v3715, 7
          %v3717 = vsub.s32 1, %v3716
          %v3718 = vrot.slane %v3709, %v3717
          %v3719 = vlaneseq
          %v3720 = vshrl.u32 %v3719, 7
          %v3721 = vsub.s32 2, %v3720
          %v3722 = vrot.slane %v3709, %v3721
          %v3723 = vlaneseq
          %v3724 = vshrl.u32 %v3723, 7
          %v3725 = vsub.s32 3, %v3724
          %v3726 = vrot.slane %v3709, %v3725
          %vm3731 = vcmask 1040384
          %v3732 = vsel %vm3731, %v3714, 0.0
          %v3733 = vsel %vm3731, %v3718, 0.0
          %v3734 = vadd.f32 %v3732, %v3733
          %v3735 = vsel %vm3731, %v3722, 0.0
          %v3736 = vadd.f32 %v3734, %v3735
          %v3737 = vsel %vm3731, %v3726, 0.0
          %v3738 = vadd.f32 %v3736, %v3737
          %3739 = vadd.xlane.f32.xlu0 %v3738
          %v3740 = vpop.xlane.xlu0 %3739
          %v3741 = vrot.slane %v3740, 4
          %v3742 = vadd.f32 %v3740, %v3741
          %v3743 = vrot.slane %v3742, 2
          %v3744 = vadd.f32 %v3742, %v3743
          %v3745 = vrot.slane %v3744, 1
          %v3746 = vadd.f32 %v3744, %v3745
          %s3747 = vtos %v3746
          %v3748 = vstv %s3747
          %v3749 = vld [vmem:[#allocation7] sm:$0x1]
          %v3750 = vadd.f32 %v3749, %v3748
          %v3751 = vld [vmem:[#allocation8] sm:$0x1]
          %v3752 = vmul.f32 %v3751, 2.0
          %v3753 = vsub.f32 %v3750, %v3752
          %v3754 = vmul.f32 %v3753, 0.0009765625
          %3755 = vst.msk [vmem:[#allocation10] sm:$0x1] %vm2645, %v3754
        $region104: #{clip_loss.1} parent=27 // pred_fallthru
          _
        // Predicated region
        $region105: #{clip_loss.1} parent=27 // pred_check
          %p3756 = pneg %p76
        $region106: #{clip_loss.1} parent=27 // pred_check_branch
          %3758 = sbr.rel (%p3756) target = $region108
        $region107: #{clip_loss.1} parent=27 // pred_region
          %s3760 = ssub.s32 16, 16
          %3761 = vsyncadd [#allocation11], %s3760
          %s3763 = sshll.u32 [#allocation10], 4
          %s3764 = int_to_ptr.vmem [resolvable:$true] %s3763
          %3766 = dma.vmem_to_hbm [thread:$0]  %s3764, 16, %s3, [#allocation11]
        $region108: #{clip_loss.1} parent=27 // pred_fallthru
          _
        // Predicated region
        $region109: #{clip_loss.1} parent=27 // pred_check
          %p3767 = pneg %p76
        $region110: #{clip_loss.1} parent=27 // pred_check_branch
          %3769 = sbr.rel (%p3767) target = $region112
        $region111: #{clip_loss.1} parent=27 // pred_region
          %3770 = dma.done [#allocation11], 16
        $region112: #{clip_loss.1} parent=27 // pred_fallthru
          _
      $region28: #{clip_loss.1} parent=5 // pred_fallthru
        _
      %p3771 = scmp.le.s32.totalorder 2, %s11
      // Predicated region
      $region113: #{clip_loss.1} parent=5 // pred_check
        %p3772 = pneg %p3771
      $region114: #{clip_loss.1} parent=5 // pred_check_branch
        %3774 = sbr.rel (%p3772) target = $region116
      $region115: #{clip_loss.1} parent=5 // pred_region
        %s3775 = ssub.s32 %s11, 2
      $region116: #{clip_loss.1} parent=5 // pred_fallthru
        _
    $region6: #{clip_loss.1} parent=1 // loop_footer
      %s15 = sadd.s32 1, %s11
    $region7: #{clip_loss.1} parent=1 // loop_footer_branch
      %10 = sbr.rel target = $region3
    $region8: #{clip_loss.1} parent=1 // loop_exit
      _
    %3776 = vsyncpa [#allocation11], 1
    %s3777 = scalar_lea.sflag [#allocation11], 1
    %3778 = vsyncpa %s3777, 1
  %3779 = vsyncmov [#allocation4]
  %s3780 = vpop.sfrf %3779
  %p3781 = scmp.eq.s32.totalorder %s3780, 0
  %p3782 = pneg %p3781
  %3784 = shalt.err (%p3782)

</llo_original>
